<compile_context>
chip_gen: v6e
topology: v6e:2x2x1
jax: 0.10.0
libtpu: 0.0.40
codegen_flags: <defaults>
</compile_context>

<pallas_src>
import numpy as np

import jax
import jax.numpy as jnp
from jax.experimental import pallas as pl
from jax.experimental.pallas import tpu as pltpu

# ---------------------------------------------------------------------------
# Configuration (shrunk hidden sizes; structure matches the PyTorch module).
# ---------------------------------------------------------------------------
ATTR_PER_SUB = [9, 10, 5, 2, 9, 3, 2]       # fixed in the reference module
N_SUB = len(ATTR_PER_SUB)                   # 7
N_ATTRS = sum(ATTR_PER_SUB)                 # 40 == len(selected_attrs)
INPUT_DIM = 512                             # torch default input_dim = 512
SUB_H1 = 512                                # torch: 4096
SUB_H2 = 256                                # torch: 1024 (the per-subnet feature dim)
CLS_H = 128                                 # torch: 256  (fc_block hidden)
MAX_A = max(ATTR_PER_SUB)                   # 10 classifiers max per subnet
CAT = MAX_A * CLS_H                         # 1280 — lane-dense classifier hidden slab
BN_EPS = 1e-5

# Column indices mapping the (subnet-major, MAX_A-padded) head slots back to the
# torch.cat ordering of the 40 classifiers (classifier a of subnet i -> i*MAX_A + a).
_COL_IDX = np.concatenate(
    [np.arange(c, dtype=np.int32) + i * MAX_A for i, c in enumerate(ATTR_PER_SUB)])


# ---------------------------------------------------------------------------
# Single fused kernel: one grid step == one complete subnetwork + its classifiers.
# Weights arrive in bf16; all matmuls accumulate in f32 on the MXU.
# ---------------------------------------------------------------------------
def _fused_subnet_kernel(x_ref, w1_ref, b1_ref, w2_ref, b2_ref,
                         wc1_ref, bc1_ref, wc2_ref, bc2_ref, y_ref):
    f32, bf16 = jnp.float32, jnp.bfloat16

    # subnetwork_i : Linear(INPUT_DIM, SUB_H1) -> Linear(SUB_H1, SUB_H2)
    h = jnp.dot(x_ref[...].astype(bf16), w1_ref[...],
                preferred_element_type=f32) + b1_ref[...]
    feat = jnp.dot(h.astype(bf16), w2_ref[...],
                   preferred_element_type=f32) + b2_ref[...]

    # All classifiers of subnet i at once.
    # fc_block: Linear(SUB_H2, CLS_H) with eval-mode BN folded in, Dropout=identity, ReLU.
    hc = jnp.dot(feat.astype(bf16), wc1_ref[...],
                 preferred_element_type=f32) + bc1_ref[...]
    hc = jnp.maximum(hc, 0.0)

    # Final Linear(CLS_H, 1) per classifier packed as one block-diagonal matmul,
    # then the module-level sigmoid (elementwise, so per-block application is exact).
    y = jnp.dot(hc.astype(bf16), wc2_ref[...],
                preferred_element_type=f32) + bc2_ref[...]
    y_ref[...] = jax.nn.sigmoid(y)


def forward(x, kp):
    """Mirrors FeatureClassfierLocation01.forward (eval mode); returns res (N, 40)."""
    n = x.shape[0]
    x2 = x.reshape(n, -1)                                    # x.view(x.size(0), -1)

    y_pad = pl.pallas_call(
        _fused_subnet_kernel,
        out_shape=jax.ShapeDtypeStruct((N_SUB, n, MAX_A), jnp.float32),
        grid=(N_SUB,),
        in_specs=[
            pl.BlockSpec((n, INPUT_DIM), lambda i: (0, 0)),                # x (shared)
            pl.BlockSpec((None, INPUT_DIM, SUB_H1), lambda i: (i, 0, 0)),  # W1[i]  bf16
            pl.BlockSpec((None, 1, SUB_H1), lambda i: (i, 0, 0)),          # b1[i]  f32
            pl.BlockSpec((None, SUB_H1, SUB_H2), lambda i: (i, 0, 0)),     # W2[i]  bf16
            pl.BlockSpec((None, 1, SUB_H2), lambda i: (i, 0, 0)),          # b2[i]  f32
            pl.BlockSpec((None, SUB_H2, CAT), lambda i: (i, 0, 0)),        # Wc1[i] bf16 (BN folded)
            pl.BlockSpec((None, 1, CAT), lambda i: (i, 0, 0)),             # bc1[i] f32  (BN folded)
            pl.BlockSpec((None, CAT, MAX_A), lambda i: (i, 0, 0)),         # Wc2[i] bf16 (block-diag)
            pl.BlockSpec((None, 1, MAX_A), lambda i: (i, 0, 0)),           # bc2[i] f32
        ],
        out_specs=pl.BlockSpec((None, n, MAX_A), lambda i: (i, 0, 0)),
        compiler_params=pltpu.CompilerParams(
            dimension_semantics=("parallel",),
            vmem_limit_bytes=48 * 1024 * 1024),   # headroom for full torch-size weights
    )(x2, kp["w1"], kp["b1"], kp["w2"], kp["b2"],
      kp["wc1"], kp["bc1"], kp["wc2"], kp["bc2"])

    # Single gather back to the torch.cat ordering (instead of 7 slices + concat).
    y_flat = jnp.transpose(y_pad, (1, 0, 2)).reshape(n, N_SUB * MAX_A)
    return jnp.take(y_flat, jnp.asarray(_COL_IDX), axis=1)   # (N, 40)


# ---------------------------------------------------------------------------
# Deterministic parameter initialization (PyTorch-style Linear init, non-trivial BN stats).
# ---------------------------------------------------------------------------
def _linear_params(key, fan_in, fan_out):
    kw, kb = jax.random.split(key)
    bound = 1.0 / (fan_in ** 0.5)
    w = jax.random.uniform(kw, (fan_in, fan_out), jnp.float32, -bound, bound)
    b = jax.random.uniform(kb, (fan_out,), jnp.float32, -bound, bound)
    return w, b


def _bn_params(key, dim):
    k1, k2, k3, k4 = jax.random.split(key, 4)
    gamma = 1.0 + 0.1 * jax.random.normal(k1, (dim,), jnp.float32)
    beta = 0.1 * jax.random.normal(k2, (dim,), jnp.float32)
    mean = 0.1 * jax.random.normal(k3, (dim,), jnp.float32)
    var = 1.0 + 0.1 * jnp.abs(jax.random.normal(k4, (dim,), jnp.float32))
    return gamma, beta, mean, var


def init_raw_params(key):
    keys = iter(jax.random.split(key, 2 * N_SUB + 3 * N_ATTRS + 8))
    raw = {"sub": [], "cls": []}
    for _ in range(N_SUB):     # subnetworkXX: Linear -> Linear
        w1, b1 = _linear_params(next(keys), INPUT_DIM, SUB_H1)
        w2, b2 = _linear_params(next(keys), SUB_H1, SUB_H2)
        raw["sub"].append(dict(w1=w1, b1=b1, w2=w2, b2=b2))
    for _ in range(N_ATTRS):   # classifierXX: fc_block(SUB_H2, CLS_H) -> Linear(CLS_H, 1)
        wf, bf = _linear_params(next(keys), SUB_H2, CLS_H)
        gamma, beta, mean, var = _bn_params(next(keys), CLS_H)
        wo, bo = _linear_params(next(keys), CLS_H, 1)
        raw["cls"].append(dict(wf=wf, bf=bf, gamma=gamma, beta=beta,
                               mean=mean, var=var, wo=wo, bo=bo))
    return raw


def pack_kernel_params(raw):
    """Stack per-subnet weights, fold eval-mode BN, pack heads, cast weights to bf16."""
    w1 = jnp.stack([p["w1"] for p in raw["sub"]]).astype(jnp.bfloat16)   # (7, D_in, H1)
    b1 = jnp.stack([p["b1"][None, :] for p in raw["sub"]])               # (7, 1, H1) f32
    w2 = jnp.stack([p["w2"] for p in raw["sub"]]).astype(jnp.bfloat16)   # (7, H1, H2)
    b2 = jnp.stack([p["b2"][None, :] for p in raw["sub"]])               # (7, 1, H2) f32

    wc1 = np.zeros((N_SUB, SUB_H2, CAT), np.float32)
    bc1 = np.zeros((N_SUB, 1, CAT), np.float32)
    wc2 = np.zeros((N_SUB, CAT, MAX_A), np.float32)
    bc2 = np.zeros((N_SUB, 1, MAX_A), np.float32)
    j = 0
    for i in range(N_SUB):
        for a in range(ATTR_PER_SUB[i]):
            c = raw["cls"][j]
            j += 1
            scale = np.asarray(c["gamma"]) / np.sqrt(np.asarray(c["var"]) + BN_EPS)
            shift = np.asarray(c["beta"]) - np.asarray(c["mean"]) * scale
            lo = a * CLS_H
            wc1[i, :, lo:lo + CLS_H] = np.asarray(c["wf"]) * scale[None, :]
            bc1[i, 0, lo:lo + CLS_H] = np.asarray(c["bf"]) * scale + shift
            wc2[i, lo:lo + CLS_H, a] = np.asarray(c["wo"])[:, 0]
            bc2[i, 0, a] = float(np.asarray(c["bo"])[0])
    return dict(w1=w1, b1=b1, w2=w2, b2=b2,
                wc1=jnp.asarray(wc1).astype(jnp.bfloat16), bc1=jnp.asarray(bc1),
                wc2=jnp.asarray(wc2).astype(jnp.bfloat16), bc2=jnp.asarray(bc2))


# ---------------------------------------------------------------------------
# Pure-JAX f32 reference (unfused, per-classifier) for a correctness check.
# ---------------------------------------------------------------------------
def reference_forward(x, raw):
    hp = jax.lax.Precision.HIGHEST
    x2 = x.reshape(x.shape[0], -1)
    ys = []
    j = 0
    for i in range(N_SUB):
        p = raw["sub"][i]
        feat = jnp.dot(x2, p["w1"], precision=hp) + p["b1"]
        feat = jnp.dot(feat, p["w2"], precision=hp) + p["b2"]
        for _ in range(ATTR_PER_SUB[i]):
            c = raw["cls"][j]
            j += 1
            z = jnp.dot(feat, c["wf"], precision=hp) + c["bf"]
            scale = c["gamma"] / jnp.sqrt(c["var"] + BN_EPS)
            z = z * scale + (c["beta"] - c["mean"] * scale)   # eval-mode BatchNorm1d
            z = jnp.maximum(z, 0.0)                           # Dropout=identity, then ReLU
            ys.append(jnp.dot(z, c["wo"], precision=hp) + c["bo"])
    return jax.nn.sigmoid(jnp.concatenate(ys, axis=1))


if __name__ == "__main__":
    batch, C, H, W = 8, 2, 16, 16           # C*H*W == INPUT_DIM == 512
    x = jax.random.normal(jax.random.PRNGKey(0), (batch, C, H, W), jnp.float32)

    raw = init_raw_params(jax.random.PRNGKey(1))
    kp = pack_kernel_params(raw)

    fwd = jax.jit(forward)
    res = fwd(x, kp)
    jax.block_until_ready(res)

    assert res.shape == (batch, N_ATTRS)                      # (8, 40)
    assert bool(jnp.all((res >= 0.0) & (res <= 1.0)))         # sigmoid output

    ref = reference_forward(x, raw)
    max_err = float(jnp.max(jnp.abs(res - ref)))
    # Tolerance re-derived for bf16 weight/activation streaming (f32 accumulation):
    # worst-case post-sigmoid deviation is ~1e-2; 5e-2 gives a comfortable margin
    # while still catching structural/packing bugs.
    assert max_err < 5e-2, f"max abs err vs f32 reference: {max_err}"

    print("KERNEL_OK")
</pallas_src>

<mosaic_0001>
module attributes {stable_mosaic.version = 11 : i64} {
  func.func @_fused_subnet_kernel(%arg0: i32, %arg1: memref<8x512xf32, #tpu.memory_space<vmem>>, %arg2: memref<1x512x512xbf16, #tpu.memory_space<vmem>>, %arg3: memref<1x1x512xf32, #tpu.memory_space<vmem>>, %arg4: memref<1x512x256xbf16, #tpu.memory_space<vmem>>, %arg5: memref<1x1x256xf32, #tpu.memory_space<vmem>>, %arg6: memref<1x256x1280xbf16, #tpu.memory_space<vmem>>, %arg7: memref<1x1x1280xf32, #tpu.memory_space<vmem>>, %arg8: memref<1x1280x10xbf16, #tpu.memory_space<vmem>>, %arg9: memref<1x1x10xf32, #tpu.memory_space<vmem>>, %arg10: memref<1x8x10xf32, #tpu.memory_space<vmem>>) attributes {dimension_semantics = [#tpu.dimension_semantics<parallel>], iteration_bounds = array<i64: 7>, scalar_prefetch = 0 : i64, scratch_operands = 0 : i64, tpu.core_type = #tpu.core_type<tc>, window_params = [{pipeline_mode = #tpu.pipeline_mode<synchronous>, transform_indices = @transform_0, window_bounds = array<i64: 8, 512>}, {transform_indices = @transform_1, window_bounds = array<i64: 1, 512, 512>}, {transform_indices = @transform_2, window_bounds = array<i64: 1, 1, 512>}, {transform_indices = @transform_3, window_bounds = array<i64: 1, 512, 256>}, {transform_indices = @transform_4, window_bounds = array<i64: 1, 1, 256>}, {transform_indices = @transform_5, window_bounds = array<i64: 1, 256, 1280>}, {transform_indices = @transform_6, window_bounds = array<i64: 1, 1, 1280>}, {transform_indices = @transform_7, window_bounds = array<i64: 1, 1280, 10>}, {transform_indices = @transform_8, window_bounds = array<i64: 1, 1, 10>}, {transform_indices = @transform_9, window_bounds = array<i64: 1, 8, 10>}]} {
    %c0 = arith.constant 0 : index
    %c0_0 = arith.constant 0 : index
    %0 = vector.load %arg1[%c0, %c0_0] : memref<8x512xf32, #tpu.memory_space<vmem>>, vector<8x512xf32>
    %1 = arith.truncf %0 : vector<8x512xf32> to vector<8x512xbf16>
    %c0_1 = arith.constant 0 : index
    %c0_2 = arith.constant 0 : index
    %c0_3 = arith.constant 0 : index
    %2 = vector.load %arg2[%c0_1, %c0_2, %c0_3] : memref<1x512x512xbf16, #tpu.memory_space<vmem>>, vector<1x512x512xbf16>
    %3 = vector.shape_cast %2 : vector<1x512x512xbf16> to vector<512x512xbf16>
    %cst = arith.constant dense<0.000000e+00> : vector<8x512xf32>
    %4 = tpu.matmul %1, %3, %cst {dimension_numbers = #tpu.dot_dimension_numbers<[1], [0], [0], [1], [0, 0, 1, 1], [], []>} : vector<8x512xbf16>, vector<512x512xbf16>, vector<8x512xf32> -> vector<8x512xf32>
    %c0_4 = arith.constant 0 : index
    %c0_5 = arith.constant 0 : index
    %c0_6 = arith.constant 0 : index
    %5 = vector.load %arg3[%c0_4, %c0_5, %c0_6] : memref<1x1x512xf32, #tpu.memory_space<vmem>>, vector<1x1x512xf32>
    %6 = vector.shape_cast %5 : vector<1x1x512xf32> to vector<1x512xf32>
    %7 = vector.broadcast %6 : vector<1x512xf32> to vector<8x512xf32>
    %8 = arith.addf %4, %7 : vector<8x512xf32>
    %9 = arith.truncf %8 : vector<8x512xf32> to vector<8x512xbf16>
    %c0_7 = arith.constant 0 : index
    %c0_8 = arith.constant 0 : index
    %c0_9 = arith.constant 0 : index
    %10 = vector.load %arg4[%c0_7, %c0_8, %c0_9] : memref<1x512x256xbf16, #tpu.memory_space<vmem>>, vector<1x512x256xbf16>
    %11 = vector.shape_cast %10 : vector<1x512x256xbf16> to vector<512x256xbf16>
    %cst_10 = arith.constant dense<0.000000e+00> : vector<8x256xf32>
    %12 = tpu.matmul %9, %11, %cst_10 {dimension_numbers = #tpu.dot_dimension_numbers<[1], [0], [0], [1], [0, 0, 1, 1], [], []>} : vector<8x512xbf16>, vector<512x256xbf16>, vector<8x256xf32> -> vector<8x256xf32>
    %c0_11 = arith.constant 0 : index
    %c0_12 = arith.constant 0 : index
    %c0_13 = arith.constant 0 : index
    %13 = vector.load %arg5[%c0_11, %c0_12, %c0_13] : memref<1x1x256xf32, #tpu.memory_space<vmem>>, vector<1x1x256xf32>
    %14 = vector.shape_cast %13 : vector<1x1x256xf32> to vector<1x256xf32>
    %15 = vector.broadcast %14 : vector<1x256xf32> to vector<8x256xf32>
    %16 = arith.addf %12, %15 : vector<8x256xf32>
    %17 = arith.truncf %16 : vector<8x256xf32> to vector<8x256xbf16>
    %c0_14 = arith.constant 0 : index
    %c0_15 = arith.constant 0 : index
    %c0_16 = arith.constant 0 : index
    %18 = vector.load %arg6[%c0_14, %c0_15, %c0_16] : memref<1x256x1280xbf16, #tpu.memory_space<vmem>>, vector<1x256x1280xbf16>
    %19 = vector.shape_cast %18 : vector<1x256x1280xbf16> to vector<256x1280xbf16>
    %cst_17 = arith.constant dense<0.000000e+00> : vector<8x1280xf32>
    %20 = tpu.matmul %17, %19, %cst_17 {dimension_numbers = #tpu.dot_dimension_numbers<[1], [0], [0], [1], [0, 0, 1, 1], [], []>} : vector<8x256xbf16>, vector<256x1280xbf16>, vector<8x1280xf32> -> vector<8x1280xf32>
    %c0_18 = arith.constant 0 : index
    %c0_19 = arith.constant 0 : index
    %c0_20 = arith.constant 0 : index
    %21 = vector.load %arg7[%c0_18, %c0_19, %c0_20] : memref<1x1x1280xf32, #tpu.memory_space<vmem>>, vector<1x1x1280xf32>
    %22 = vector.shape_cast %21 : vector<1x1x1280xf32> to vector<1x1280xf32>
    %23 = vector.broadcast %22 : vector<1x1280xf32> to vector<8x1280xf32>
    %24 = arith.addf %20, %23 : vector<8x1280xf32>
    %cst_21 = arith.constant 0.000000e+00 : f32
    %25 = vector.broadcast %cst_21 : f32 to vector<8x1280xf32>
    %26 = arith.maximumf %24, %25 : vector<8x1280xf32>
    %27 = arith.truncf %26 : vector<8x1280xf32> to vector<8x1280xbf16>
    %c0_22 = arith.constant 0 : index
    %c0_23 = arith.constant 0 : index
    %c0_24 = arith.constant 0 : index
    %28 = vector.load %arg8[%c0_22, %c0_23, %c0_24] : memref<1x1280x10xbf16, #tpu.memory_space<vmem>>, vector<1x1280x10xbf16>
    %29 = vector.shape_cast %28 : vector<1x1280x10xbf16> to vector<1280x10xbf16>
    %cst_25 = arith.constant dense<0.000000e+00> : vector<8x10xf32>
    %30 = tpu.matmul %27, %29, %cst_25 {dimension_numbers = #tpu.dot_dimension_numbers<[1], [0], [0], [1], [0, 0, 1, 1], [], []>} : vector<8x1280xbf16>, vector<1280x10xbf16>, vector<8x10xf32> -> vector<8x10xf32>
    %c0_26 = arith.constant 0 : index
    %c0_27 = arith.constant 0 : index
    %c0_28 = arith.constant 0 : index
    %31 = vector.load %arg9[%c0_26, %c0_27, %c0_28] : memref<1x1x10xf32, #tpu.memory_space<vmem>>, vector<1x1x10xf32>
    %32 = vector.shape_cast %31 : vector<1x1x10xf32> to vector<1x10xf32>
    %33 = vector.broadcast %32 : vector<1x10xf32> to vector<8x10xf32>
    %34 = arith.addf %30, %33 : vector<8x10xf32>
    %35 = arith.negf %34 : vector<8x10xf32>
    %36 = math.exp %35 : vector<8x10xf32>
    %cst_29 = arith.constant 1.000000e+00 : f32
    %37 = vector.broadcast %cst_29 : f32 to vector<8x10xf32>
    %38 = arith.addf %37, %36 : vector<8x10xf32>
    %39 = arith.divf %37, %38 : vector<8x10xf32>
    %c0_30 = arith.constant 0 : index
    %c0_31 = arith.constant 0 : index
    %c0_32 = arith.constant 0 : index
    %40 = vector.load %arg10[%c0_30, %c0_31, %c0_32] : memref<1x8x10xf32, #tpu.memory_space<vmem>>, vector<1x8x10xf32>
    %41 = vector.shape_cast %40 : vector<1x8x10xf32> to vector<8x10xf32>
    %42 = vector.shape_cast %39 : vector<8x10xf32> to vector<1x8x10xf32>
    tpu.vector_store %arg10[%c0_30, %c0_31, %c0_32], %42 {strides = array<i32>} : memref<1x8x10xf32, #tpu.memory_space<vmem>>, vector<1x8x10xf32>,
    return
  }
  func.func @transform_0(%arg0: i32) -> (i32, i32) {
    %c0_i32 = arith.constant 0 : i32
    %c0_i32_0 = arith.constant 0 : i32
    %c0_i32_1 = arith.constant 0 : i32
    return %c0_i32, %c0_i32_0 : i32, i32
  }
  func.func @transform_1(%arg0: i32) -> (i32, i32, i32) {
    %c0_i32 = arith.constant 0 : i32
    %c0_i32_0 = arith.constant 0 : i32
    %c0_i32_1 = arith.constant 0 : i32
    return %arg0, %c0_i32, %c0_i32_0 : i32, i32, i32
  }
  func.func @transform_2(%arg0: i32) -> (i32, i32, i32) {
    %c0_i32 = arith.constant 0 : i32
    %c0_i32_0 = arith.constant 0 : i32
    %c0_i32_1 = arith.constant 0 : i32
    return %arg0, %c0_i32, %c0_i32_0 : i32, i32, i32
  }
  func.func @transform_3(%arg0: i32) -> (i32, i32, i32) {
    %c0_i32 = arith.constant 0 : i32
    %c0_i32_0 = arith.constant 0 : i32
    %c0_i32_1 = arith.constant 0 : i32
    return %arg0, %c0_i32, %c0_i32_0 : i32, i32, i32
  }
  func.func @transform_4(%arg0: i32) -> (i32, i32, i32) {
    %c0_i32 = arith.constant 0 : i32
    %c0_i32_0 = arith.constant 0 : i32
    %c0_i32_1 = arith.constant 0 : i32
    return %arg0, %c0_i32, %c0_i32_0 : i32, i32, i32
  }
  func.func @transform_5(%arg0: i32) -> (i32, i32, i32) {
    %c0_i32 = arith.constant 0 : i32
    %c0_i32_0 = arith.constant 0 : i32
    %c0_i32_1 = arith.constant 0 : i32
    return %arg0, %c0_i32, %c0_i32_0 : i32, i32, i32
  }
  func.func @transform_6(%arg0: i32) -> (i32, i32, i32) {
    %c0_i32 = arith.constant 0 : i32
    %c0_i32_0 = arith.constant 0 : i32
    %c0_i32_1 = arith.constant 0 : i32
    return %arg0, %c0_i32, %c0_i32_0 : i32, i32, i32
  }
  func.func @transform_7(%arg0: i32) -> (i32, i32, i32) {
    %c0_i32 = arith.constant 0 : i32
    %c0_i32_0 = arith.constant 0 : i32
    %c0_i32_1 = arith.constant 0 : i32
    return %arg0, %c0_i32, %c0_i32_0 : i32, i32, i32
  }
  func.func @transform_8(%arg0: i32) -> (i32, i32, i32) {
    %c0_i32 = arith.constant 0 : i32
    %c0_i32_0 = arith.constant 0 : i32
    %c0_i32_1 = arith.constant 0 : i32
    return %arg0, %c0_i32, %c0_i32_0 : i32, i32, i32
  }
  func.func @transform_9(%arg0: i32) -> (i32, i32, i32) {
    %c0_i32 = arith.constant 0 : i32
    %c0_i32_0 = arith.constant 0 : i32
    %c0_i32_1 = arith.constant 0 : i32
    return %arg0, %c0_i32, %c0_i32_0 : i32, i32, i32
  }
}

</mosaic_0001>

<llo_original>
// kernel: forward.1
$region0: #{forward.1}
  #allocation0 [shape = 'u32[]', space=smem, size = 0x4, offset = 0x4, fixed_abs, tag = 'smem constant byte address 0x4 - core index']
  #allocation1 [shape = 'u32[144,128]{1,0:T(1,128)}', space=vmem, size = 0x12000, scoped, tag = 'internal scratch']
  %s0 = inlined_call_operand.vmem [shape: f32[8,512], index: 0, kind: input, shape index: {}]
  %s1 = inlined_call_operand.hbm [shape: bf16[7,512,512], index: 1, kind: input, shape index: {}]
  %s2 = inlined_call_operand.hbm [shape: f32[7,1,512], index: 2, kind: input, shape index: {}]
  %s3 = inlined_call_operand.vmem [shape: bf16[7,512,256], index: 3, kind: input, shape index: {}]
  %s4 = inlined_call_operand.hbm [shape: f32[7,1,256], index: 4, kind: input, shape index: {}]
  %s5 = inlined_call_operand.hbm [shape: bf16[7,256,1280], index: 5, kind: input, shape index: {}]
  %s6 = inlined_call_operand.hbm [shape: f32[7,1,1280], index: 6, kind: input, shape index: {}]
  %s7 = inlined_call_operand.vmem [shape: bf16[7,1280,10], index: 7, kind: input, shape index: {}]
  %s8 = inlined_call_operand.hbm [shape: f32[7,1,10], index: 8, kind: input, shape index: {}]
  %s9 = inlined_call_operand.vmem [shape: f32[7,8,10], index: 9, kind: output, shape index: {}]
  %s10 = sld [smem:[#allocation0]]
  $region93: #{forward.1} parent=0
    _
  %s12 = ssub.s32 1, %s10
  %s13 = scalar_select 0, %s12, %s10
  $region1: #{forward.1} parent=0
    #allocation2 [shape = 'u8[1048576]{0}', space=vmem, size = 0x100000, scoped, tag = 'input window, operand 1']
    #allocation3 [shape = 's32[2]{0}', space=sflag, size = 0x8, scoped, tag = 'scoped memory for forward.1']
    #allocation4 [shape = 'u8[4096]{0}', space=vmem, size = 0x1000, scoped, tag = 'input window, operand 2']
    #allocation5 [shape = 's32[2]{0}', space=sflag, size = 0x8, scoped, tag = 'scoped memory for forward.1']
    #allocation6 [shape = 'u8[2048]{0}', space=vmem, size = 0x800, scoped, tag = 'input window, operand 4']
    #allocation7 [shape = 'u8[1310720]{0}', space=vmem, size = 0x140000, scoped, tag = 'input window, operand 5']
    #allocation8 [shape = 's32[2]{0}', space=sflag, size = 0x8, scoped, tag = 'scoped memory for forward.1']
    #allocation9 [shape = 'u8[10240]{0}', space=vmem, size = 0x2800, scoped, tag = 'input window, operand 6']
    #allocation10 [shape = 'u8[1024]{0}', space=vmem, size = 0x400, scoped, tag = 'input window, operand 8']
    #allocation11 [shape = 's32[2]{0}', space=sflag, size = 0x8, scoped, tag = 'scoped memory for forward.1']
    %14 = vsyncpa [#allocation3], 0
    %s15 = scalar_lea.sflag [#allocation3], 1
    %16 = vsyncpa %s15, 0
    %17 = vsyncpa [#allocation5], 0
    %s18 = scalar_lea.sflag [#allocation5], 1
    %19 = vsyncpa %s18, 0
    %20 = vsyncpa [#allocation8], 0
    %s21 = scalar_lea.sflag [#allocation8], 1
    %22 = vsyncpa %s21, 0
    %23 = vsyncpa [#allocation11], 0
    %s24 = scalar_lea.sflag [#allocation11], 1
    %25 = vsyncpa %s24, 0
    loop: start=0, step=1, limit=9
    $region2: #{forward.1} parent=1 // loop_pre_header
      _
    $region3: #{forward.1} parent=1 // loop_header
      %s27 = sphi 0, %s31
      %p28 = scmp.ge.s32.totalorder %s27, 9
      %s35 = sphi 0, %s35
      %s37 = sphi 0, %s35
      %s38 = sphi 0, %s37
      %s52 = sphi 0, %s38
      %s58 = sphi 0, %s60
      %s61 = sphi 0, %s58
      %s62 = sphi 0, %s61
      %s78 = sphi 0, %s62
      %s84 = sphi 0, %s86
      %s87 = sphi 0, %s84
      %s88 = sphi 0, %s87
      %s104 = sphi 0, %s88
      %s110 = sphi 0, %s112
      %s113 = sphi 0, %s110
      %s114 = sphi 0, %s113
      %s130 = sphi 0, %s114
      %s136 = sphi 0, %s138
      %s139 = sphi 0, %s136
      %s140 = sphi 0, %s139
      %s156 = sphi 0, %s140
      %s162 = sphi 0, %s164
      %s165 = sphi 0, %s162
      %s166 = sphi 0, %s165
      %s182 = sphi 0, %s166
      %s188 = sphi 0, %s190
      %s191 = sphi 0, %s188
      %s192 = sphi 0, %s191
      %s208 = sphi 0, %s192
      %s214 = sphi 0, %s216
      %s217 = sphi 0, %s214
      %s218 = sphi 0, %s217
      %s234 = sphi 0, %s218
      %s240 = sphi 0, %s242
      %s243 = sphi 0, %s240
      %s244 = sphi 0, %s243
      %s260 = sphi 0, %s244
      %s266 = sphi 0, %s268
      %s269 = sphi 0, %s266
      %s270 = sphi 0, %s269
      %s286 = sphi 0, %s270
    $region4: #{forward.1} parent=1 // loop_header_branch
      %30 = sbr.rel (%p28) target = $region8
    $region5: #{forward.1} parent=1 // loop_body
      %s32 = ssub.s32 %s27, 1
      %s33 = ssub.s32 %s27, 2
      %s34 = sadd.s32 %s27, 1
      %s36 = sadd.s32 %s35, 1
      %p39 = scmp.eq.s32.totalorder %s27, 6
      %p40 = scmp.ne.s32.totalorder %s35, %s37
      %p41 = scmp.eq.s32.totalorder %s27, 0
      %p42 = por %p40, %p41
      %p43 = scmp.ne.s32.totalorder %s35, %s37
      %p44 = scmp.eq.s32.totalorder %s32, 6
      %p45 = por %p43, %p44
      %p46 = scmp.ne.s32.totalorder %s37, %s38
      %p47 = scmp.eq.s32.totalorder %s32, 0
      %p48 = por %p46, %p47
      %p49 = scmp.ne.s32.totalorder %s37, %s38
      %p50 = scmp.eq.s32.totalorder %s33, 6
      %p51 = por %p49, %p50
      %p53 = scmp.ne.s32.totalorder %s38, %s52
      %p54 = scmp.eq.s32.totalorder %s33, 0
      %p55 = por %p53, %p54
      %s56 = ssub.s32 %s27, %s34
      %p57 = scmp.eq.s32.totalorder %s56, 0
      %s59 = sadd.s32 %s58, 1
      %s60 = scalar_select %p57, %s58, %s59
      %p63 = pneg %p57
      %p64 = scmp.eq.s32.totalorder %s27, 6
      %p65 = por %p63, %p64
      %p66 = scmp.ne.s32.totalorder %s58, %s61
      %p67 = scmp.eq.s32.totalorder %s27, 0
      %p68 = por %p66, %p67
      %p69 = scmp.ne.s32.totalorder %s58, %s61
      %p70 = scmp.eq.s32.totalorder %s32, 6
      %p71 = por %p69, %p70
      %p72 = scmp.ne.s32.totalorder %s61, %s62
      %p73 = scmp.eq.s32.totalorder %s32, 0
      %p74 = por %p72, %p73
      %p75 = scmp.ne.s32.totalorder %s61, %s62
      %p76 = scmp.eq.s32.totalorder %s33, 6
      %p77 = por %p75, %p76
      %p79 = scmp.ne.s32.totalorder %s62, %s78
      %p80 = scmp.eq.s32.totalorder %s33, 0
      %p81 = por %p79, %p80
      %s82 = ssub.s32 %s27, %s34
      %p83 = scmp.eq.s32.totalorder %s82, 0
      %s85 = sadd.s32 %s84, 1
      %s86 = scalar_select %p83, %s84, %s85
      %p89 = pneg %p83
      %p90 = scmp.eq.s32.totalorder %s27, 6
      %p91 = por %p89, %p90
      %p92 = scmp.ne.s32.totalorder %s84, %s87
      %p93 = scmp.eq.s32.totalorder %s27, 0
      %p94 = por %p92, %p93
      %p95 = scmp.ne.s32.totalorder %s84, %s87
      %p96 = scmp.eq.s32.totalorder %s32, 6
      %p97 = por %p95, %p96
      %p98 = scmp.ne.s32.totalorder %s87, %s88
      %p99 = scmp.eq.s32.totalorder %s32, 0
      %p100 = por %p98, %p99
      %p101 = scmp.ne.s32.totalorder %s87, %s88
      %p102 = scmp.eq.s32.totalorder %s33, 6
      %p103 = por %p101, %p102
      %p105 = scmp.ne.s32.totalorder %s88, %s104
      %p106 = scmp.eq.s32.totalorder %s33, 0
      %p107 = por %p105, %p106
      %s108 = ssub.s32 %s27, %s34
      %p109 = scmp.eq.s32.totalorder %s108, 0
      %s111 = sadd.s32 %s110, 1
      %s112 = scalar_select %p109, %s110, %s111
      %p115 = pneg %p109
      %p116 = scmp.eq.s32.totalorder %s27, 6
      %p117 = por %p115, %p116
      %p118 = scmp.ne.s32.totalorder %s110, %s113
      %p119 = scmp.eq.s32.totalorder %s27, 0
      %p120 = por %p118, %p119
      %p121 = scmp.ne.s32.totalorder %s110, %s113
      %p122 = scmp.eq.s32.totalorder %s32, 6
      %p123 = por %p121, %p122
      %p124 = scmp.ne.s32.totalorder %s113, %s114
      %p125 = scmp.eq.s32.totalorder %s32, 0
      %p126 = por %p124, %p125
      %p127 = scmp.ne.s32.totalorder %s113, %s114
      %p128 = scmp.eq.s32.totalorder %s33, 6
      %p129 = por %p127, %p128
      %p131 = scmp.ne.s32.totalorder %s114, %s130
      %p132 = scmp.eq.s32.totalorder %s33, 0
      %p133 = por %p131, %p132
      %s134 = ssub.s32 %s27, %s34
      %p135 = scmp.eq.s32.totalorder %s134, 0
      %s137 = sadd.s32 %s136, 1
      %s138 = scalar_select %p135, %s136, %s137
      %p141 = pneg %p135
      %p142 = scmp.eq.s32.totalorder %s27, 6
      %p143 = por %p141, %p142
      %p144 = scmp.ne.s32.totalorder %s136, %s139
      %p145 = scmp.eq.s32.totalorder %s27, 0
      %p146 = por %p144, %p145
      %p147 = scmp.ne.s32.totalorder %s136, %s139
      %p148 = scmp.eq.s32.totalorder %s32, 6
      %p149 = por %p147, %p148
      %p150 = scmp.ne.s32.totalorder %s139, %s140
      %p151 = scmp.eq.s32.totalorder %s32, 0
      %p152 = por %p150, %p151
      %p153 = scmp.ne.s32.totalorder %s139, %s140
      %p154 = scmp.eq.s32.totalorder %s33, 6
      %p155 = por %p153, %p154
      %p157 = scmp.ne.s32.totalorder %s140, %s156
      %p158 = scmp.eq.s32.totalorder %s33, 0
      %p159 = por %p157, %p158
      %s160 = ssub.s32 %s27, %s34
      %p161 = scmp.eq.s32.totalorder %s160, 0
      %s163 = sadd.s32 %s162, 1
      %s164 = scalar_select %p161, %s162, %s163
      %p167 = pneg %p161
      %p168 = scmp.eq.s32.totalorder %s27, 6
      %p169 = por %p167, %p168
      %p170 = scmp.ne.s32.totalorder %s162, %s165
      %p171 = scmp.eq.s32.totalorder %s27, 0
      %p172 = por %p170, %p171
      %p173 = scmp.ne.s32.totalorder %s162, %s165
      %p174 = scmp.eq.s32.totalorder %s32, 6
      %p175 = por %p173, %p174
      %p176 = scmp.ne.s32.totalorder %s165, %s166
      %p177 = scmp.eq.s32.totalorder %s32, 0
      %p178 = por %p176, %p177
      %p179 = scmp.ne.s32.totalorder %s165, %s166
      %p180 = scmp.eq.s32.totalorder %s33, 6
      %p181 = por %p179, %p180
      %p183 = scmp.ne.s32.totalorder %s166, %s182
      %p184 = scmp.eq.s32.totalorder %s33, 0
      %p185 = por %p183, %p184
      %s186 = ssub.s32 %s27, %s34
      %p187 = scmp.eq.s32.totalorder %s186, 0
      %s189 = sadd.s32 %s188, 1
      %s190 = scalar_select %p187, %s188, %s189
      %p193 = pneg %p187
      %p194 = scmp.eq.s32.totalorder %s27, 6
      %p195 = por %p193, %p194
      %p196 = scmp.ne.s32.totalorder %s188, %s191
      %p197 = scmp.eq.s32.totalorder %s27, 0
      %p198 = por %p196, %p197
      %p199 = scmp.ne.s32.totalorder %s188, %s191
      %p200 = scmp.eq.s32.totalorder %s32, 6
      %p201 = por %p199, %p200
      %p202 = scmp.ne.s32.totalorder %s191, %s192
      %p203 = scmp.eq.s32.totalorder %s32, 0
      %p204 = por %p202, %p203
      %p205 = scmp.ne.s32.totalorder %s191, %s192
      %p206 = scmp.eq.s32.totalorder %s33, 6
      %p207 = por %p205, %p206
      %p209 = scmp.ne.s32.totalorder %s192, %s208
      %p210 = scmp.eq.s32.totalorder %s33, 0
      %p211 = por %p209, %p210
      %s212 = ssub.s32 %s27, %s34
      %p213 = scmp.eq.s32.totalorder %s212, 0
      %s215 = sadd.s32 %s214, 1
      %s216 = scalar_select %p213, %s214, %s215
      %p219 = pneg %p213
      %p220 = scmp.eq.s32.totalorder %s27, 6
      %p221 = por %p219, %p220
      %p222 = scmp.ne.s32.totalorder %s214, %s217
      %p223 = scmp.eq.s32.totalorder %s27, 0
      %p224 = por %p222, %p223
      %p225 = scmp.ne.s32.totalorder %s214, %s217
      %p226 = scmp.eq.s32.totalorder %s32, 6
      %p227 = por %p225, %p226
      %p228 = scmp.ne.s32.totalorder %s217, %s218
      %p229 = scmp.eq.s32.totalorder %s32, 0
      %p230 = por %p228, %p229
      %p231 = scmp.ne.s32.totalorder %s217, %s218
      %p232 = scmp.eq.s32.totalorder %s33, 6
      %p233 = por %p231, %p232
      %p235 = scmp.ne.s32.totalorder %s218, %s234
      %p236 = scmp.eq.s32.totalorder %s33, 0
      %p237 = por %p235, %p236
      %s238 = ssub.s32 %s27, %s34
      %p239 = scmp.eq.s32.totalorder %s238, 0
      %s241 = sadd.s32 %s240, 1
      %s242 = scalar_select %p239, %s240, %s241
      %p245 = pneg %p239
      %p246 = scmp.eq.s32.totalorder %s27, 6
      %p247 = por %p245, %p246
      %p248 = scmp.ne.s32.totalorder %s240, %s243
      %p249 = scmp.eq.s32.totalorder %s27, 0
      %p250 = por %p248, %p249
      %p251 = scmp.ne.s32.totalorder %s240, %s243
      %p252 = scmp.eq.s32.totalorder %s32, 6
      %p253 = por %p251, %p252
      %p254 = scmp.ne.s32.totalorder %s243, %s244
      %p255 = scmp.eq.s32.totalorder %s32, 0
      %p256 = por %p254, %p255
      %p257 = scmp.ne.s32.totalorder %s243, %s244
      %p258 = scmp.eq.s32.totalorder %s33, 6
      %p259 = por %p257, %p258
      %p261 = scmp.ne.s32.totalorder %s244, %s260
      %p262 = scmp.eq.s32.totalorder %s33, 0
      %p263 = por %p261, %p262
      %s264 = ssub.s32 %s27, %s34
      %p265 = scmp.eq.s32.totalorder %s264, 0
      %s267 = sadd.s32 %s266, 1
      %s268 = scalar_select %p265, %s266, %s267
      %p271 = pneg %p265
      %p272 = scmp.eq.s32.totalorder %s27, 6
      %p273 = por %p271, %p272
      %p274 = scmp.ne.s32.totalorder %s266, %s269
      %p275 = scmp.eq.s32.totalorder %s27, 0
      %p276 = por %p274, %p275
      %p277 = scmp.ne.s32.totalorder %s266, %s269
      %p278 = scmp.eq.s32.totalorder %s32, 6
      %p279 = por %p277, %p278
      %p280 = scmp.ne.s32.totalorder %s269, %s270
      %p281 = scmp.eq.s32.totalorder %s32, 0
      %p282 = por %p280, %p281
      %p283 = scmp.ne.s32.totalorder %s269, %s270
      %p284 = scmp.eq.s32.totalorder %s33, 6
      %p285 = por %p283, %p284
      %p287 = scmp.ne.s32.totalorder %s270, %s286
      %p288 = scmp.eq.s32.totalorder %s33, 0
      %p289 = por %p287, %p288
      %p290 = scmp.le.s32.totalorder 1, %s27
      %p291 = scmp.lt.s32.totalorder %s27, 8
      %p292 = pnand %p290, %p291
      %p293 = pneg %p292
      // Predicated region
      $region9: #{forward.1} parent=5 // pred_check
        _
      $region10: #{forward.1} parent=5 // pred_check_branch
        %295 = sbr.rel (%p292) target = $region12
      $region11: #{forward.1} parent=5 // pred_region
        %s296 = ssub.s32 %s27, 1
        // Predicated region
        $region13: #{forward.1} parent=11 // pred_check
          %p297 = pneg %p48
        $region14: #{forward.1} parent=11 // pred_check_branch
          %299 = sbr.rel (%p297) target = $region16
        $region15: #{forward.1} parent=11 // pred_region
          _
        $region16: #{forward.1} parent=11 // pred_fallthru
          _
      $region12: #{forward.1} parent=5 // pred_fallthru
        _
      %p300 = scmp.lt.s32.totalorder %s27, 7
      // Predicated region
      $region17: #{forward.1} parent=5 // pred_check
        %p301 = pneg %p300
      $region18: #{forward.1} parent=5 // pred_check_branch
        %303 = sbr.rel (%p301) target = $region20
      $region19: #{forward.1} parent=5 // pred_region
        // Predicated region
        $region21: #{forward.1} parent=19 // pred_check
          %p304 = pneg %p68
        $region22: #{forward.1} parent=19 // pred_check_branch
          %306 = sbr.rel (%p304) target = $region24
        $region23: #{forward.1} parent=19 // pred_region
          %s307 = sand.u32 %s58, 1
          %s308 = scalar_lea.sflag [#allocation3], %s307
          %s309 = sand.u32 %s58, 1
          %s310 = smul.addr %s309, 1024
          %s311 = scalar_lea.vmem [#allocation2], %s310
          %s313 = ssub.s32 16384, 16384
          %314 = vsyncadd %s308, %s313
          %s315 = smul.addr %s27, 256
          %s316 = smul.addr %s315, 64
          %s317 = scalar_lea.hbm %s1, %s316
          %s318 = sshll.u32 %s311, 4
          %s319 = int_to_ptr.vmem [resolvable:$true] %s318
          %324 = dma.hbm_to_vmem [thread:$0]  %s317, 16384, %s319, %s308, 256, 256, 16
        $region24: #{forward.1} parent=19 // pred_fallthru
          _
        // Predicated region
        $region25: #{forward.1} parent=19 // pred_check
          %p325 = pneg %p94
        $region26: #{forward.1} parent=19 // pred_check_branch
          %327 = sbr.rel (%p325) target = $region28
        $region27: #{forward.1} parent=19 // pred_region
          %s328 = sand.u32 %s27, 1
          %s329 = scalar_lea.sflag [#allocation5], %s328
          %s330 = sand.u32 %s84, 1
          %s331 = smul.addr %s330, 4
          %s332 = scalar_lea.vmem [#allocation4], %s331
          %s334 = ssub.s32 64, 64
          %335 = vsyncadd %s329, %s334
          %s336 = smul.addr %s27, 4
          %s337 = smul.addr %s336, 16
          %s338 = scalar_lea.hbm %s2, %s337
          %s340 = sshll.u32 %s332, 4
          %s341 = int_to_ptr.vmem [resolvable:$true] %s340
          %343 = dma.hbm_to_vmem [thread:$0]  %s338, 64, %s341, %s329
        $region28: #{forward.1} parent=19 // pred_fallthru
          _
        // Predicated region
        $region29: #{forward.1} parent=19 // pred_check
          %p344 = pneg %p120
        $region30: #{forward.1} parent=19 // pred_check_branch
          %346 = sbr.rel (%p344) target = $region32
        $region31: #{forward.1} parent=19 // pred_region
          %p347 = scmp.lt.s32.totalorder %s27, 6
          %s348 = scalar_select %p347, %s27, 6
          %s349 = smul.addr %s348, 128
          %s350 = smul.addr %s349, 4
          %s351 = scalar_lea.vmem %s3, %s350
        $region32: #{forward.1} parent=19 // pred_fallthru
          _
        // Predicated region
        $region33: #{forward.1} parent=19 // pred_check
          %p352 = pneg %p146
        $region34: #{forward.1} parent=19 // pred_check_branch
          %354 = sbr.rel (%p352) target = $region36
        $region35: #{forward.1} parent=19 // pred_region
          %s355 = sand.u32 %s27, 1
          %s356 = scalar_lea.sflag [#allocation5], %s355
          %s357 = sand.u32 %s136, 1
          %s358 = smul.addr %s357, 2
          %s359 = scalar_lea.vmem [#allocation6], %s358
          %s361 = ssub.s32 32, 32
          %362 = vsyncadd %s356, %s361
          %s363 = smul.addr %s27, 2
          %s364 = smul.addr %s363, 16
          %s365 = scalar_lea.hbm %s4, %s364
          %s367 = sshll.u32 %s359, 4
          %s368 = int_to_ptr.vmem [resolvable:$true] %s367
          %370 = dma.hbm_to_vmem [thread:$0]  %s365, 32, %s368, %s356
        $region36: #{forward.1} parent=19 // pred_fallthru
          _
        // Predicated region
        $region37: #{forward.1} parent=19 // pred_check
          %p371 = pneg %p172
        $region38: #{forward.1} parent=19 // pred_check_branch
          %373 = sbr.rel (%p371) target = $region40
        $region39: #{forward.1} parent=19 // pred_region
          %s374 = sand.u32 %s27, 1
          %s375 = scalar_lea.sflag [#allocation8], %s374
          %s376 = sand.u32 %s162, 1
          %s377 = smul.addr %s376, 1280
          %s378 = scalar_lea.vmem [#allocation7], %s377
          %s380 = ssub.s32 20480, 20480
          %381 = vsyncadd %s375, %s380
          %s382 = smul.addr %s27, 320
          %s383 = smul.addr %s382, 64
          %s384 = scalar_lea.hbm %s5, %s383
          %s385 = sshll.u32 %s378, 4
          %s386 = int_to_ptr.vmem [resolvable:$true] %s385
          %391 = dma.hbm_to_vmem [thread:$0]  %s384, 20480, %s386, %s375, 640, 640, 40
        $region40: #{forward.1} parent=19 // pred_fallthru
          _
        // Predicated region
        $region41: #{forward.1} parent=19 // pred_check
          %p392 = pneg %p198
        $region42: #{forward.1} parent=19 // pred_check_branch
          %394 = sbr.rel (%p392) target = $region44
        $region43: #{forward.1} parent=19 // pred_region
          %s395 = sand.u32 %s27, 1
          %s396 = scalar_lea.sflag [#allocation8], %s395
          %s397 = sand.u32 %s188, 1
          %s398 = smul.addr %s397, 10
          %s399 = scalar_lea.vmem [#allocation9], %s398
          %s401 = ssub.s32 160, 160
          %402 = vsyncadd %s396, %s401
          %s403 = smul.addr %s27, 10
          %s404 = smul.addr %s403, 16
          %s405 = scalar_lea.hbm %s6, %s404
          %s407 = sshll.u32 %s399, 4
          %s408 = int_to_ptr.vmem [resolvable:$true] %s407
          %410 = dma.hbm_to_vmem [thread:$0]  %s405, 160, %s408, %s396
        $region44: #{forward.1} parent=19 // pred_fallthru
          _
        // Predicated region
        $region45: #{forward.1} parent=19 // pred_check
          %p411 = pneg %p224
        $region46: #{forward.1} parent=19 // pred_check_branch
          %413 = sbr.rel (%p411) target = $region48
        $region47: #{forward.1} parent=19 // pred_region
          %p414 = scmp.lt.s32.totalorder %s27, 6
          %s415 = scalar_select %p414, %s27, 6
          %s416 = smul.addr %s415, 160
          %s417 = smul.addr %s416, 4
          %s418 = scalar_lea.vmem %s7, %s417
        $region48: #{forward.1} parent=19 // pred_fallthru
          _
        // Predicated region
        $region49: #{forward.1} parent=19 // pred_check
          %p419 = pneg %p250
        $region50: #{forward.1} parent=19 // pred_check_branch
          %421 = sbr.rel (%p419) target = $region52
        $region51: #{forward.1} parent=19 // pred_region
          %s422 = sand.u32 %s240, 1
          %s423 = scalar_lea.sflag [#allocation11], %s422
          %s424 = sand.u32 %s240, 1
          %s425 = scalar_lea.vmem [#allocation10], %s424
          %s427 = ssub.s32 16, 16
          %428 = vsyncadd %s423, %s427
          %s429 = smul.addr %s27, 16
          %s430 = scalar_lea.hbm %s8, %s429
          %s432 = sshll.u32 %s425, 4
          %s433 = int_to_ptr.vmem [resolvable:$true] %s432
          %435 = dma.hbm_to_vmem [thread:$0]  %s430, 16, %s433, %s423
        $region52: #{forward.1} parent=19 // pred_fallthru
          _
      $region20: #{forward.1} parent=5 // pred_fallthru
        _
      %p436 = scmp.le.s32.totalorder 1, %s27
      %p437 = scmp.lt.s32.totalorder %s27, 8
      %p438 = pnand %p436, %p437
      %p439 = pneg %p438
      // Predicated region
      $region53: #{forward.1} parent=5 // pred_check
        _
      $region54: #{forward.1} parent=5 // pred_check_branch
        %441 = sbr.rel (%p438) target = $region56
      $region55: #{forward.1} parent=5 // pred_region
        %s442 = ssub.s32 %s27, 1
        %s443 = sand.u32 %s61, 1
        %s444 = scalar_lea.sflag [#allocation3], %s443
        %s445 = sand.u32 %s61, 1
        %s446 = smul.addr %s445, 1024
        %s447 = scalar_lea.vmem [#allocation2], %s446
        // Predicated region
        $region57: #{forward.1} parent=55 // pred_check
          %p448 = pneg %p74
        $region58: #{forward.1} parent=55 // pred_check_branch
          %450 = sbr.rel (%p448) target = $region60
        $region59: #{forward.1} parent=55 // pred_region
          %451 = dma.done %s444, 16384
        $region60: #{forward.1} parent=55 // pred_fallthru
          _
        %s452 = sand.u32 %s32, 1
        %s453 = scalar_lea.sflag [#allocation5], %s452
        %s454 = sand.u32 %s87, 1
        %s455 = smul.addr %s454, 4
        %s456 = scalar_lea.vmem [#allocation4], %s455
        // Predicated region
        $region61: #{forward.1} parent=55 // pred_check
          %p457 = pneg %p100
        $region62: #{forward.1} parent=55 // pred_check_branch
          %459 = sbr.rel (%p457) target = $region64
        $region63: #{forward.1} parent=55 // pred_region
          %460 = dma.done %s453, 64
        $region64: #{forward.1} parent=55 // pred_fallthru
          _
        %s461 = sand.u32 %s32, 1
        %s462 = scalar_lea.sflag [#allocation5], %s461
        %s463 = sand.u32 %s139, 1
        %s464 = smul.addr %s463, 2
        %s465 = scalar_lea.vmem [#allocation6], %s464
        // Predicated region
        $region65: #{forward.1} parent=55 // pred_check
          %p466 = pneg %p152
        $region66: #{forward.1} parent=55 // pred_check_branch
          %468 = sbr.rel (%p466) target = $region68
        $region67: #{forward.1} parent=55 // pred_region
          %469 = dma.done %s462, 32
        $region68: #{forward.1} parent=55 // pred_fallthru
          _
        %s470 = sand.u32 %s32, 1
        %s471 = scalar_lea.sflag [#allocation8], %s470
        %s472 = sand.u32 %s165, 1
        %s473 = smul.addr %s472, 1280
        %s474 = scalar_lea.vmem [#allocation7], %s473
        // Predicated region
        $region69: #{forward.1} parent=55 // pred_check
          %p475 = pneg %p178
        $region70: #{forward.1} parent=55 // pred_check_branch
          %477 = sbr.rel (%p475) target = $region72
        $region71: #{forward.1} parent=55 // pred_region
          %478 = dma.done %s471, 20480
        $region72: #{forward.1} parent=55 // pred_fallthru
          _
        %s479 = sand.u32 %s32, 1
        %s480 = scalar_lea.sflag [#allocation8], %s479
        %s481 = sand.u32 %s191, 1
        %s482 = smul.addr %s481, 10
        %s483 = scalar_lea.vmem [#allocation9], %s482
        // Predicated region
        $region73: #{forward.1} parent=55 // pred_check
          %p484 = pneg %p204
        $region74: #{forward.1} parent=55 // pred_check_branch
          %486 = sbr.rel (%p484) target = $region76
        $region75: #{forward.1} parent=55 // pred_region
          %487 = dma.done %s480, 160
        $region76: #{forward.1} parent=55 // pred_fallthru
          _
        %s488 = sand.u32 %s243, 1
        %s489 = scalar_lea.sflag [#allocation11], %s488
        %s490 = sand.u32 %s243, 1
        %s491 = scalar_lea.vmem [#allocation10], %s490
        // Predicated region
        $region77: #{forward.1} parent=55 // pred_check
          %p492 = pneg %p256
        $region78: #{forward.1} parent=55 // pred_check_branch
          %494 = sbr.rel (%p492) target = $region80
        $region79: #{forward.1} parent=55 // pred_region
          %495 = dma.done %s489, 16
        $region80: #{forward.1} parent=55 // pred_fallthru
          _
        %p496 = pneg %p48
        %p497 = pneg %p45
        %s498 = sand.u32 %s61, 1
        %s499 = scalar_lea.sflag [#allocation3], %s498
        %s500 = sand.u32 %s61, 1
        %s501 = smul.addr %s500, 1024
        %s502 = scalar_lea.vmem [#allocation2], %s501
        %p503 = pneg %p74
        %p504 = pneg %p71
        %s505 = sand.u32 %s32, 1
        %s506 = scalar_lea.sflag [#allocation5], %s505
        %s507 = sand.u32 %s87, 1
        %s508 = smul.addr %s507, 4
        %s509 = scalar_lea.vmem [#allocation4], %s508
        %p510 = pneg %p100
        %p511 = pneg %p97
        %p512 = scmp.lt.s32.totalorder %s32, 6
        %s513 = scalar_select %p512, %s32, 6
        %s514 = smul.addr %s513, 128
        %s515 = smul.addr %s514, 4
        %s516 = scalar_lea.vmem %s3, %s515
        %p517 = pneg %p126
        %p518 = pneg %p123
        %s519 = sand.u32 %s32, 1
        %s520 = scalar_lea.sflag [#allocation5], %s519
        %s521 = sand.u32 %s139, 1
        %s522 = smul.addr %s521, 2
        %s523 = scalar_lea.vmem [#allocation6], %s522
        %p524 = pneg %p152
        %p525 = pneg %p149
        %s526 = sand.u32 %s32, 1
        %s527 = scalar_lea.sflag [#allocation8], %s526
        %s528 = sand.u32 %s165, 1
        %s529 = smul.addr %s528, 1280
        %s530 = scalar_lea.vmem [#allocation7], %s529
        %p531 = pneg %p178
        %p532 = pneg %p175
        %s533 = sand.u32 %s32, 1
        %s534 = scalar_lea.sflag [#allocation8], %s533
        %s535 = sand.u32 %s191, 1
        %s536 = smul.addr %s535, 10
        %s537 = scalar_lea.vmem [#allocation9], %s536
        %p538 = pneg %p204
        %p539 = pneg %p201
        %p540 = scmp.lt.s32.totalorder %s32, 6
        %s541 = scalar_select %p540, %s32, 6
        %s542 = smul.addr %s541, 160
        %s543 = smul.addr %s542, 4
        %s544 = scalar_lea.vmem %s7, %s543
        %p545 = pneg %p230
        %p546 = pneg %p227
        %s547 = sand.u32 %s243, 1
        %s548 = scalar_lea.sflag [#allocation11], %s547
        %s549 = sand.u32 %s243, 1
        %s550 = scalar_lea.vmem [#allocation10], %s549
        %p551 = pneg %p256
        %p552 = pneg %p253
        %p553 = pneg %p282
        %p554 = pneg %p279
        %p555 = scmp.lt.s32.totalorder %s32, 6
        %s556 = scalar_select %p555, %s32, 6
        %s557 = smul.addr %s556, 8
        %s558 = scalar_lea.vmem %s9, %s557
        %p559 = scmp.lt.s32.totalorder %s32, 6
        %s560 = scalar_select %p559, %s32, 6
        %s561 = smul.addr %s560, 128
        %s562 = smul.addr %s561, 4
        %s563 = scalar_lea.vmem %s3, %s562
        %p564 = scmp.lt.s32.totalorder %s32, 6
        %s565 = scalar_select %p564, %s32, 6
        %s566 = smul.addr %s565, 160
        %s567 = smul.addr %s566, 4
        %s568 = scalar_lea.vmem %s7, %s567
        %p569 = scmp.lt.s32.totalorder %s32, 6
        %s570 = scalar_select %p569, %s32, 6
        %s571 = smul.addr %s570, 8
        %s572 = scalar_lea.vmem %s9, %s571
        %v574 = vld [vmem:[%s0] sm:$0xff]
        %v575 = vld [vmem:[%s0 + $0x8] sm:$0xff]
        %v576 = vld [vmem:[%s0 + $0x10] sm:$0xff]
        %v577 = vld [vmem:[%s0 + $0x18] sm:$0xff]
        %v578 = vpack.c.bf16 %v574, %v574
        %v579 = vpack.c.bf16 %v575, %v575
        %v580 = vpack.c.bf16 %v576, %v576
        %v581 = vpack.c.bf16 %v577, %v577
        %v582 = vld [vmem:[%s447] sm:$0xff]
        %v583 = vld [vmem:[%s447 + $0x8] sm:$0xff]
        %v584 = vld [vmem:[%s447 + $0x10] sm:$0xff]
        %v585 = vld [vmem:[%s447 + $0x18] sm:$0xff]
        %v586 = vld [vmem:[%s447 + $0x20] sm:$0xff]
        %v587 = vld [vmem:[%s447 + $0x28] sm:$0xff]
        %v588 = vld [vmem:[%s447 + $0x30] sm:$0xff]
        %v589 = vld [vmem:[%s447 + $0x38] sm:$0xff]
        %v590 = vld [vmem:[%s447 + $0x40] sm:$0xff]
        %v591 = vld [vmem:[%s447 + $0x48] sm:$0xff]
        %v592 = vld [vmem:[%s447 + $0x50] sm:$0xff]
        %v593 = vld [vmem:[%s447 + $0x58] sm:$0xff]
        %v594 = vld [vmem:[%s447 + $0x60] sm:$0xff]
        %v595 = vld [vmem:[%s447 + $0x68] sm:$0xff]
        %v596 = vld [vmem:[%s447 + $0x70] sm:$0xff]
        %v597 = vld [vmem:[%s447 + $0x78] sm:$0xff]
        %v598 = vld [vmem:[%s447 + $0x80] sm:$0xff]
        %v599 = vld [vmem:[%s447 + $0x88] sm:$0xff]
        %v600 = vld [vmem:[%s447 + $0x90] sm:$0xff]
        %v601 = vld [vmem:[%s447 + $0x98] sm:$0xff]
        %v602 = vld [vmem:[%s447 + $0xa0] sm:$0xff]
        %v603 = vld [vmem:[%s447 + $0xa8] sm:$0xff]
        %v604 = vld [vmem:[%s447 + $0xb0] sm:$0xff]
        %v605 = vld [vmem:[%s447 + $0xb8] sm:$0xff]
        %v606 = vld [vmem:[%s447 + $0xc0] sm:$0xff]
        %v607 = vld [vmem:[%s447 + $0xc8] sm:$0xff]
        %v608 = vld [vmem:[%s447 + $0xd0] sm:$0xff]
        %v609 = vld [vmem:[%s447 + $0xd8] sm:$0xff]
        %v610 = vld [vmem:[%s447 + $0xe0] sm:$0xff]
        %v611 = vld [vmem:[%s447 + $0xe8] sm:$0xff]
        %v612 = vld [vmem:[%s447 + $0xf0] sm:$0xff]
        %v613 = vld [vmem:[%s447 + $0xf8] sm:$0xff]
        %v614 = vld [vmem:[%s447 + $0x100] sm:$0xff]
        %v615 = vld [vmem:[%s447 + $0x108] sm:$0xff]
        %v616 = vld [vmem:[%s447 + $0x110] sm:$0xff]
        %v617 = vld [vmem:[%s447 + $0x118] sm:$0xff]
        %v618 = vld [vmem:[%s447 + $0x120] sm:$0xff]
        %v619 = vld [vmem:[%s447 + $0x128] sm:$0xff]
        %v620 = vld [vmem:[%s447 + $0x130] sm:$0xff]
        %v621 = vld [vmem:[%s447 + $0x138] sm:$0xff]
        %v622 = vld [vmem:[%s447 + $0x140] sm:$0xff]
        %v623 = vld [vmem:[%s447 + $0x148] sm:$0xff]
        %v624 = vld [vmem:[%s447 + $0x150] sm:$0xff]
        %v625 = vld [vmem:[%s447 + $0x158] sm:$0xff]
        %v626 = vld [vmem:[%s447 + $0x160] sm:$0xff]
        %v627 = vld [vmem:[%s447 + $0x168] sm:$0xff]
        %v628 = vld [vmem:[%s447 + $0x170] sm:$0xff]
        %v629 = vld [vmem:[%s447 + $0x178] sm:$0xff]
        %v630 = vld [vmem:[%s447 + $0x180] sm:$0xff]
        %v631 = vld [vmem:[%s447 + $0x188] sm:$0xff]
        %v632 = vld [vmem:[%s447 + $0x190] sm:$0xff]
        %v633 = vld [vmem:[%s447 + $0x198] sm:$0xff]
        %v634 = vld [vmem:[%s447 + $0x1a0] sm:$0xff]
        %v635 = vld [vmem:[%s447 + $0x1a8] sm:$0xff]
        %v636 = vld [vmem:[%s447 + $0x1b0] sm:$0xff]
        %v637 = vld [vmem:[%s447 + $0x1b8] sm:$0xff]
        %v638 = vld [vmem:[%s447 + $0x1c0] sm:$0xff]
        %v639 = vld [vmem:[%s447 + $0x1c8] sm:$0xff]
        %v640 = vld [vmem:[%s447 + $0x1d0] sm:$0xff]
        %v641 = vld [vmem:[%s447 + $0x1d8] sm:$0xff]
        %v642 = vld [vmem:[%s447 + $0x1e0] sm:$0xff]
        %v643 = vld [vmem:[%s447 + $0x1e8] sm:$0xff]
        %v644 = vld [vmem:[%s447 + $0x1f0] sm:$0xff]
        %v645 = vld [vmem:[%s447 + $0x1f8] sm:$0xff]
        %v646 = vld [vmem:[%s447 + $0x200] sm:$0xff]
        %v647 = vld [vmem:[%s447 + $0x208] sm:$0xff]
        %v648 = vld [vmem:[%s447 + $0x210] sm:$0xff]
        %v649 = vld [vmem:[%s447 + $0x218] sm:$0xff]
        %v650 = vld [vmem:[%s447 + $0x220] sm:$0xff]
        %v651 = vld [vmem:[%s447 + $0x228] sm:$0xff]
        %v652 = vld [vmem:[%s447 + $0x230] sm:$0xff]
        %v653 = vld [vmem:[%s447 + $0x238] sm:$0xff]
        %v654 = vld [vmem:[%s447 + $0x240] sm:$0xff]
        %v655 = vld [vmem:[%s447 + $0x248] sm:$0xff]
        %v656 = vld [vmem:[%s447 + $0x250] sm:$0xff]
        %v657 = vld [vmem:[%s447 + $0x258] sm:$0xff]
        %v658 = vld [vmem:[%s447 + $0x260] sm:$0xff]
        %v659 = vld [vmem:[%s447 + $0x268] sm:$0xff]
        %v660 = vld [vmem:[%s447 + $0x270] sm:$0xff]
        %v661 = vld [vmem:[%s447 + $0x278] sm:$0xff]
        %v662 = vld [vmem:[%s447 + $0x280] sm:$0xff]
        %v663 = vld [vmem:[%s447 + $0x288] sm:$0xff]
        %v664 = vld [vmem:[%s447 + $0x290] sm:$0xff]
        %v665 = vld [vmem:[%s447 + $0x298] sm:$0xff]
        %v666 = vld [vmem:[%s447 + $0x2a0] sm:$0xff]
        %v667 = vld [vmem:[%s447 + $0x2a8] sm:$0xff]
        %v668 = vld [vmem:[%s447 + $0x2b0] sm:$0xff]
        %v669 = vld [vmem:[%s447 + $0x2b8] sm:$0xff]
        %v670 = vld [vmem:[%s447 + $0x2c0] sm:$0xff]
        %v671 = vld [vmem:[%s447 + $0x2c8] sm:$0xff]
        %v672 = vld [vmem:[%s447 + $0x2d0] sm:$0xff]
        %v673 = vld [vmem:[%s447 + $0x2d8] sm:$0xff]
        %v674 = vld [vmem:[%s447 + $0x2e0] sm:$0xff]
        %v675 = vld [vmem:[%s447 + $0x2e8] sm:$0xff]
        %v676 = vld [vmem:[%s447 + $0x2f0] sm:$0xff]
        %v677 = vld [vmem:[%s447 + $0x2f8] sm:$0xff]
        %v678 = vld [vmem:[%s447 + $0x300] sm:$0xff]
        %v679 = vld [vmem:[%s447 + $0x308] sm:$0xff]
        %v680 = vld [vmem:[%s447 + $0x310] sm:$0xff]
        %v681 = vld [vmem:[%s447 + $0x318] sm:$0xff]
        %v682 = vld [vmem:[%s447 + $0x320] sm:$0xff]
        %v683 = vld [vmem:[%s447 + $0x328] sm:$0xff]
        %v684 = vld [vmem:[%s447 + $0x330] sm:$0xff]
        %v685 = vld [vmem:[%s447 + $0x338] sm:$0xff]
        %v686 = vld [vmem:[%s447 + $0x340] sm:$0xff]
        %v687 = vld [vmem:[%s447 + $0x348] sm:$0xff]
        %v688 = vld [vmem:[%s447 + $0x350] sm:$0xff]
        %v689 = vld [vmem:[%s447 + $0x358] sm:$0xff]
        %v690 = vld [vmem:[%s447 + $0x360] sm:$0xff]
        %v691 = vld [vmem:[%s447 + $0x368] sm:$0xff]
        %v692 = vld [vmem:[%s447 + $0x370] sm:$0xff]
        %v693 = vld [vmem:[%s447 + $0x378] sm:$0xff]
        %v694 = vld [vmem:[%s447 + $0x380] sm:$0xff]
        %v695 = vld [vmem:[%s447 + $0x388] sm:$0xff]
        %v696 = vld [vmem:[%s447 + $0x390] sm:$0xff]
        %v697 = vld [vmem:[%s447 + $0x398] sm:$0xff]
        %v698 = vld [vmem:[%s447 + $0x3a0] sm:$0xff]
        %v699 = vld [vmem:[%s447 + $0x3a8] sm:$0xff]
        %v700 = vld [vmem:[%s447 + $0x3b0] sm:$0xff]
        %v701 = vld [vmem:[%s447 + $0x3b8] sm:$0xff]
        %v702 = vld [vmem:[%s447 + $0x3c0] sm:$0xff]
        %v703 = vld [vmem:[%s447 + $0x3c8] sm:$0xff]
        %v704 = vld [vmem:[%s447 + $0x3d0] sm:$0xff]
        %v705 = vld [vmem:[%s447 + $0x3d8] sm:$0xff]
        %v706 = vld [vmem:[%s447 + $0x3e0] sm:$0xff]
        %v707 = vld [vmem:[%s447 + $0x3e8] sm:$0xff]
        %v708 = vld [vmem:[%s447 + $0x3f0] sm:$0xff]
        %v709 = vld [vmem:[%s447 + $0x3f8] sm:$0xff]
        %v710 = vld [vmem:[%s456] sm:$0xf]
        %v712 = vlaneseq
        %v713 = vshrl.u32 %v712, 7
        %v714 = vsub.s32 0, %v713
        %v715 = vrot.slane %v710, %v714
        %v716 = vlaneseq
        %v717 = vshrl.u32 %v716, 7
        %v718 = vsub.s32 1, %v717
        %v719 = vrot.slane %v710, %v718
        %v720 = vlaneseq
        %v721 = vshrl.u32 %v720, 7
        %v722 = vsub.s32 2, %v721
        %v723 = vrot.slane %v710, %v722
        %v724 = vlaneseq
        %v725 = vshrl.u32 %v724, 7
        %v726 = vsub.s32 3, %v725
        %v727 = vrot.slane %v710, %v726
        %v860 = vunpack.c.l.b16 %v582
        %v861 = vunpack.c.h.b16 %v582
        %v862 = vunpack.c.l.b16 %v583
        %v863 = vunpack.c.h.b16 %v583
        %v864 = vunpack.c.l.b16 %v584
        %v865 = vunpack.c.h.b16 %v584
        %v866 = vunpack.c.l.b16 %v585
        %v867 = vunpack.c.h.b16 %v585
        %v868 = vunpack.c.l.b16 %v586
        %v869 = vunpack.c.h.b16 %v586
        %v870 = vunpack.c.l.b16 %v587
        %v871 = vunpack.c.h.b16 %v587
        %v872 = vunpack.c.l.b16 %v588
        %v873 = vunpack.c.h.b16 %v588
        %v874 = vunpack.c.l.b16 %v589
        %v875 = vunpack.c.h.b16 %v589
        %v876 = vunpack.c.l.b16 %v590
        %v877 = vunpack.c.h.b16 %v590
        %v878 = vunpack.c.l.b16 %v591
        %v879 = vunpack.c.h.b16 %v591
        %v880 = vunpack.c.l.b16 %v592
        %v881 = vunpack.c.h.b16 %v592
        %v882 = vunpack.c.l.b16 %v593
        %v883 = vunpack.c.h.b16 %v593
        %v884 = vunpack.c.l.b16 %v594
        %v885 = vunpack.c.h.b16 %v594
        %v886 = vunpack.c.l.b16 %v595
        %v887 = vunpack.c.h.b16 %v595
        %v888 = vunpack.c.l.b16 %v596
        %v889 = vunpack.c.h.b16 %v596
        %v890 = vunpack.c.l.b16 %v597
        %v891 = vunpack.c.h.b16 %v597
        %v892 = vunpack.c.l.b16 %v598
        %v893 = vunpack.c.h.b16 %v598
        %v894 = vunpack.c.l.b16 %v599
        %v895 = vunpack.c.h.b16 %v599
        %v896 = vunpack.c.l.b16 %v600
        %v897 = vunpack.c.h.b16 %v600
        %v898 = vunpack.c.l.b16 %v601
        %v899 = vunpack.c.h.b16 %v601
        %v900 = vunpack.c.l.b16 %v602
        %v901 = vunpack.c.h.b16 %v602
        %v902 = vunpack.c.l.b16 %v603
        %v903 = vunpack.c.h.b16 %v603
        %v904 = vunpack.c.l.b16 %v604
        %v905 = vunpack.c.h.b16 %v604
        %v906 = vunpack.c.l.b16 %v605
        %v907 = vunpack.c.h.b16 %v605
        %v908 = vunpack.c.l.b16 %v606
        %v909 = vunpack.c.h.b16 %v606
        %v910 = vunpack.c.l.b16 %v607
        %v911 = vunpack.c.h.b16 %v607
        %v912 = vunpack.c.l.b16 %v608
        %v913 = vunpack.c.h.b16 %v608
        %v914 = vunpack.c.l.b16 %v609
        %v915 = vunpack.c.h.b16 %v609
        %v916 = vunpack.c.l.b16 %v610
        %v917 = vunpack.c.h.b16 %v610
        %v918 = vunpack.c.l.b16 %v611
        %v919 = vunpack.c.h.b16 %v611
        %v920 = vunpack.c.l.b16 %v612
        %v921 = vunpack.c.h.b16 %v612
        %v922 = vunpack.c.l.b16 %v613
        %v923 = vunpack.c.h.b16 %v613
        %v924 = vunpack.c.l.b16 %v614
        %v925 = vunpack.c.h.b16 %v614
        %v926 = vunpack.c.l.b16 %v615
        %v927 = vunpack.c.h.b16 %v615
        %v928 = vunpack.c.l.b16 %v616
        %v929 = vunpack.c.h.b16 %v616
        %v930 = vunpack.c.l.b16 %v617
        %v931 = vunpack.c.h.b16 %v617
        %v932 = vunpack.c.l.b16 %v618
        %v933 = vunpack.c.h.b16 %v618
        %v934 = vunpack.c.l.b16 %v619
        %v935 = vunpack.c.h.b16 %v619
        %v936 = vunpack.c.l.b16 %v620
        %v937 = vunpack.c.h.b16 %v620
        %v938 = vunpack.c.l.b16 %v621
        %v939 = vunpack.c.h.b16 %v621
        %v940 = vunpack.c.l.b16 %v622
        %v941 = vunpack.c.h.b16 %v622
        %v942 = vunpack.c.l.b16 %v623
        %v943 = vunpack.c.h.b16 %v623
        %v944 = vunpack.c.l.b16 %v624
        %v945 = vunpack.c.h.b16 %v624
        %v946 = vunpack.c.l.b16 %v625
        %v947 = vunpack.c.h.b16 %v625
        %v948 = vunpack.c.l.b16 %v626
        %v949 = vunpack.c.h.b16 %v626
        %v950 = vunpack.c.l.b16 %v627
        %v951 = vunpack.c.h.b16 %v627
        %v952 = vunpack.c.l.b16 %v628
        %v953 = vunpack.c.h.b16 %v628
        %v954 = vunpack.c.l.b16 %v629
        %v955 = vunpack.c.h.b16 %v629
        %v956 = vunpack.c.l.b16 %v630
        %v957 = vunpack.c.h.b16 %v630
        %v958 = vunpack.c.l.b16 %v631
        %v959 = vunpack.c.h.b16 %v631
        %v960 = vunpack.c.l.b16 %v632
        %v961 = vunpack.c.h.b16 %v632
        %v962 = vunpack.c.l.b16 %v633
        %v963 = vunpack.c.h.b16 %v633
        %v964 = vunpack.c.l.b16 %v634
        %v965 = vunpack.c.h.b16 %v634
        %v966 = vunpack.c.l.b16 %v635
        %v967 = vunpack.c.h.b16 %v635
        %v968 = vunpack.c.l.b16 %v636
        %v969 = vunpack.c.h.b16 %v636
        %v970 = vunpack.c.l.b16 %v637
        %v971 = vunpack.c.h.b16 %v637
        %v972 = vunpack.c.l.b16 %v638
        %v973 = vunpack.c.h.b16 %v638
        %v974 = vunpack.c.l.b16 %v639
        %v975 = vunpack.c.h.b16 %v639
        %v976 = vunpack.c.l.b16 %v640
        %v977 = vunpack.c.h.b16 %v640
        %v978 = vunpack.c.l.b16 %v641
        %v979 = vunpack.c.h.b16 %v641
        %v980 = vunpack.c.l.b16 %v642
        %v981 = vunpack.c.h.b16 %v642
        %v982 = vunpack.c.l.b16 %v643
        %v983 = vunpack.c.h.b16 %v643
        %v984 = vunpack.c.l.b16 %v644
        %v985 = vunpack.c.h.b16 %v644
        %v986 = vunpack.c.l.b16 %v645
        %v987 = vunpack.c.h.b16 %v645
        %v988 = vunpack.c.l.b16 %v646
        %v989 = vunpack.c.h.b16 %v646
        %v990 = vunpack.c.l.b16 %v647
        %v991 = vunpack.c.h.b16 %v647
        %v992 = vunpack.c.l.b16 %v648
        %v993 = vunpack.c.h.b16 %v648
        %v994 = vunpack.c.l.b16 %v649
        %v995 = vunpack.c.h.b16 %v649
        %v996 = vunpack.c.l.b16 %v650
        %v997 = vunpack.c.h.b16 %v650
        %v998 = vunpack.c.l.b16 %v651
        %v999 = vunpack.c.h.b16 %v651
        %v1000 = vunpack.c.l.b16 %v652
        %v1001 = vunpack.c.h.b16 %v652
        %v1002 = vunpack.c.l.b16 %v653
        %v1003 = vunpack.c.h.b16 %v653
        %v1004 = vunpack.c.l.b16 %v654
        %v1005 = vunpack.c.h.b16 %v654
        %v1006 = vunpack.c.l.b16 %v655
        %v1007 = vunpack.c.h.b16 %v655
        %v1008 = vunpack.c.l.b16 %v656
        %v1009 = vunpack.c.h.b16 %v656
        %v1010 = vunpack.c.l.b16 %v657
        %v1011 = vunpack.c.h.b16 %v657
        %v1012 = vunpack.c.l.b16 %v658
        %v1013 = vunpack.c.h.b16 %v658
        %v1014 = vunpack.c.l.b16 %v659
        %v1015 = vunpack.c.h.b16 %v659
        %v1016 = vunpack.c.l.b16 %v660
        %v1017 = vunpack.c.h.b16 %v660
        %v1018 = vunpack.c.l.b16 %v661
        %v1019 = vunpack.c.h.b16 %v661
        %v1020 = vunpack.c.l.b16 %v662
        %v1021 = vunpack.c.h.b16 %v662
        %v1022 = vunpack.c.l.b16 %v663
        %v1023 = vunpack.c.h.b16 %v663
        %v1024 = vunpack.c.l.b16 %v664
        %v1025 = vunpack.c.h.b16 %v664
        %v1026 = vunpack.c.l.b16 %v665
        %v1027 = vunpack.c.h.b16 %v665
        %v1028 = vunpack.c.l.b16 %v666
        %v1029 = vunpack.c.h.b16 %v666
        %v1030 = vunpack.c.l.b16 %v667
        %v1031 = vunpack.c.h.b16 %v667
        %v1032 = vunpack.c.l.b16 %v668
        %v1033 = vunpack.c.h.b16 %v668
        %v1034 = vunpack.c.l.b16 %v669
        %v1035 = vunpack.c.h.b16 %v669
        %v1036 = vunpack.c.l.b16 %v670
        %v1037 = vunpack.c.h.b16 %v670
        %v1038 = vunpack.c.l.b16 %v671
        %v1039 = vunpack.c.h.b16 %v671
        %v1040 = vunpack.c.l.b16 %v672
        %v1041 = vunpack.c.h.b16 %v672
        %v1042 = vunpack.c.l.b16 %v673
        %v1043 = vunpack.c.h.b16 %v673
        %v1044 = vunpack.c.l.b16 %v674
        %v1045 = vunpack.c.h.b16 %v674
        %v1046 = vunpack.c.l.b16 %v675
        %v1047 = vunpack.c.h.b16 %v675
        %v1048 = vunpack.c.l.b16 %v676
        %v1049 = vunpack.c.h.b16 %v676
        %v1050 = vunpack.c.l.b16 %v677
        %v1051 = vunpack.c.h.b16 %v677
        %v1052 = vunpack.c.l.b16 %v678
        %v1053 = vunpack.c.h.b16 %v678
        %v1054 = vunpack.c.l.b16 %v679
        %v1055 = vunpack.c.h.b16 %v679
        %v1056 = vunpack.c.l.b16 %v680
        %v1057 = vunpack.c.h.b16 %v680
        %v1058 = vunpack.c.l.b16 %v681
        %v1059 = vunpack.c.h.b16 %v681
        %v1060 = vunpack.c.l.b16 %v682
        %v1061 = vunpack.c.h.b16 %v682
        %v1062 = vunpack.c.l.b16 %v683
        %v1063 = vunpack.c.h.b16 %v683
        %v1064 = vunpack.c.l.b16 %v684
        %v1065 = vunpack.c.h.b16 %v684
        %v1066 = vunpack.c.l.b16 %v685
        %v1067 = vunpack.c.h.b16 %v685
        %v1068 = vunpack.c.l.b16 %v686
        %v1069 = vunpack.c.h.b16 %v686
        %v1070 = vunpack.c.l.b16 %v687
        %v1071 = vunpack.c.h.b16 %v687
        %v1072 = vunpack.c.l.b16 %v688
        %v1073 = vunpack.c.h.b16 %v688
        %v1074 = vunpack.c.l.b16 %v689
        %v1075 = vunpack.c.h.b16 %v689
        %v1076 = vunpack.c.l.b16 %v690
        %v1077 = vunpack.c.h.b16 %v690
        %v1078 = vunpack.c.l.b16 %v691
        %v1079 = vunpack.c.h.b16 %v691
        %v1080 = vunpack.c.l.b16 %v692
        %v1081 = vunpack.c.h.b16 %v692
        %v1082 = vunpack.c.l.b16 %v693
        %v1083 = vunpack.c.h.b16 %v693
        %v1084 = vunpack.c.l.b16 %v694
        %v1085 = vunpack.c.h.b16 %v694
        %v1086 = vunpack.c.l.b16 %v695
        %v1087 = vunpack.c.h.b16 %v695
        %v1088 = vunpack.c.l.b16 %v696
        %v1089 = vunpack.c.h.b16 %v696
        %v1090 = vunpack.c.l.b16 %v697
        %v1091 = vunpack.c.h.b16 %v697
        %v1092 = vunpack.c.l.b16 %v698
        %v1093 = vunpack.c.h.b16 %v698
        %v1094 = vunpack.c.l.b16 %v699
        %v1095 = vunpack.c.h.b16 %v699
        %v1096 = vunpack.c.l.b16 %v700
        %v1097 = vunpack.c.h.b16 %v700
        %v1098 = vunpack.c.l.b16 %v701
        %v1099 = vunpack.c.h.b16 %v701
        %v1100 = vunpack.c.l.b16 %v702
        %v1101 = vunpack.c.h.b16 %v702
        %v1102 = vunpack.c.l.b16 %v703
        %v1103 = vunpack.c.h.b16 %v703
        %v1104 = vunpack.c.l.b16 %v704
        %v1105 = vunpack.c.h.b16 %v704
        %v1106 = vunpack.c.l.b16 %v705
        %v1107 = vunpack.c.h.b16 %v705
        %v1108 = vunpack.c.l.b16 %v706
        %v1109 = vunpack.c.h.b16 %v706
        %v1110 = vunpack.c.l.b16 %v707
        %v1111 = vunpack.c.h.b16 %v707
        %v1112 = vunpack.c.l.b16 %v708
        %v1113 = vunpack.c.h.b16 %v708
        %v1114 = vunpack.c.l.b16 %v709
        %v1115 = vunpack.c.h.b16 %v709
        %v1116 = vpack.c.b16 %v864, %v860
        %v1117 = vpack.c.b16 %v865, %v861
        %v1118 = vpack.c.b16 %v866, %v862
        %v1119 = vpack.c.b16 %v867, %v863
        %v1120 = vpack.c.b16 %v872, %v868
        %v1121 = vpack.c.b16 %v873, %v869
        %v1122 = vpack.c.b16 %v874, %v870
        %v1123 = vpack.c.b16 %v875, %v871
        %v1124 = vpack.c.b16 %v880, %v876
        %v1125 = vpack.c.b16 %v881, %v877
        %v1126 = vpack.c.b16 %v882, %v878
        %v1127 = vpack.c.b16 %v883, %v879
        %v1128 = vpack.c.b16 %v888, %v884
        %v1129 = vpack.c.b16 %v889, %v885
        %v1130 = vpack.c.b16 %v890, %v886
        %v1131 = vpack.c.b16 %v891, %v887
        %v1132 = vpack.c.b16 %v896, %v892
        %v1133 = vpack.c.b16 %v897, %v893
        %v1134 = vpack.c.b16 %v898, %v894
        %v1135 = vpack.c.b16 %v899, %v895
        %v1136 = vpack.c.b16 %v904, %v900
        %v1137 = vpack.c.b16 %v905, %v901
        %v1138 = vpack.c.b16 %v906, %v902
        %v1139 = vpack.c.b16 %v907, %v903
        %v1140 = vpack.c.b16 %v912, %v908
        %v1141 = vpack.c.b16 %v913, %v909
        %v1142 = vpack.c.b16 %v914, %v910
        %v1143 = vpack.c.b16 %v915, %v911
        %v1144 = vpack.c.b16 %v920, %v916
        %v1145 = vpack.c.b16 %v921, %v917
        %v1146 = vpack.c.b16 %v922, %v918
        %v1147 = vpack.c.b16 %v923, %v919
        %v1148 = vpack.c.b16 %v928, %v924
        %v1149 = vpack.c.b16 %v929, %v925
        %v1150 = vpack.c.b16 %v930, %v926
        %v1151 = vpack.c.b16 %v931, %v927
        %v1152 = vpack.c.b16 %v936, %v932
        %v1153 = vpack.c.b16 %v937, %v933
        %v1154 = vpack.c.b16 %v938, %v934
        %v1155 = vpack.c.b16 %v939, %v935
        %v1156 = vpack.c.b16 %v944, %v940
        %v1157 = vpack.c.b16 %v945, %v941
        %v1158 = vpack.c.b16 %v946, %v942
        %v1159 = vpack.c.b16 %v947, %v943
        %v1160 = vpack.c.b16 %v952, %v948
        %v1161 = vpack.c.b16 %v953, %v949
        %v1162 = vpack.c.b16 %v954, %v950
        %v1163 = vpack.c.b16 %v955, %v951
        %v1164 = vpack.c.b16 %v960, %v956
        %v1165 = vpack.c.b16 %v961, %v957
        %v1166 = vpack.c.b16 %v962, %v958
        %v1167 = vpack.c.b16 %v963, %v959
        %v1168 = vpack.c.b16 %v968, %v964
        %v1169 = vpack.c.b16 %v969, %v965
        %v1170 = vpack.c.b16 %v970, %v966
        %v1171 = vpack.c.b16 %v971, %v967
        %v1172 = vpack.c.b16 %v976, %v972
        %v1173 = vpack.c.b16 %v977, %v973
        %v1174 = vpack.c.b16 %v978, %v974
        %v1175 = vpack.c.b16 %v979, %v975
        %v1176 = vpack.c.b16 %v984, %v980
        %v1177 = vpack.c.b16 %v985, %v981
        %v1178 = vpack.c.b16 %v986, %v982
        %v1179 = vpack.c.b16 %v987, %v983
        %v1180 = vpack.c.b16 %v992, %v988
        %v1181 = vpack.c.b16 %v993, %v989
        %v1182 = vpack.c.b16 %v994, %v990
        %v1183 = vpack.c.b16 %v995, %v991
        %v1184 = vpack.c.b16 %v1000, %v996
        %v1185 = vpack.c.b16 %v1001, %v997
        %v1186 = vpack.c.b16 %v1002, %v998
        %v1187 = vpack.c.b16 %v1003, %v999
        %v1188 = vpack.c.b16 %v1008, %v1004
        %v1189 = vpack.c.b16 %v1009, %v1005
        %v1190 = vpack.c.b16 %v1010, %v1006
        %v1191 = vpack.c.b16 %v1011, %v1007
        %v1192 = vpack.c.b16 %v1016, %v1012
        %v1193 = vpack.c.b16 %v1017, %v1013
        %v1194 = vpack.c.b16 %v1018, %v1014
        %v1195 = vpack.c.b16 %v1019, %v1015
        %v1196 = vpack.c.b16 %v1024, %v1020
        %v1197 = vpack.c.b16 %v1025, %v1021
        %v1198 = vpack.c.b16 %v1026, %v1022
        %v1199 = vpack.c.b16 %v1027, %v1023
        %v1200 = vpack.c.b16 %v1032, %v1028
        %v1201 = vpack.c.b16 %v1033, %v1029
        %v1202 = vpack.c.b16 %v1034, %v1030
        %v1203 = vpack.c.b16 %v1035, %v1031
        %v1204 = vpack.c.b16 %v1040, %v1036
        %v1205 = vpack.c.b16 %v1041, %v1037
        %v1206 = vpack.c.b16 %v1042, %v1038
        %v1207 = vpack.c.b16 %v1043, %v1039
        %v1208 = vpack.c.b16 %v1048, %v1044
        %v1209 = vpack.c.b16 %v1049, %v1045
        %v1210 = vpack.c.b16 %v1050, %v1046
        %v1211 = vpack.c.b16 %v1051, %v1047
        %v1212 = vpack.c.b16 %v1056, %v1052
        %v1213 = vpack.c.b16 %v1057, %v1053
        %v1214 = vpack.c.b16 %v1058, %v1054
        %v1215 = vpack.c.b16 %v1059, %v1055
        %v1216 = vpack.c.b16 %v1064, %v1060
        %v1217 = vpack.c.b16 %v1065, %v1061
        %v1218 = vpack.c.b16 %v1066, %v1062
        %v1219 = vpack.c.b16 %v1067, %v1063
        %v1220 = vpack.c.b16 %v1072, %v1068
        %v1221 = vpack.c.b16 %v1073, %v1069
        %v1222 = vpack.c.b16 %v1074, %v1070
        %v1223 = vpack.c.b16 %v1075, %v1071
        %v1224 = vpack.c.b16 %v1080, %v1076
        %v1225 = vpack.c.b16 %v1081, %v1077
        %v1226 = vpack.c.b16 %v1082, %v1078
        %v1227 = vpack.c.b16 %v1083, %v1079
        %v1228 = vpack.c.b16 %v1088, %v1084
        %v1229 = vpack.c.b16 %v1089, %v1085
        %v1230 = vpack.c.b16 %v1090, %v1086
        %v1231 = vpack.c.b16 %v1091, %v1087
        %v1232 = vpack.c.b16 %v1096, %v1092
        %v1233 = vpack.c.b16 %v1097, %v1093
        %v1234 = vpack.c.b16 %v1098, %v1094
        %v1235 = vpack.c.b16 %v1099, %v1095
        %v1236 = vpack.c.b16 %v1104, %v1100
        %v1237 = vpack.c.b16 %v1105, %v1101
        %v1238 = vpack.c.b16 %v1106, %v1102
        %v1239 = vpack.c.b16 %v1107, %v1103
        %v1240 = vpack.c.b16 %v1112, %v1108
        %v1241 = vpack.c.b16 %v1113, %v1109
        %v1242 = vpack.c.b16 %v1114, %v1110
        %v1243 = vpack.c.b16 %v1115, %v1111
        %1372 = vmatprep.subr.bf16.mxu0 %v1145
        %1373 = vmatpush1.bf16.msra.mxu0 %v1144
        %1374 = vmatprep.subr.bf16.mxu0 %v1141
        %1375 = vmatpush1.bf16.msra.mxu0 %v1140
        %1376 = vmatprep.subr.bf16.mxu0 %v1137
        %1377 = vmatpush1.bf16.msra.mxu0 %v1136
        %1378 = vmatprep.subr.bf16.mxu0 %v1133
        %1379 = vmatpush1.bf16.msra.mxu0 %v1132
        %1380 = vmatprep.subr.bf16.mxu0 %v1129
        %1381 = vmatpush1.bf16.msra.mxu0 %v1128
        %1382 = vmatprep.subr.bf16.mxu0 %v1125
        %1383 = vmatpush1.bf16.msra.mxu0 %v1124
        %1384 = vmatprep.subr.bf16.mxu0 %v1121
        %1385 = vmatpush1.bf16.msra.mxu0 %v1120
        %1386 = vmatprep.subr.bf16.mxu0 %v1117
        %1387 = vmatpush1.bf16.msra.mxu0 %v1116
        %1388 = vmatprep.subr.bf16.mxu0 %v1177
        %1389 = vmatpush2.bf16.msra.mxu0 %v1176
        %1390 = vmatprep.subr.bf16.mxu0 %v1173
        %1391 = vmatpush2.bf16.msra.mxu0 %v1172
        %1392 = vmatprep.subr.bf16.mxu0 %v1169
        %1393 = vmatpush2.bf16.msra.mxu0 %v1168
        %1394 = vmatprep.subr.bf16.mxu0 %v1165
        %1395 = vmatpush2.bf16.msra.mxu0 %v1164
        %1396 = vmatprep.subr.bf16.mxu0 %v1161
        %1397 = vmatpush2.bf16.msra.mxu0 %v1160
        %1398 = vmatprep.subr.bf16.mxu0 %v1157
        %1399 = vmatpush2.bf16.msra.mxu0 %v1156
        %1400 = vmatprep.subr.bf16.mxu0 %v1153
        %1401 = vmatpush2.bf16.msra.mxu0 %v1152
        %1402 = vmatprep.subr.bf16.mxu0 %v1149
        %1403 = vmatpush2.bf16.msra.mxu0 %v1148
        %1404 = vmatprep.mubr.bf16.mxu0 %v579
        %1405 = vmatmul.mubr.bf16.gmra.mxu0 %v578
        %v1406 = vpop.f32.mrf.mxu0
        %v1407 = vadd.f32 %v715, %v1406
        %v1408 = vpop.f32.mrf.mxu0
        %v1409 = vadd.f32 %v719, %v1408
        %v1410 = vpop.f32.mrf.mxu0
        %v1411 = vpop.f32.mrf.mxu0
        %1412 = vdwg.mxu0
        %1413 = vmatprep.subr.bf16.mxu0 %v1209
        %1414 = vmatpush1.bf16.msra.mxu0 %v1208
        %1415 = vmatprep.subr.bf16.mxu0 %v1205
        %1416 = vmatpush1.bf16.msra.mxu0 %v1204
        %1417 = vmatprep.subr.bf16.mxu0 %v1201
        %1418 = vmatpush1.bf16.msra.mxu0 %v1200
        %1419 = vmatprep.subr.bf16.mxu0 %v1197
        %1420 = vmatpush1.bf16.msra.mxu0 %v1196
        %1421 = vmatprep.subr.bf16.mxu0 %v1193
        %1422 = vmatpush1.bf16.msra.mxu0 %v1192
        %1423 = vmatprep.subr.bf16.mxu0 %v1189
        %1424 = vmatpush1.bf16.msra.mxu0 %v1188
        %1425 = vmatprep.subr.bf16.mxu0 %v1185
        %1426 = vmatpush1.bf16.msra.mxu0 %v1184
        %1427 = vmatprep.subr.bf16.mxu0 %v1181
        %1428 = vmatpush1.bf16.msra.mxu0 %v1180
        %1429 = vmatprep.subr.bf16.mxu0 %v1241
        %1430 = vmatpush2.bf16.msra.mxu0 %v1240
        %1431 = vmatprep.subr.bf16.mxu0 %v1237
        %1432 = vmatpush2.bf16.msra.mxu0 %v1236
        %1433 = vmatprep.subr.bf16.mxu0 %v1233
        %1434 = vmatpush2.bf16.msra.mxu0 %v1232
        %1435 = vmatprep.subr.bf16.mxu0 %v1229
        %1436 = vmatpush2.bf16.msra.mxu0 %v1228
        %1437 = vmatprep.subr.bf16.mxu0 %v1225
        %1438 = vmatpush2.bf16.msra.mxu0 %v1224
        %1439 = vmatprep.subr.bf16.mxu0 %v1221
        %1440 = vmatpush2.bf16.msra.mxu0 %v1220
        %1441 = vmatprep.subr.bf16.mxu0 %v1217
        %1442 = vmatpush2.bf16.msra.mxu0 %v1216
        %1443 = vmatprep.subr.bf16.mxu0 %v1213
        %1444 = vmatpush2.bf16.msra.mxu0 %v1212
        %1445 = vmatprep.mubr.bf16.mxu0 %v581
        %1446 = vmatmul.mubr.bf16.gmra.mxu0 %v580
        %v1447 = vpop.f32.mrf.mxu0
        %v1448 = vadd.f32 %v1407, %v1447
        %v1449 = vpop.f32.mrf.mxu0
        %v1450 = vadd.f32 %v1409, %v1449
        %v1451 = vpop.f32.mrf.mxu0
        %v1452 = vpop.f32.mrf.mxu0
        %1453 = vdwg.mxu0
        %1454 = vmatprep.subr.bf16.mxu0 %v1147
        %1455 = vmatpush1.bf16.msra.mxu0 %v1146
        %1456 = vmatprep.subr.bf16.mxu0 %v1143
        %1457 = vmatpush1.bf16.msra.mxu0 %v1142
        %1458 = vmatprep.subr.bf16.mxu0 %v1139
        %1459 = vmatpush1.bf16.msra.mxu0 %v1138
        %1460 = vmatprep.subr.bf16.mxu0 %v1135
        %1461 = vmatpush1.bf16.msra.mxu0 %v1134
        %1462 = vmatprep.subr.bf16.mxu0 %v1131
        %1463 = vmatpush1.bf16.msra.mxu0 %v1130
        %1464 = vmatprep.subr.bf16.mxu0 %v1127
        %1465 = vmatpush1.bf16.msra.mxu0 %v1126
        %1466 = vmatprep.subr.bf16.mxu0 %v1123
        %1467 = vmatpush1.bf16.msra.mxu0 %v1122
        %1468 = vmatprep.subr.bf16.mxu0 %v1119
        %1469 = vmatpush1.bf16.msra.mxu0 %v1118
        %1470 = vmatprep.subr.bf16.mxu0 %v1179
        %1471 = vmatpush2.bf16.msra.mxu0 %v1178
        %1472 = vmatprep.subr.bf16.mxu0 %v1175
        %1473 = vmatpush2.bf16.msra.mxu0 %v1174
        %1474 = vmatprep.subr.bf16.mxu0 %v1171
        %1475 = vmatpush2.bf16.msra.mxu0 %v1170
        %1476 = vmatprep.subr.bf16.mxu0 %v1167
        %1477 = vmatpush2.bf16.msra.mxu0 %v1166
        %1478 = vmatprep.subr.bf16.mxu0 %v1163
        %1479 = vmatpush2.bf16.msra.mxu0 %v1162
        %1480 = vmatprep.subr.bf16.mxu0 %v1159
        %1481 = vmatpush2.bf16.msra.mxu0 %v1158
        %1482 = vmatprep.subr.bf16.mxu0 %v1155
        %1483 = vmatpush2.bf16.msra.mxu0 %v1154
        %1484 = vmatprep.subr.bf16.mxu0 %v1151
        %1485 = vmatpush2.bf16.msra.mxu0 %v1150
        %1486 = vmatprep.mubr.bf16.mxu0 %v579
        %1487 = vmatmul.mubr.bf16.gmra.mxu0 %v578
        %v1488 = vpop.f32.mrf.mxu0
        %v1489 = vadd.f32 %v723, %v1488
        %v1490 = vpop.f32.mrf.mxu0
        %v1491 = vadd.f32 %v727, %v1490
        %v1492 = vpop.f32.mrf.mxu0
        %v1493 = vpop.f32.mrf.mxu0
        %1494 = vdwg.mxu0
        %1495 = vmatprep.subr.bf16.mxu0 %v1211
        %1496 = vmatpush1.bf16.msra.mxu0 %v1210
        %1497 = vmatprep.subr.bf16.mxu0 %v1207
        %1498 = vmatpush1.bf16.msra.mxu0 %v1206
        %1499 = vmatprep.subr.bf16.mxu0 %v1203
        %1500 = vmatpush1.bf16.msra.mxu0 %v1202
        %1501 = vmatprep.subr.bf16.mxu0 %v1199
        %1502 = vmatpush1.bf16.msra.mxu0 %v1198
        %1503 = vmatprep.subr.bf16.mxu0 %v1195
        %1504 = vmatpush1.bf16.msra.mxu0 %v1194
        %1505 = vmatprep.subr.bf16.mxu0 %v1191
        %1506 = vmatpush1.bf16.msra.mxu0 %v1190
        %1507 = vmatprep.subr.bf16.mxu0 %v1187
        %1508 = vmatpush1.bf16.msra.mxu0 %v1186
        %1509 = vmatprep.subr.bf16.mxu0 %v1183
        %1510 = vmatpush1.bf16.msra.mxu0 %v1182
        %1511 = vmatprep.subr.bf16.mxu0 %v1243
        %1512 = vmatpush2.bf16.msra.mxu0 %v1242
        %1513 = vmatprep.subr.bf16.mxu0 %v1239
        %1514 = vmatpush2.bf16.msra.mxu0 %v1238
        %1515 = vmatprep.subr.bf16.mxu0 %v1235
        %1516 = vmatpush2.bf16.msra.mxu0 %v1234
        %1517 = vmatprep.subr.bf16.mxu0 %v1231
        %1518 = vmatpush2.bf16.msra.mxu0 %v1230
        %1519 = vmatprep.subr.bf16.mxu0 %v1227
        %1520 = vmatpush2.bf16.msra.mxu0 %v1226
        %1521 = vmatprep.subr.bf16.mxu0 %v1223
        %1522 = vmatpush2.bf16.msra.mxu0 %v1222
        %1523 = vmatprep.subr.bf16.mxu0 %v1219
        %1524 = vmatpush2.bf16.msra.mxu0 %v1218
        %1525 = vmatprep.subr.bf16.mxu0 %v1215
        %1526 = vmatpush2.bf16.msra.mxu0 %v1214
        %1527 = vmatprep.mubr.bf16.mxu0 %v581
        %1528 = vmatmul.mubr.bf16.gmra.mxu0 %v580
        %v1529 = vpop.f32.mrf.mxu0
        %v1530 = vadd.f32 %v1489, %v1529
        %v1531 = vpop.f32.mrf.mxu0
        %v1532 = vadd.f32 %v1491, %v1531
        %v1533 = vpop.f32.mrf.mxu0
        %v1534 = vpop.f32.mrf.mxu0
        %1535 = vdwg.mxu0
        %v1536 = vpack.c.bf16 %v1448, %v1448
        %v1537 = vpack.c.bf16 %v1450, %v1450
        %v1538 = vpack.c.bf16 %v1530, %v1530
        %v1539 = vpack.c.bf16 %v1532, %v1532
        %v1540 = vld [vmem:[%s563] sm:$0xff]
        %v1541 = vld [vmem:[%s563 + $0x8] sm:$0xff]
        %v1542 = vld [vmem:[%s563 + $0x10] sm:$0xff]
        %v1543 = vld [vmem:[%s563 + $0x18] sm:$0xff]
        %v1544 = vld [vmem:[%s563 + $0x20] sm:$0xff]
        %v1545 = vld [vmem:[%s563 + $0x28] sm:$0xff]
        %v1546 = vld [vmem:[%s563 + $0x30] sm:$0xff]
        %v1547 = vld [vmem:[%s563 + $0x38] sm:$0xff]
        %v1548 = vld [vmem:[%s563 + $0x40] sm:$0xff]
        %v1549 = vld [vmem:[%s563 + $0x48] sm:$0xff]
        %v1550 = vld [vmem:[%s563 + $0x50] sm:$0xff]
        %v1551 = vld [vmem:[%s563 + $0x58] sm:$0xff]
        %v1552 = vld [vmem:[%s563 + $0x60] sm:$0xff]
        %v1553 = vld [vmem:[%s563 + $0x68] sm:$0xff]
        %v1554 = vld [vmem:[%s563 + $0x70] sm:$0xff]
        %v1555 = vld [vmem:[%s563 + $0x78] sm:$0xff]
        %v1556 = vld [vmem:[%s563 + $0x80] sm:$0xff]
        %v1557 = vld [vmem:[%s563 + $0x88] sm:$0xff]
        %v1558 = vld [vmem:[%s563 + $0x90] sm:$0xff]
        %v1559 = vld [vmem:[%s563 + $0x98] sm:$0xff]
        %v1560 = vld [vmem:[%s563 + $0xa0] sm:$0xff]
        %v1561 = vld [vmem:[%s563 + $0xa8] sm:$0xff]
        %v1562 = vld [vmem:[%s563 + $0xb0] sm:$0xff]
        %v1563 = vld [vmem:[%s563 + $0xb8] sm:$0xff]
        %v1564 = vld [vmem:[%s563 + $0xc0] sm:$0xff]
        %v1565 = vld [vmem:[%s563 + $0xc8] sm:$0xff]
        %v1566 = vld [vmem:[%s563 + $0xd0] sm:$0xff]
        %v1567 = vld [vmem:[%s563 + $0xd8] sm:$0xff]
        %v1568 = vld [vmem:[%s563 + $0xe0] sm:$0xff]
        %v1569 = vld [vmem:[%s563 + $0xe8] sm:$0xff]
        %v1570 = vld [vmem:[%s563 + $0xf0] sm:$0xff]
        %v1571 = vld [vmem:[%s563 + $0xf8] sm:$0xff]
        %v1572 = vld [vmem:[%s563 + $0x100] sm:$0xff]
        %v1573 = vld [vmem:[%s563 + $0x108] sm:$0xff]
        %v1574 = vld [vmem:[%s563 + $0x110] sm:$0xff]
        %v1575 = vld [vmem:[%s563 + $0x118] sm:$0xff]
        %v1576 = vld [vmem:[%s563 + $0x120] sm:$0xff]
        %v1577 = vld [vmem:[%s563 + $0x128] sm:$0xff]
        %v1578 = vld [vmem:[%s563 + $0x130] sm:$0xff]
        %v1579 = vld [vmem:[%s563 + $0x138] sm:$0xff]
        %v1580 = vld [vmem:[%s563 + $0x140] sm:$0xff]
        %v1581 = vld [vmem:[%s563 + $0x148] sm:$0xff]
        %v1582 = vld [vmem:[%s563 + $0x150] sm:$0xff]
        %v1583 = vld [vmem:[%s563 + $0x158] sm:$0xff]
        %v1584 = vld [vmem:[%s563 + $0x160] sm:$0xff]
        %v1585 = vld [vmem:[%s563 + $0x168] sm:$0xff]
        %v1586 = vld [vmem:[%s563 + $0x170] sm:$0xff]
        %v1587 = vld [vmem:[%s563 + $0x178] sm:$0xff]
        %v1588 = vld [vmem:[%s563 + $0x180] sm:$0xff]
        %v1589 = vld [vmem:[%s563 + $0x188] sm:$0xff]
        %v1590 = vld [vmem:[%s563 + $0x190] sm:$0xff]
        %v1591 = vld [vmem:[%s563 + $0x198] sm:$0xff]
        %v1592 = vld [vmem:[%s563 + $0x1a0] sm:$0xff]
        %v1593 = vld [vmem:[%s563 + $0x1a8] sm:$0xff]
        %v1594 = vld [vmem:[%s563 + $0x1b0] sm:$0xff]
        %v1595 = vld [vmem:[%s563 + $0x1b8] sm:$0xff]
        %v1596 = vld [vmem:[%s563 + $0x1c0] sm:$0xff]
        %v1597 = vld [vmem:[%s563 + $0x1c8] sm:$0xff]
        %v1598 = vld [vmem:[%s563 + $0x1d0] sm:$0xff]
        %v1599 = vld [vmem:[%s563 + $0x1d8] sm:$0xff]
        %v1600 = vld [vmem:[%s563 + $0x1e0] sm:$0xff]
        %v1601 = vld [vmem:[%s563 + $0x1e8] sm:$0xff]
        %v1602 = vld [vmem:[%s563 + $0x1f0] sm:$0xff]
        %v1603 = vld [vmem:[%s563 + $0x1f8] sm:$0xff]
        %v1604 = vld [vmem:[%s465] sm:$0x3]
        %v1606 = vlaneseq
        %v1607 = vshrl.u32 %v1606, 7
        %v1608 = vsub.s32 0, %v1607
        %v1609 = vrot.slane %v1604, %v1608
        %v1610 = vlaneseq
        %v1611 = vshrl.u32 %v1610, 7
        %v1612 = vsub.s32 1, %v1611
        %v1613 = vrot.slane %v1604, %v1612
        %v1680 = vunpack.c.l.b16 %v1540
        %v1681 = vunpack.c.h.b16 %v1540
        %v1682 = vunpack.c.l.b16 %v1541
        %v1683 = vunpack.c.h.b16 %v1541
        %v1684 = vunpack.c.l.b16 %v1542
        %v1685 = vunpack.c.h.b16 %v1542
        %v1686 = vunpack.c.l.b16 %v1543
        %v1687 = vunpack.c.h.b16 %v1543
        %v1688 = vunpack.c.l.b16 %v1544
        %v1689 = vunpack.c.h.b16 %v1544
        %v1690 = vunpack.c.l.b16 %v1545
        %v1691 = vunpack.c.h.b16 %v1545
        %v1692 = vunpack.c.l.b16 %v1546
        %v1693 = vunpack.c.h.b16 %v1546
        %v1694 = vunpack.c.l.b16 %v1547
        %v1695 = vunpack.c.h.b16 %v1547
        %v1696 = vunpack.c.l.b16 %v1548
        %v1697 = vunpack.c.h.b16 %v1548
        %v1698 = vunpack.c.l.b16 %v1549
        %v1699 = vunpack.c.h.b16 %v1549
        %v1700 = vunpack.c.l.b16 %v1550
        %v1701 = vunpack.c.h.b16 %v1550
        %v1702 = vunpack.c.l.b16 %v1551
        %v1703 = vunpack.c.h.b16 %v1551
        %v1704 = vunpack.c.l.b16 %v1552
        %v1705 = vunpack.c.h.b16 %v1552
        %v1706 = vunpack.c.l.b16 %v1553
        %v1707 = vunpack.c.h.b16 %v1553
        %v1708 = vunpack.c.l.b16 %v1554
        %v1709 = vunpack.c.h.b16 %v1554
        %v1710 = vunpack.c.l.b16 %v1555
        %v1711 = vunpack.c.h.b16 %v1555
        %v1712 = vunpack.c.l.b16 %v1556
        %v1713 = vunpack.c.h.b16 %v1556
        %v1714 = vunpack.c.l.b16 %v1557
        %v1715 = vunpack.c.h.b16 %v1557
        %v1716 = vunpack.c.l.b16 %v1558
        %v1717 = vunpack.c.h.b16 %v1558
        %v1718 = vunpack.c.l.b16 %v1559
        %v1719 = vunpack.c.h.b16 %v1559
        %v1720 = vunpack.c.l.b16 %v1560
        %v1721 = vunpack.c.h.b16 %v1560
        %v1722 = vunpack.c.l.b16 %v1561
        %v1723 = vunpack.c.h.b16 %v1561
        %v1724 = vunpack.c.l.b16 %v1562
        %v1725 = vunpack.c.h.b16 %v1562
        %v1726 = vunpack.c.l.b16 %v1563
        %v1727 = vunpack.c.h.b16 %v1563
        %v1728 = vunpack.c.l.b16 %v1564
        %v1729 = vunpack.c.h.b16 %v1564
        %v1730 = vunpack.c.l.b16 %v1565
        %v1731 = vunpack.c.h.b16 %v1565
        %v1732 = vunpack.c.l.b16 %v1566
        %v1733 = vunpack.c.h.b16 %v1566
        %v1734 = vunpack.c.l.b16 %v1567
        %v1735 = vunpack.c.h.b16 %v1567
        %v1736 = vunpack.c.l.b16 %v1568
        %v1737 = vunpack.c.h.b16 %v1568
        %v1738 = vunpack.c.l.b16 %v1569
        %v1739 = vunpack.c.h.b16 %v1569
        %v1740 = vunpack.c.l.b16 %v1570
        %v1741 = vunpack.c.h.b16 %v1570
        %v1742 = vunpack.c.l.b16 %v1571
        %v1743 = vunpack.c.h.b16 %v1571
        %v1744 = vunpack.c.l.b16 %v1572
        %v1745 = vunpack.c.h.b16 %v1572
        %v1746 = vunpack.c.l.b16 %v1573
        %v1747 = vunpack.c.h.b16 %v1573
        %v1748 = vunpack.c.l.b16 %v1574
        %v1749 = vunpack.c.h.b16 %v1574
        %v1750 = vunpack.c.l.b16 %v1575
        %v1751 = vunpack.c.h.b16 %v1575
        %v1752 = vunpack.c.l.b16 %v1576
        %v1753 = vunpack.c.h.b16 %v1576
        %v1754 = vunpack.c.l.b16 %v1577
        %v1755 = vunpack.c.h.b16 %v1577
        %v1756 = vunpack.c.l.b16 %v1578
        %v1757 = vunpack.c.h.b16 %v1578
        %v1758 = vunpack.c.l.b16 %v1579
        %v1759 = vunpack.c.h.b16 %v1579
        %v1760 = vunpack.c.l.b16 %v1580
        %v1761 = vunpack.c.h.b16 %v1580
        %v1762 = vunpack.c.l.b16 %v1581
        %v1763 = vunpack.c.h.b16 %v1581
        %v1764 = vunpack.c.l.b16 %v1582
        %v1765 = vunpack.c.h.b16 %v1582
        %v1766 = vunpack.c.l.b16 %v1583
        %v1767 = vunpack.c.h.b16 %v1583
        %v1768 = vunpack.c.l.b16 %v1584
        %v1769 = vunpack.c.h.b16 %v1584
        %v1770 = vunpack.c.l.b16 %v1585
        %v1771 = vunpack.c.h.b16 %v1585
        %v1772 = vunpack.c.l.b16 %v1586
        %v1773 = vunpack.c.h.b16 %v1586
        %v1774 = vunpack.c.l.b16 %v1587
        %v1775 = vunpack.c.h.b16 %v1587
        %v1776 = vunpack.c.l.b16 %v1588
        %v1777 = vunpack.c.h.b16 %v1588
        %v1778 = vunpack.c.l.b16 %v1589
        %v1779 = vunpack.c.h.b16 %v1589
        %v1780 = vunpack.c.l.b16 %v1590
        %v1781 = vunpack.c.h.b16 %v1590
        %v1782 = vunpack.c.l.b16 %v1591
        %v1783 = vunpack.c.h.b16 %v1591
        %v1784 = vunpack.c.l.b16 %v1592
        %v1785 = vunpack.c.h.b16 %v1592
        %v1786 = vunpack.c.l.b16 %v1593
        %v1787 = vunpack.c.h.b16 %v1593
        %v1788 = vunpack.c.l.b16 %v1594
        %v1789 = vunpack.c.h.b16 %v1594
        %v1790 = vunpack.c.l.b16 %v1595
        %v1791 = vunpack.c.h.b16 %v1595
        %v1792 = vunpack.c.l.b16 %v1596
        %v1793 = vunpack.c.h.b16 %v1596
        %v1794 = vunpack.c.l.b16 %v1597
        %v1795 = vunpack.c.h.b16 %v1597
        %v1796 = vunpack.c.l.b16 %v1598
        %v1797 = vunpack.c.h.b16 %v1598
        %v1798 = vunpack.c.l.b16 %v1599
        %v1799 = vunpack.c.h.b16 %v1599
        %v1800 = vunpack.c.l.b16 %v1600
        %v1801 = vunpack.c.h.b16 %v1600
        %v1802 = vunpack.c.l.b16 %v1601
        %v1803 = vunpack.c.h.b16 %v1601
        %v1804 = vunpack.c.l.b16 %v1602
        %v1805 = vunpack.c.h.b16 %v1602
        %v1806 = vunpack.c.l.b16 %v1603
        %v1807 = vunpack.c.h.b16 %v1603
        %v1808 = vpack.c.b16 %v1682, %v1680
        %v1809 = vpack.c.b16 %v1683, %v1681
        %v1810 = vpack.c.b16 %v1686, %v1684
        %v1811 = vpack.c.b16 %v1687, %v1685
        %v1812 = vpack.c.b16 %v1690, %v1688
        %v1813 = vpack.c.b16 %v1691, %v1689
        %v1814 = vpack.c.b16 %v1694, %v1692
        %v1815 = vpack.c.b16 %v1695, %v1693
        %v1816 = vpack.c.b16 %v1698, %v1696
        %v1817 = vpack.c.b16 %v1699, %v1697
        %v1818 = vpack.c.b16 %v1702, %v1700
        %v1819 = vpack.c.b16 %v1703, %v1701
        %v1820 = vpack.c.b16 %v1706, %v1704
        %v1821 = vpack.c.b16 %v1707, %v1705
        %v1822 = vpack.c.b16 %v1710, %v1708
        %v1823 = vpack.c.b16 %v1711, %v1709
        %v1824 = vpack.c.b16 %v1714, %v1712
        %v1825 = vpack.c.b16 %v1715, %v1713
        %v1826 = vpack.c.b16 %v1718, %v1716
        %v1827 = vpack.c.b16 %v1719, %v1717
        %v1828 = vpack.c.b16 %v1722, %v1720
        %v1829 = vpack.c.b16 %v1723, %v1721
        %v1830 = vpack.c.b16 %v1726, %v1724
        %v1831 = vpack.c.b16 %v1727, %v1725
        %v1832 = vpack.c.b16 %v1730, %v1728
        %v1833 = vpack.c.b16 %v1731, %v1729
        %v1834 = vpack.c.b16 %v1734, %v1732
        %v1835 = vpack.c.b16 %v1735, %v1733
        %v1836 = vpack.c.b16 %v1738, %v1736
        %v1837 = vpack.c.b16 %v1739, %v1737
        %v1838 = vpack.c.b16 %v1742, %v1740
        %v1839 = vpack.c.b16 %v1743, %v1741
        %v1840 = vpack.c.b16 %v1746, %v1744
        %v1841 = vpack.c.b16 %v1747, %v1745
        %v1842 = vpack.c.b16 %v1750, %v1748
        %v1843 = vpack.c.b16 %v1751, %v1749
        %v1844 = vpack.c.b16 %v1754, %v1752
        %v1845 = vpack.c.b16 %v1755, %v1753
        %v1846 = vpack.c.b16 %v1758, %v1756
        %v1847 = vpack.c.b16 %v1759, %v1757
        %v1848 = vpack.c.b16 %v1762, %v1760
        %v1849 = vpack.c.b16 %v1763, %v1761
        %v1850 = vpack.c.b16 %v1766, %v1764
        %v1851 = vpack.c.b16 %v1767, %v1765
        %v1852 = vpack.c.b16 %v1770, %v1768
        %v1853 = vpack.c.b16 %v1771, %v1769
        %v1854 = vpack.c.b16 %v1774, %v1772
        %v1855 = vpack.c.b16 %v1775, %v1773
        %v1856 = vpack.c.b16 %v1778, %v1776
        %v1857 = vpack.c.b16 %v1779, %v1777
        %v1858 = vpack.c.b16 %v1782, %v1780
        %v1859 = vpack.c.b16 %v1783, %v1781
        %v1860 = vpack.c.b16 %v1786, %v1784
        %v1861 = vpack.c.b16 %v1787, %v1785
        %v1862 = vpack.c.b16 %v1790, %v1788
        %v1863 = vpack.c.b16 %v1791, %v1789
        %v1864 = vpack.c.b16 %v1794, %v1792
        %v1865 = vpack.c.b16 %v1795, %v1793
        %v1866 = vpack.c.b16 %v1798, %v1796
        %v1867 = vpack.c.b16 %v1799, %v1797
        %v1868 = vpack.c.b16 %v1802, %v1800
        %v1869 = vpack.c.b16 %v1803, %v1801
        %v1870 = vpack.c.b16 %v1806, %v1804
        %v1871 = vpack.c.b16 %v1807, %v1805
        %1936 = vmatprep.subr.bf16.mxu0 %v1823
        %1937 = vmatpush1.bf16.msra.mxu0 %v1822
        %1938 = vmatprep.subr.bf16.mxu0 %v1821
        %1939 = vmatpush1.bf16.msra.mxu0 %v1820
        %1940 = vmatprep.subr.bf16.mxu0 %v1819
        %1941 = vmatpush1.bf16.msra.mxu0 %v1818
        %1942 = vmatprep.subr.bf16.mxu0 %v1817
        %1943 = vmatpush1.bf16.msra.mxu0 %v1816
        %1944 = vmatprep.subr.bf16.mxu0 %v1815
        %1945 = vmatpush1.bf16.msra.mxu0 %v1814
        %1946 = vmatprep.subr.bf16.mxu0 %v1813
        %1947 = vmatpush1.bf16.msra.mxu0 %v1812
        %1948 = vmatprep.subr.bf16.mxu0 %v1811
        %1949 = vmatpush1.bf16.msra.mxu0 %v1810
        %1950 = vmatprep.subr.bf16.mxu0 %v1809
        %1951 = vmatpush1.bf16.msra.mxu0 %v1808
        %1952 = vmatprep.subr.bf16.mxu0 %v1839
        %1953 = vmatpush2.bf16.msra.mxu0 %v1838
        %1954 = vmatprep.subr.bf16.mxu0 %v1837
        %1955 = vmatpush2.bf16.msra.mxu0 %v1836
        %1956 = vmatprep.subr.bf16.mxu0 %v1835
        %1957 = vmatpush2.bf16.msra.mxu0 %v1834
        %1958 = vmatprep.subr.bf16.mxu0 %v1833
        %1959 = vmatpush2.bf16.msra.mxu0 %v1832
        %1960 = vmatprep.subr.bf16.mxu0 %v1831
        %1961 = vmatpush2.bf16.msra.mxu0 %v1830
        %1962 = vmatprep.subr.bf16.mxu0 %v1829
        %1963 = vmatpush2.bf16.msra.mxu0 %v1828
        %1964 = vmatprep.subr.bf16.mxu0 %v1827
        %1965 = vmatpush2.bf16.msra.mxu0 %v1826
        %1966 = vmatprep.subr.bf16.mxu0 %v1825
        %1967 = vmatpush2.bf16.msra.mxu0 %v1824
        %1968 = vmatprep.mubr.bf16.mxu0 %v1537
        %1969 = vmatmul.mubr.bf16.gmra.mxu0 %v1536
        %v1970 = vpop.f32.mrf.mxu0
        %v1971 = vadd.f32 %v1609, %v1970
        %v1972 = vpop.f32.mrf.mxu0
        %v1973 = vadd.f32 %v1613, %v1972
        %v1974 = vpop.f32.mrf.mxu0
        %v1975 = vpop.f32.mrf.mxu0
        %1976 = vdwg.mxu0
        %1977 = vmatprep.subr.bf16.mxu0 %v1855
        %1978 = vmatpush1.bf16.msra.mxu0 %v1854
        %1979 = vmatprep.subr.bf16.mxu0 %v1853
        %1980 = vmatpush1.bf16.msra.mxu0 %v1852
        %1981 = vmatprep.subr.bf16.mxu0 %v1851
        %1982 = vmatpush1.bf16.msra.mxu0 %v1850
        %1983 = vmatprep.subr.bf16.mxu0 %v1849
        %1984 = vmatpush1.bf16.msra.mxu0 %v1848
        %1985 = vmatprep.subr.bf16.mxu0 %v1847
        %1986 = vmatpush1.bf16.msra.mxu0 %v1846
        %1987 = vmatprep.subr.bf16.mxu0 %v1845
        %1988 = vmatpush1.bf16.msra.mxu0 %v1844
        %1989 = vmatprep.subr.bf16.mxu0 %v1843
        %1990 = vmatpush1.bf16.msra.mxu0 %v1842
        %1991 = vmatprep.subr.bf16.mxu0 %v1841
        %1992 = vmatpush1.bf16.msra.mxu0 %v1840
        %1993 = vmatprep.subr.bf16.mxu0 %v1871
        %1994 = vmatpush2.bf16.msra.mxu0 %v1870
        %1995 = vmatprep.subr.bf16.mxu0 %v1869
        %1996 = vmatpush2.bf16.msra.mxu0 %v1868
        %1997 = vmatprep.subr.bf16.mxu0 %v1867
        %1998 = vmatpush2.bf16.msra.mxu0 %v1866
        %1999 = vmatprep.subr.bf16.mxu0 %v1865
        %2000 = vmatpush2.bf16.msra.mxu0 %v1864
        %2001 = vmatprep.subr.bf16.mxu0 %v1863
        %2002 = vmatpush2.bf16.msra.mxu0 %v1862
        %2003 = vmatprep.subr.bf16.mxu0 %v1861
        %2004 = vmatpush2.bf16.msra.mxu0 %v1860
        %2005 = vmatprep.subr.bf16.mxu0 %v1859
        %2006 = vmatpush2.bf16.msra.mxu0 %v1858
        %2007 = vmatprep.subr.bf16.mxu0 %v1857
        %2008 = vmatpush2.bf16.msra.mxu0 %v1856
        %2009 = vmatprep.mubr.bf16.mxu0 %v1539
        %2010 = vmatmul.mubr.bf16.gmra.mxu0 %v1538
        %v2011 = vpop.f32.mrf.mxu0
        %v2012 = vadd.f32 %v1971, %v2011
        %v2013 = vpop.f32.mrf.mxu0
        %v2014 = vadd.f32 %v1973, %v2013
        %v2015 = vpop.f32.mrf.mxu0
        %v2016 = vpop.f32.mrf.mxu0
        %2017 = vdwg.mxu0
        %v2018 = vpack.c.bf16 %v2012, %v2012
        %v2019 = vpack.c.bf16 %v2014, %v2014
        %v2020 = vld [vmem:[%s474] sm:$0xff]
        %v2021 = vld [vmem:[%s474 + $0x8] sm:$0xff]
        %v2022 = vld [vmem:[%s474 + $0x10] sm:$0xff]
        %v2023 = vld [vmem:[%s474 + $0x18] sm:$0xff]
        %v2024 = vld [vmem:[%s474 + $0x20] sm:$0xff]
        %v2025 = vld [vmem:[%s474 + $0x28] sm:$0xff]
        %v2026 = vld [vmem:[%s474 + $0x30] sm:$0xff]
        %v2027 = vld [vmem:[%s474 + $0x38] sm:$0xff]
        %v2028 = vld [vmem:[%s474 + $0x40] sm:$0xff]
        %v2029 = vld [vmem:[%s474 + $0x48] sm:$0xff]
        %v2030 = vld [vmem:[%s474 + $0x50] sm:$0xff]
        %v2031 = vld [vmem:[%s474 + $0x58] sm:$0xff]
        %v2032 = vld [vmem:[%s474 + $0x60] sm:$0xff]
        %v2033 = vld [vmem:[%s474 + $0x68] sm:$0xff]
        %v2034 = vld [vmem:[%s474 + $0x70] sm:$0xff]
        %v2035 = vld [vmem:[%s474 + $0x78] sm:$0xff]
        %v2036 = vld [vmem:[%s474 + $0x80] sm:$0xff]
        %v2037 = vld [vmem:[%s474 + $0x88] sm:$0xff]
        %v2038 = vld [vmem:[%s474 + $0x90] sm:$0xff]
        %v2039 = vld [vmem:[%s474 + $0x98] sm:$0xff]
        %v2040 = vld [vmem:[%s474 + $0xa0] sm:$0xff]
        %v2041 = vld [vmem:[%s474 + $0xa8] sm:$0xff]
        %v2042 = vld [vmem:[%s474 + $0xb0] sm:$0xff]
        %v2043 = vld [vmem:[%s474 + $0xb8] sm:$0xff]
        %v2044 = vld [vmem:[%s474 + $0xc0] sm:$0xff]
        %v2045 = vld [vmem:[%s474 + $0xc8] sm:$0xff]
        %v2046 = vld [vmem:[%s474 + $0xd0] sm:$0xff]
        %v2047 = vld [vmem:[%s474 + $0xd8] sm:$0xff]
        %v2048 = vld [vmem:[%s474 + $0xe0] sm:$0xff]
        %v2049 = vld [vmem:[%s474 + $0xe8] sm:$0xff]
        %v2050 = vld [vmem:[%s474 + $0xf0] sm:$0xff]
        %v2051 = vld [vmem:[%s474 + $0xf8] sm:$0xff]
        %v2052 = vld [vmem:[%s474 + $0x100] sm:$0xff]
        %v2053 = vld [vmem:[%s474 + $0x108] sm:$0xff]
        %v2054 = vld [vmem:[%s474 + $0x110] sm:$0xff]
        %v2055 = vld [vmem:[%s474 + $0x118] sm:$0xff]
        %v2056 = vld [vmem:[%s474 + $0x120] sm:$0xff]
        %v2057 = vld [vmem:[%s474 + $0x128] sm:$0xff]
        %v2058 = vld [vmem:[%s474 + $0x130] sm:$0xff]
        %v2059 = vld [vmem:[%s474 + $0x138] sm:$0xff]
        %v2060 = vld [vmem:[%s474 + $0x140] sm:$0xff]
        %v2061 = vld [vmem:[%s474 + $0x148] sm:$0xff]
        %v2062 = vld [vmem:[%s474 + $0x150] sm:$0xff]
        %v2063 = vld [vmem:[%s474 + $0x158] sm:$0xff]
        %v2064 = vld [vmem:[%s474 + $0x160] sm:$0xff]
        %v2065 = vld [vmem:[%s474 + $0x168] sm:$0xff]
        %v2066 = vld [vmem:[%s474 + $0x170] sm:$0xff]
        %v2067 = vld [vmem:[%s474 + $0x178] sm:$0xff]
        %v2068 = vld [vmem:[%s474 + $0x180] sm:$0xff]
        %v2069 = vld [vmem:[%s474 + $0x188] sm:$0xff]
        %v2070 = vld [vmem:[%s474 + $0x190] sm:$0xff]
        %v2071 = vld [vmem:[%s474 + $0x198] sm:$0xff]
        %v2072 = vld [vmem:[%s474 + $0x1a0] sm:$0xff]
        %v2073 = vld [vmem:[%s474 + $0x1a8] sm:$0xff]
        %v2074 = vld [vmem:[%s474 + $0x1b0] sm:$0xff]
        %v2075 = vld [vmem:[%s474 + $0x1b8] sm:$0xff]
        %v2076 = vld [vmem:[%s474 + $0x1c0] sm:$0xff]
        %v2077 = vld [vmem:[%s474 + $0x1c8] sm:$0xff]
        %v2078 = vld [vmem:[%s474 + $0x1d0] sm:$0xff]
        %v2079 = vld [vmem:[%s474 + $0x1d8] sm:$0xff]
        %v2080 = vld [vmem:[%s474 + $0x1e0] sm:$0xff]
        %v2081 = vld [vmem:[%s474 + $0x1e8] sm:$0xff]
        %v2082 = vld [vmem:[%s474 + $0x1f0] sm:$0xff]
        %v2083 = vld [vmem:[%s474 + $0x1f8] sm:$0xff]
        %v2084 = vld [vmem:[%s474 + $0x200] sm:$0xff]
        %v2085 = vld [vmem:[%s474 + $0x208] sm:$0xff]
        %v2086 = vld [vmem:[%s474 + $0x210] sm:$0xff]
        %v2087 = vld [vmem:[%s474 + $0x218] sm:$0xff]
        %v2088 = vld [vmem:[%s474 + $0x220] sm:$0xff]
        %v2089 = vld [vmem:[%s474 + $0x228] sm:$0xff]
        %v2090 = vld [vmem:[%s474 + $0x230] sm:$0xff]
        %v2091 = vld [vmem:[%s474 + $0x238] sm:$0xff]
        %v2092 = vld [vmem:[%s474 + $0x240] sm:$0xff]
        %v2093 = vld [vmem:[%s474 + $0x248] sm:$0xff]
        %v2094 = vld [vmem:[%s474 + $0x250] sm:$0xff]
        %v2095 = vld [vmem:[%s474 + $0x258] sm:$0xff]
        %v2096 = vld [vmem:[%s474 + $0x260] sm:$0xff]
        %v2097 = vld [vmem:[%s474 + $0x268] sm:$0xff]
        %v2098 = vld [vmem:[%s474 + $0x270] sm:$0xff]
        %v2099 = vld [vmem:[%s474 + $0x278] sm:$0xff]
        %v2100 = vld [vmem:[%s474 + $0x280] sm:$0xff]
        %v2101 = vld [vmem:[%s474 + $0x288] sm:$0xff]
        %v2102 = vld [vmem:[%s474 + $0x290] sm:$0xff]
        %v2103 = vld [vmem:[%s474 + $0x298] sm:$0xff]
        %v2104 = vld [vmem:[%s474 + $0x2a0] sm:$0xff]
        %v2105 = vld [vmem:[%s474 + $0x2a8] sm:$0xff]
        %v2106 = vld [vmem:[%s474 + $0x2b0] sm:$0xff]
        %v2107 = vld [vmem:[%s474 + $0x2b8] sm:$0xff]
        %v2108 = vld [vmem:[%s474 + $0x2c0] sm:$0xff]
        %v2109 = vld [vmem:[%s474 + $0x2c8] sm:$0xff]
        %v2110 = vld [vmem:[%s474 + $0x2d0] sm:$0xff]
        %v2111 = vld [vmem:[%s474 + $0x2d8] sm:$0xff]
        %v2112 = vld [vmem:[%s474 + $0x2e0] sm:$0xff]
        %v2113 = vld [vmem:[%s474 + $0x2e8] sm:$0xff]
        %v2114 = vld [vmem:[%s474 + $0x2f0] sm:$0xff]
        %v2115 = vld [vmem:[%s474 + $0x2f8] sm:$0xff]
        %v2116 = vld [vmem:[%s474 + $0x300] sm:$0xff]
        %v2117 = vld [vmem:[%s474 + $0x308] sm:$0xff]
        %v2118 = vld [vmem:[%s474 + $0x310] sm:$0xff]
        %v2119 = vld [vmem:[%s474 + $0x318] sm:$0xff]
        %v2120 = vld [vmem:[%s474 + $0x320] sm:$0xff]
        %v2121 = vld [vmem:[%s474 + $0x328] sm:$0xff]
        %v2122 = vld [vmem:[%s474 + $0x330] sm:$0xff]
        %v2123 = vld [vmem:[%s474 + $0x338] sm:$0xff]
        %v2124 = vld [vmem:[%s474 + $0x340] sm:$0xff]
        %v2125 = vld [vmem:[%s474 + $0x348] sm:$0xff]
        %v2126 = vld [vmem:[%s474 + $0x350] sm:$0xff]
        %v2127 = vld [vmem:[%s474 + $0x358] sm:$0xff]
        %v2128 = vld [vmem:[%s474 + $0x360] sm:$0xff]
        %v2129 = vld [vmem:[%s474 + $0x368] sm:$0xff]
        %v2130 = vld [vmem:[%s474 + $0x370] sm:$0xff]
        %v2131 = vld [vmem:[%s474 + $0x378] sm:$0xff]
        %v2132 = vld [vmem:[%s474 + $0x380] sm:$0xff]
        %v2133 = vld [vmem:[%s474 + $0x388] sm:$0xff]
        %v2134 = vld [vmem:[%s474 + $0x390] sm:$0xff]
        %v2135 = vld [vmem:[%s474 + $0x398] sm:$0xff]
        %v2136 = vld [vmem:[%s474 + $0x3a0] sm:$0xff]
        %v2137 = vld [vmem:[%s474 + $0x3a8] sm:$0xff]
        %v2138 = vld [vmem:[%s474 + $0x3b0] sm:$0xff]
        %v2139 = vld [vmem:[%s474 + $0x3b8] sm:$0xff]
        %v2140 = vld [vmem:[%s474 + $0x3c0] sm:$0xff]
        %v2141 = vld [vmem:[%s474 + $0x3c8] sm:$0xff]
        %v2142 = vld [vmem:[%s474 + $0x3d0] sm:$0xff]
        %v2143 = vld [vmem:[%s474 + $0x3d8] sm:$0xff]
        %v2144 = vld [vmem:[%s474 + $0x3e0] sm:$0xff]
        %v2145 = vld [vmem:[%s474 + $0x3e8] sm:$0xff]
        %v2146 = vld [vmem:[%s474 + $0x3f0] sm:$0xff]
        %v2147 = vld [vmem:[%s474 + $0x3f8] sm:$0xff]
        %v2148 = vld [vmem:[%s474 + $0x400] sm:$0xff]
        %v2149 = vld [vmem:[%s474 + $0x408] sm:$0xff]
        %v2150 = vld [vmem:[%s474 + $0x410] sm:$0xff]
        %v2151 = vld [vmem:[%s474 + $0x418] sm:$0xff]
        %v2152 = vld [vmem:[%s474 + $0x420] sm:$0xff]
        %v2153 = vld [vmem:[%s474 + $0x428] sm:$0xff]
        %v2154 = vld [vmem:[%s474 + $0x430] sm:$0xff]
        %v2155 = vld [vmem:[%s474 + $0x438] sm:$0xff]
        %v2156 = vld [vmem:[%s474 + $0x440] sm:$0xff]
        %v2157 = vld [vmem:[%s474 + $0x448] sm:$0xff]
        %v2158 = vld [vmem:[%s474 + $0x450] sm:$0xff]
        %v2159 = vld [vmem:[%s474 + $0x458] sm:$0xff]
        %v2160 = vld [vmem:[%s474 + $0x460] sm:$0xff]
        %v2161 = vld [vmem:[%s474 + $0x468] sm:$0xff]
        %v2162 = vld [vmem:[%s474 + $0x470] sm:$0xff]
        %v2163 = vld [vmem:[%s474 + $0x478] sm:$0xff]
        %v2164 = vld [vmem:[%s474 + $0x480] sm:$0xff]
        %v2165 = vld [vmem:[%s474 + $0x488] sm:$0xff]
        %v2166 = vld [vmem:[%s474 + $0x490] sm:$0xff]
        %v2167 = vld [vmem:[%s474 + $0x498] sm:$0xff]
        %v2168 = vld [vmem:[%s474 + $0x4a0] sm:$0xff]
        %v2169 = vld [vmem:[%s474 + $0x4a8] sm:$0xff]
        %v2170 = vld [vmem:[%s474 + $0x4b0] sm:$0xff]
        %v2171 = vld [vmem:[%s474 + $0x4b8] sm:$0xff]
        %v2172 = vld [vmem:[%s474 + $0x4c0] sm:$0xff]
        %v2173 = vld [vmem:[%s474 + $0x4c8] sm:$0xff]
        %v2174 = vld [vmem:[%s474 + $0x4d0] sm:$0xff]
        %v2175 = vld [vmem:[%s474 + $0x4d8] sm:$0xff]
        %v2176 = vld [vmem:[%s474 + $0x4e0] sm:$0xff]
        %v2177 = vld [vmem:[%s474 + $0x4e8] sm:$0xff]
        %v2178 = vld [vmem:[%s474 + $0x4f0] sm:$0xff]
        %v2179 = vld [vmem:[%s474 + $0x4f8] sm:$0xff]
        %v2180 = vld [vmem:[%s483] sm:$0xff]
        %v2181 = vld [vmem:[%s483 + $0x8] sm:$0x3]
        %v2184 = vlaneseq
        %v2185 = vshrl.u32 %v2184, 7
        %v2186 = vsub.s32 0, %v2185
        %v2187 = vrot.slane %v2180, %v2186
        %v2188 = vlaneseq
        %v2189 = vshrl.u32 %v2188, 7
        %v2190 = vsub.s32 1, %v2189
        %v2191 = vrot.slane %v2180, %v2190
        %v2192 = vlaneseq
        %v2193 = vshrl.u32 %v2192, 7
        %v2194 = vsub.s32 2, %v2193
        %v2195 = vrot.slane %v2180, %v2194
        %v2196 = vlaneseq
        %v2197 = vshrl.u32 %v2196, 7
        %v2198 = vsub.s32 3, %v2197
        %v2199 = vrot.slane %v2180, %v2198
        %v2200 = vlaneseq
        %v2201 = vshrl.u32 %v2200, 7
        %v2202 = vsub.s32 4, %v2201
        %v2203 = vrot.slane %v2180, %v2202
        %v2204 = vlaneseq
        %v2205 = vshrl.u32 %v2204, 7
        %v2206 = vsub.s32 5, %v2205
        %v2207 = vrot.slane %v2180, %v2206
        %v2208 = vlaneseq
        %v2209 = vshrl.u32 %v2208, 7
        %v2210 = vsub.s32 6, %v2209
        %v2211 = vrot.slane %v2180, %v2210
        %v2212 = vlaneseq
        %v2213 = vshrl.u32 %v2212, 7
        %v2214 = vsub.s32 7, %v2213
        %v2215 = vrot.slane %v2180, %v2214
        %v2216 = vlaneseq
        %v2217 = vshrl.u32 %v2216, 7
        %v2218 = vsub.s32 0, %v2217
        %v2219 = vrot.slane %v2181, %v2218
        %v2220 = vlaneseq
        %v2221 = vshrl.u32 %v2220, 7
        %v2222 = vsub.s32 1, %v2221
        %v2223 = vrot.slane %v2181, %v2222
        %v2394 = vunpack.c.l.b16 %v2020
        %v2395 = vunpack.c.h.b16 %v2020
        %v2396 = vunpack.c.l.b16 %v2021
        %v2397 = vunpack.c.h.b16 %v2021
        %v2398 = vunpack.c.l.b16 %v2022
        %v2399 = vunpack.c.h.b16 %v2022
        %v2400 = vunpack.c.l.b16 %v2023
        %v2401 = vunpack.c.h.b16 %v2023
        %v2402 = vunpack.c.l.b16 %v2024
        %v2403 = vunpack.c.h.b16 %v2024
        %v2404 = vunpack.c.l.b16 %v2025
        %v2405 = vunpack.c.h.b16 %v2025
        %v2406 = vunpack.c.l.b16 %v2026
        %v2407 = vunpack.c.h.b16 %v2026
        %v2408 = vunpack.c.l.b16 %v2027
        %v2409 = vunpack.c.h.b16 %v2027
        %v2410 = vunpack.c.l.b16 %v2028
        %v2411 = vunpack.c.h.b16 %v2028
        %v2412 = vunpack.c.l.b16 %v2029
        %v2413 = vunpack.c.h.b16 %v2029
        %v2414 = vunpack.c.l.b16 %v2030
        %v2415 = vunpack.c.h.b16 %v2030
        %v2416 = vunpack.c.l.b16 %v2031
        %v2417 = vunpack.c.h.b16 %v2031
        %v2418 = vunpack.c.l.b16 %v2032
        %v2419 = vunpack.c.h.b16 %v2032
        %v2420 = vunpack.c.l.b16 %v2033
        %v2421 = vunpack.c.h.b16 %v2033
        %v2422 = vunpack.c.l.b16 %v2034
        %v2423 = vunpack.c.h.b16 %v2034
        %v2424 = vunpack.c.l.b16 %v2035
        %v2425 = vunpack.c.h.b16 %v2035
        %v2426 = vunpack.c.l.b16 %v2036
        %v2427 = vunpack.c.h.b16 %v2036
        %v2428 = vunpack.c.l.b16 %v2037
        %v2429 = vunpack.c.h.b16 %v2037
        %v2430 = vunpack.c.l.b16 %v2038
        %v2431 = vunpack.c.h.b16 %v2038
        %v2432 = vunpack.c.l.b16 %v2039
        %v2433 = vunpack.c.h.b16 %v2039
        %v2434 = vunpack.c.l.b16 %v2040
        %v2435 = vunpack.c.h.b16 %v2040
        %v2436 = vunpack.c.l.b16 %v2041
        %v2437 = vunpack.c.h.b16 %v2041
        %v2438 = vunpack.c.l.b16 %v2042
        %v2439 = vunpack.c.h.b16 %v2042
        %v2440 = vunpack.c.l.b16 %v2043
        %v2441 = vunpack.c.h.b16 %v2043
        %v2442 = vunpack.c.l.b16 %v2044
        %v2443 = vunpack.c.h.b16 %v2044
        %v2444 = vunpack.c.l.b16 %v2045
        %v2445 = vunpack.c.h.b16 %v2045
        %v2446 = vunpack.c.l.b16 %v2046
        %v2447 = vunpack.c.h.b16 %v2046
        %v2448 = vunpack.c.l.b16 %v2047
        %v2449 = vunpack.c.h.b16 %v2047
        %v2450 = vunpack.c.l.b16 %v2048
        %v2451 = vunpack.c.h.b16 %v2048
        %v2452 = vunpack.c.l.b16 %v2049
        %v2453 = vunpack.c.h.b16 %v2049
        %v2454 = vunpack.c.l.b16 %v2050
        %v2455 = vunpack.c.h.b16 %v2050
        %v2456 = vunpack.c.l.b16 %v2051
        %v2457 = vunpack.c.h.b16 %v2051
        %v2458 = vunpack.c.l.b16 %v2052
        %v2459 = vunpack.c.h.b16 %v2052
        %v2460 = vunpack.c.l.b16 %v2053
        %v2461 = vunpack.c.h.b16 %v2053
        %v2462 = vunpack.c.l.b16 %v2054
        %v2463 = vunpack.c.h.b16 %v2054
        %v2464 = vunpack.c.l.b16 %v2055
        %v2465 = vunpack.c.h.b16 %v2055
        %v2466 = vunpack.c.l.b16 %v2056
        %v2467 = vunpack.c.h.b16 %v2056
        %v2468 = vunpack.c.l.b16 %v2057
        %v2469 = vunpack.c.h.b16 %v2057
        %v2470 = vunpack.c.l.b16 %v2058
        %v2471 = vunpack.c.h.b16 %v2058
        %v2472 = vunpack.c.l.b16 %v2059
        %v2473 = vunpack.c.h.b16 %v2059
        %v2474 = vunpack.c.l.b16 %v2060
        %v2475 = vunpack.c.h.b16 %v2060
        %v2476 = vunpack.c.l.b16 %v2061
        %v2477 = vunpack.c.h.b16 %v2061
        %v2478 = vunpack.c.l.b16 %v2062
        %v2479 = vunpack.c.h.b16 %v2062
        %v2480 = vunpack.c.l.b16 %v2063
        %v2481 = vunpack.c.h.b16 %v2063
        %v2482 = vunpack.c.l.b16 %v2064
        %v2483 = vunpack.c.h.b16 %v2064
        %v2484 = vunpack.c.l.b16 %v2065
        %v2485 = vunpack.c.h.b16 %v2065
        %v2486 = vunpack.c.l.b16 %v2066
        %v2487 = vunpack.c.h.b16 %v2066
        %v2488 = vunpack.c.l.b16 %v2067
        %v2489 = vunpack.c.h.b16 %v2067
        %v2490 = vunpack.c.l.b16 %v2068
        %v2491 = vunpack.c.h.b16 %v2068
        %v2492 = vunpack.c.l.b16 %v2069
        %v2493 = vunpack.c.h.b16 %v2069
        %v2494 = vunpack.c.l.b16 %v2070
        %v2495 = vunpack.c.h.b16 %v2070
        %v2496 = vunpack.c.l.b16 %v2071
        %v2497 = vunpack.c.h.b16 %v2071
        %v2498 = vunpack.c.l.b16 %v2072
        %v2499 = vunpack.c.h.b16 %v2072
        %v2500 = vunpack.c.l.b16 %v2073
        %v2501 = vunpack.c.h.b16 %v2073
        %v2502 = vunpack.c.l.b16 %v2074
        %v2503 = vunpack.c.h.b16 %v2074
        %v2504 = vunpack.c.l.b16 %v2075
        %v2505 = vunpack.c.h.b16 %v2075
        %v2506 = vunpack.c.l.b16 %v2076
        %v2507 = vunpack.c.h.b16 %v2076
        %v2508 = vunpack.c.l.b16 %v2077
        %v2509 = vunpack.c.h.b16 %v2077
        %v2510 = vunpack.c.l.b16 %v2078
        %v2511 = vunpack.c.h.b16 %v2078
        %v2512 = vunpack.c.l.b16 %v2079
        %v2513 = vunpack.c.h.b16 %v2079
        %v2514 = vunpack.c.l.b16 %v2080
        %v2515 = vunpack.c.h.b16 %v2080
        %v2516 = vunpack.c.l.b16 %v2081
        %v2517 = vunpack.c.h.b16 %v2081
        %v2518 = vunpack.c.l.b16 %v2082
        %v2519 = vunpack.c.h.b16 %v2082
        %v2520 = vunpack.c.l.b16 %v2083
        %v2521 = vunpack.c.h.b16 %v2083
        %v2522 = vunpack.c.l.b16 %v2084
        %v2523 = vunpack.c.h.b16 %v2084
        %v2524 = vunpack.c.l.b16 %v2085
        %v2525 = vunpack.c.h.b16 %v2085
        %v2526 = vunpack.c.l.b16 %v2086
        %v2527 = vunpack.c.h.b16 %v2086
        %v2528 = vunpack.c.l.b16 %v2087
        %v2529 = vunpack.c.h.b16 %v2087
        %v2530 = vunpack.c.l.b16 %v2088
        %v2531 = vunpack.c.h.b16 %v2088
        %v2532 = vunpack.c.l.b16 %v2089
        %v2533 = vunpack.c.h.b16 %v2089
        %v2534 = vunpack.c.l.b16 %v2090
        %v2535 = vunpack.c.h.b16 %v2090
        %v2536 = vunpack.c.l.b16 %v2091
        %v2537 = vunpack.c.h.b16 %v2091
        %v2538 = vunpack.c.l.b16 %v2092
        %v2539 = vunpack.c.h.b16 %v2092
        %v2540 = vunpack.c.l.b16 %v2093
        %v2541 = vunpack.c.h.b16 %v2093
        %v2542 = vunpack.c.l.b16 %v2094
        %v2543 = vunpack.c.h.b16 %v2094
        %v2544 = vunpack.c.l.b16 %v2095
        %v2545 = vunpack.c.h.b16 %v2095
        %v2546 = vunpack.c.l.b16 %v2096
        %v2547 = vunpack.c.h.b16 %v2096
        %v2548 = vunpack.c.l.b16 %v2097
        %v2549 = vunpack.c.h.b16 %v2097
        %v2550 = vunpack.c.l.b16 %v2098
        %v2551 = vunpack.c.h.b16 %v2098
        %v2552 = vunpack.c.l.b16 %v2099
        %v2553 = vunpack.c.h.b16 %v2099
        %v2554 = vunpack.c.l.b16 %v2100
        %v2555 = vunpack.c.h.b16 %v2100
        %v2556 = vunpack.c.l.b16 %v2101
        %v2557 = vunpack.c.h.b16 %v2101
        %v2558 = vunpack.c.l.b16 %v2102
        %v2559 = vunpack.c.h.b16 %v2102
        %v2560 = vunpack.c.l.b16 %v2103
        %v2561 = vunpack.c.h.b16 %v2103
        %v2562 = vunpack.c.l.b16 %v2104
        %v2563 = vunpack.c.h.b16 %v2104
        %v2564 = vunpack.c.l.b16 %v2105
        %v2565 = vunpack.c.h.b16 %v2105
        %v2566 = vunpack.c.l.b16 %v2106
        %v2567 = vunpack.c.h.b16 %v2106
        %v2568 = vunpack.c.l.b16 %v2107
        %v2569 = vunpack.c.h.b16 %v2107
        %v2570 = vunpack.c.l.b16 %v2108
        %v2571 = vunpack.c.h.b16 %v2108
        %v2572 = vunpack.c.l.b16 %v2109
        %v2573 = vunpack.c.h.b16 %v2109
        %v2574 = vunpack.c.l.b16 %v2110
        %v2575 = vunpack.c.h.b16 %v2110
        %v2576 = vunpack.c.l.b16 %v2111
        %v2577 = vunpack.c.h.b16 %v2111
        %v2578 = vunpack.c.l.b16 %v2112
        %v2579 = vunpack.c.h.b16 %v2112
        %v2580 = vunpack.c.l.b16 %v2113
        %v2581 = vunpack.c.h.b16 %v2113
        %v2582 = vunpack.c.l.b16 %v2114
        %v2583 = vunpack.c.h.b16 %v2114
        %v2584 = vunpack.c.l.b16 %v2115
        %v2585 = vunpack.c.h.b16 %v2115
        %v2586 = vunpack.c.l.b16 %v2116
        %v2587 = vunpack.c.h.b16 %v2116
        %v2588 = vunpack.c.l.b16 %v2117
        %v2589 = vunpack.c.h.b16 %v2117
        %v2590 = vunpack.c.l.b16 %v2118
        %v2591 = vunpack.c.h.b16 %v2118
        %v2592 = vunpack.c.l.b16 %v2119
        %v2593 = vunpack.c.h.b16 %v2119
        %v2594 = vunpack.c.l.b16 %v2120
        %v2595 = vunpack.c.h.b16 %v2120
        %v2596 = vunpack.c.l.b16 %v2121
        %v2597 = vunpack.c.h.b16 %v2121
        %v2598 = vunpack.c.l.b16 %v2122
        %v2599 = vunpack.c.h.b16 %v2122
        %v2600 = vunpack.c.l.b16 %v2123
        %v2601 = vunpack.c.h.b16 %v2123
        %v2602 = vunpack.c.l.b16 %v2124
        %v2603 = vunpack.c.h.b16 %v2124
        %v2604 = vunpack.c.l.b16 %v2125
        %v2605 = vunpack.c.h.b16 %v2125
        %v2606 = vunpack.c.l.b16 %v2126
        %v2607 = vunpack.c.h.b16 %v2126
        %v2608 = vunpack.c.l.b16 %v2127
        %v2609 = vunpack.c.h.b16 %v2127
        %v2610 = vunpack.c.l.b16 %v2128
        %v2611 = vunpack.c.h.b16 %v2128
        %v2612 = vunpack.c.l.b16 %v2129
        %v2613 = vunpack.c.h.b16 %v2129
        %v2614 = vunpack.c.l.b16 %v2130
        %v2615 = vunpack.c.h.b16 %v2130
        %v2616 = vunpack.c.l.b16 %v2131
        %v2617 = vunpack.c.h.b16 %v2131
        %v2618 = vunpack.c.l.b16 %v2132
        %v2619 = vunpack.c.h.b16 %v2132
        %v2620 = vunpack.c.l.b16 %v2133
        %v2621 = vunpack.c.h.b16 %v2133
        %v2622 = vunpack.c.l.b16 %v2134
        %v2623 = vunpack.c.h.b16 %v2134
        %v2624 = vunpack.c.l.b16 %v2135
        %v2625 = vunpack.c.h.b16 %v2135
        %v2626 = vunpack.c.l.b16 %v2136
        %v2627 = vunpack.c.h.b16 %v2136
        %v2628 = vunpack.c.l.b16 %v2137
        %v2629 = vunpack.c.h.b16 %v2137
        %v2630 = vunpack.c.l.b16 %v2138
        %v2631 = vunpack.c.h.b16 %v2138
        %v2632 = vunpack.c.l.b16 %v2139
        %v2633 = vunpack.c.h.b16 %v2139
        %v2634 = vunpack.c.l.b16 %v2140
        %v2635 = vunpack.c.h.b16 %v2140
        %v2636 = vunpack.c.l.b16 %v2141
        %v2637 = vunpack.c.h.b16 %v2141
        %v2638 = vunpack.c.l.b16 %v2142
        %v2639 = vunpack.c.h.b16 %v2142
        %v2640 = vunpack.c.l.b16 %v2143
        %v2641 = vunpack.c.h.b16 %v2143
        %v2642 = vunpack.c.l.b16 %v2144
        %v2643 = vunpack.c.h.b16 %v2144
        %v2644 = vunpack.c.l.b16 %v2145
        %v2645 = vunpack.c.h.b16 %v2145
        %v2646 = vunpack.c.l.b16 %v2146
        %v2647 = vunpack.c.h.b16 %v2146
        %v2648 = vunpack.c.l.b16 %v2147
        %v2649 = vunpack.c.h.b16 %v2147
        %v2650 = vunpack.c.l.b16 %v2148
        %v2651 = vunpack.c.h.b16 %v2148
        %v2652 = vunpack.c.l.b16 %v2149
        %v2653 = vunpack.c.h.b16 %v2149
        %v2654 = vunpack.c.l.b16 %v2150
        %v2655 = vunpack.c.h.b16 %v2150
        %v2656 = vunpack.c.l.b16 %v2151
        %v2657 = vunpack.c.h.b16 %v2151
        %v2658 = vunpack.c.l.b16 %v2152
        %v2659 = vunpack.c.h.b16 %v2152
        %v2660 = vunpack.c.l.b16 %v2153
        %v2661 = vunpack.c.h.b16 %v2153
        %v2662 = vunpack.c.l.b16 %v2154
        %v2663 = vunpack.c.h.b16 %v2154
        %v2664 = vunpack.c.l.b16 %v2155
        %v2665 = vunpack.c.h.b16 %v2155
        %v2666 = vunpack.c.l.b16 %v2156
        %v2667 = vunpack.c.h.b16 %v2156
        %v2668 = vunpack.c.l.b16 %v2157
        %v2669 = vunpack.c.h.b16 %v2157
        %v2670 = vunpack.c.l.b16 %v2158
        %v2671 = vunpack.c.h.b16 %v2158
        %v2672 = vunpack.c.l.b16 %v2159
        %v2673 = vunpack.c.h.b16 %v2159
        %v2674 = vunpack.c.l.b16 %v2160
        %v2675 = vunpack.c.h.b16 %v2160
        %v2676 = vunpack.c.l.b16 %v2161
        %v2677 = vunpack.c.h.b16 %v2161
        %v2678 = vunpack.c.l.b16 %v2162
        %v2679 = vunpack.c.h.b16 %v2162
        %v2680 = vunpack.c.l.b16 %v2163
        %v2681 = vunpack.c.h.b16 %v2163
        %v2682 = vunpack.c.l.b16 %v2164
        %v2683 = vunpack.c.h.b16 %v2164
        %v2684 = vunpack.c.l.b16 %v2165
        %v2685 = vunpack.c.h.b16 %v2165
        %v2686 = vunpack.c.l.b16 %v2166
        %v2687 = vunpack.c.h.b16 %v2166
        %v2688 = vunpack.c.l.b16 %v2167
        %v2689 = vunpack.c.h.b16 %v2167
        %v2690 = vunpack.c.l.b16 %v2168
        %v2691 = vunpack.c.h.b16 %v2168
        %v2692 = vunpack.c.l.b16 %v2169
        %v2693 = vunpack.c.h.b16 %v2169
        %v2694 = vunpack.c.l.b16 %v2170
        %v2695 = vunpack.c.h.b16 %v2170
        %v2696 = vunpack.c.l.b16 %v2171
        %v2697 = vunpack.c.h.b16 %v2171
        %v2698 = vunpack.c.l.b16 %v2172
        %v2699 = vunpack.c.h.b16 %v2172
        %v2700 = vunpack.c.l.b16 %v2173
        %v2701 = vunpack.c.h.b16 %v2173
        %v2702 = vunpack.c.l.b16 %v2174
        %v2703 = vunpack.c.h.b16 %v2174
        %v2704 = vunpack.c.l.b16 %v2175
        %v2705 = vunpack.c.h.b16 %v2175
        %v2706 = vunpack.c.l.b16 %v2176
        %v2707 = vunpack.c.h.b16 %v2176
        %v2708 = vunpack.c.l.b16 %v2177
        %v2709 = vunpack.c.h.b16 %v2177
        %v2710 = vunpack.c.l.b16 %v2178
        %v2711 = vunpack.c.h.b16 %v2178
        %v2712 = vunpack.c.l.b16 %v2179
        %v2713 = vunpack.c.h.b16 %v2179
        %v2714 = vpack.c.b16 %v2404, %v2394
        %v2715 = vpack.c.b16 %v2405, %v2395
        %v2716 = vpack.c.b16 %v2406, %v2396
        %v2717 = vpack.c.b16 %v2407, %v2397
        %v2718 = vpack.c.b16 %v2408, %v2398
        %v2719 = vpack.c.b16 %v2409, %v2399
        %v2720 = vpack.c.b16 %v2410, %v2400
        %v2721 = vpack.c.b16 %v2411, %v2401
        %v2722 = vpack.c.b16 %v2412, %v2402
        %v2723 = vpack.c.b16 %v2413, %v2403
        %v2724 = vpack.c.b16 %v2424, %v2414
        %v2725 = vpack.c.b16 %v2425, %v2415
        %v2726 = vpack.c.b16 %v2426, %v2416
        %v2727 = vpack.c.b16 %v2427, %v2417
        %v2728 = vpack.c.b16 %v2428, %v2418
        %v2729 = vpack.c.b16 %v2429, %v2419
        %v2730 = vpack.c.b16 %v2430, %v2420
        %v2731 = vpack.c.b16 %v2431, %v2421
        %v2732 = vpack.c.b16 %v2432, %v2422
        %v2733 = vpack.c.b16 %v2433, %v2423
        %v2734 = vpack.c.b16 %v2444, %v2434
        %v2735 = vpack.c.b16 %v2445, %v2435
        %v2736 = vpack.c.b16 %v2446, %v2436
        %v2737 = vpack.c.b16 %v2447, %v2437
        %v2738 = vpack.c.b16 %v2448, %v2438
        %v2739 = vpack.c.b16 %v2449, %v2439
        %v2740 = vpack.c.b16 %v2450, %v2440
        %v2741 = vpack.c.b16 %v2451, %v2441
        %v2742 = vpack.c.b16 %v2452, %v2442
        %v2743 = vpack.c.b16 %v2453, %v2443
        %v2744 = vpack.c.b16 %v2464, %v2454
        %v2745 = vpack.c.b16 %v2465, %v2455
        %v2746 = vpack.c.b16 %v2466, %v2456
        %v2747 = vpack.c.b16 %v2467, %v2457
        %v2748 = vpack.c.b16 %v2468, %v2458
        %v2749 = vpack.c.b16 %v2469, %v2459
        %v2750 = vpack.c.b16 %v2470, %v2460
        %v2751 = vpack.c.b16 %v2471, %v2461
        %v2752 = vpack.c.b16 %v2472, %v2462
        %v2753 = vpack.c.b16 %v2473, %v2463
        %v2754 = vpack.c.b16 %v2484, %v2474
        %v2755 = vpack.c.b16 %v2485, %v2475
        %v2756 = vpack.c.b16 %v2486, %v2476
        %v2757 = vpack.c.b16 %v2487, %v2477
        %v2758 = vpack.c.b16 %v2488, %v2478
        %v2759 = vpack.c.b16 %v2489, %v2479
        %v2760 = vpack.c.b16 %v2490, %v2480
        %v2761 = vpack.c.b16 %v2491, %v2481
        %v2762 = vpack.c.b16 %v2492, %v2482
        %v2763 = vpack.c.b16 %v2493, %v2483
        %v2764 = vpack.c.b16 %v2504, %v2494
        %v2765 = vpack.c.b16 %v2505, %v2495
        %v2766 = vpack.c.b16 %v2506, %v2496
        %v2767 = vpack.c.b16 %v2507, %v2497
        %v2768 = vpack.c.b16 %v2508, %v2498
        %v2769 = vpack.c.b16 %v2509, %v2499
        %v2770 = vpack.c.b16 %v2510, %v2500
        %v2771 = vpack.c.b16 %v2511, %v2501
        %v2772 = vpack.c.b16 %v2512, %v2502
        %v2773 = vpack.c.b16 %v2513, %v2503
        %v2774 = vpack.c.b16 %v2524, %v2514
        %v2775 = vpack.c.b16 %v2525, %v2515
        %v2776 = vpack.c.b16 %v2526, %v2516
        %v2777 = vpack.c.b16 %v2527, %v2517
        %v2778 = vpack.c.b16 %v2528, %v2518
        %v2779 = vpack.c.b16 %v2529, %v2519
        %v2780 = vpack.c.b16 %v2530, %v2520
        %v2781 = vpack.c.b16 %v2531, %v2521
        %v2782 = vpack.c.b16 %v2532, %v2522
        %v2783 = vpack.c.b16 %v2533, %v2523
        %v2784 = vpack.c.b16 %v2544, %v2534
        %v2785 = vpack.c.b16 %v2545, %v2535
        %v2786 = vpack.c.b16 %v2546, %v2536
        %v2787 = vpack.c.b16 %v2547, %v2537
        %v2788 = vpack.c.b16 %v2548, %v2538
        %v2789 = vpack.c.b16 %v2549, %v2539
        %v2790 = vpack.c.b16 %v2550, %v2540
        %v2791 = vpack.c.b16 %v2551, %v2541
        %v2792 = vpack.c.b16 %v2552, %v2542
        %v2793 = vpack.c.b16 %v2553, %v2543
        %v2794 = vpack.c.b16 %v2564, %v2554
        %v2795 = vpack.c.b16 %v2565, %v2555
        %v2796 = vpack.c.b16 %v2566, %v2556
        %v2797 = vpack.c.b16 %v2567, %v2557
        %v2798 = vpack.c.b16 %v2568, %v2558
        %v2799 = vpack.c.b16 %v2569, %v2559
        %v2800 = vpack.c.b16 %v2570, %v2560
        %v2801 = vpack.c.b16 %v2571, %v2561
        %v2802 = vpack.c.b16 %v2572, %v2562
        %v2803 = vpack.c.b16 %v2573, %v2563
        %v2804 = vpack.c.b16 %v2584, %v2574
        %v2805 = vpack.c.b16 %v2585, %v2575
        %v2806 = vpack.c.b16 %v2586, %v2576
        %v2807 = vpack.c.b16 %v2587, %v2577
        %v2808 = vpack.c.b16 %v2588, %v2578
        %v2809 = vpack.c.b16 %v2589, %v2579
        %v2810 = vpack.c.b16 %v2590, %v2580
        %v2811 = vpack.c.b16 %v2591, %v2581
        %v2812 = vpack.c.b16 %v2592, %v2582
        %v2813 = vpack.c.b16 %v2593, %v2583
        %v2814 = vpack.c.b16 %v2604, %v2594
        %v2815 = vpack.c.b16 %v2605, %v2595
        %v2816 = vpack.c.b16 %v2606, %v2596
        %v2817 = vpack.c.b16 %v2607, %v2597
        %v2818 = vpack.c.b16 %v2608, %v2598
        %v2819 = vpack.c.b16 %v2609, %v2599
        %v2820 = vpack.c.b16 %v2610, %v2600
        %v2821 = vpack.c.b16 %v2611, %v2601
        %v2822 = vpack.c.b16 %v2612, %v2602
        %v2823 = vpack.c.b16 %v2613, %v2603
        %v2824 = vpack.c.b16 %v2624, %v2614
        %v2825 = vpack.c.b16 %v2625, %v2615
        %v2826 = vpack.c.b16 %v2626, %v2616
        %v2827 = vpack.c.b16 %v2627, %v2617
        %v2828 = vpack.c.b16 %v2628, %v2618
        %v2829 = vpack.c.b16 %v2629, %v2619
        %v2830 = vpack.c.b16 %v2630, %v2620
        %v2831 = vpack.c.b16 %v2631, %v2621
        %v2832 = vpack.c.b16 %v2632, %v2622
        %v2833 = vpack.c.b16 %v2633, %v2623
        %v2834 = vpack.c.b16 %v2644, %v2634
        %v2835 = vpack.c.b16 %v2645, %v2635
        %v2836 = vpack.c.b16 %v2646, %v2636
        %v2837 = vpack.c.b16 %v2647, %v2637
        %v2838 = vpack.c.b16 %v2648, %v2638
        %v2839 = vpack.c.b16 %v2649, %v2639
        %v2840 = vpack.c.b16 %v2650, %v2640
        %v2841 = vpack.c.b16 %v2651, %v2641
        %v2842 = vpack.c.b16 %v2652, %v2642
        %v2843 = vpack.c.b16 %v2653, %v2643
        %v2844 = vpack.c.b16 %v2664, %v2654
        %v2845 = vpack.c.b16 %v2665, %v2655
        %v2846 = vpack.c.b16 %v2666, %v2656
        %v2847 = vpack.c.b16 %v2667, %v2657
        %v2848 = vpack.c.b16 %v2668, %v2658
        %v2849 = vpack.c.b16 %v2669, %v2659
        %v2850 = vpack.c.b16 %v2670, %v2660
        %v2851 = vpack.c.b16 %v2671, %v2661
        %v2852 = vpack.c.b16 %v2672, %v2662
        %v2853 = vpack.c.b16 %v2673, %v2663
        %v2854 = vpack.c.b16 %v2684, %v2674
        %v2855 = vpack.c.b16 %v2685, %v2675
        %v2856 = vpack.c.b16 %v2686, %v2676
        %v2857 = vpack.c.b16 %v2687, %v2677
        %v2858 = vpack.c.b16 %v2688, %v2678
        %v2859 = vpack.c.b16 %v2689, %v2679
        %v2860 = vpack.c.b16 %v2690, %v2680
        %v2861 = vpack.c.b16 %v2691, %v2681
        %v2862 = vpack.c.b16 %v2692, %v2682
        %v2863 = vpack.c.b16 %v2693, %v2683
        %v2864 = vpack.c.b16 %v2704, %v2694
        %v2865 = vpack.c.b16 %v2705, %v2695
        %v2866 = vpack.c.b16 %v2706, %v2696
        %v2867 = vpack.c.b16 %v2707, %v2697
        %v2868 = vpack.c.b16 %v2708, %v2698
        %v2869 = vpack.c.b16 %v2709, %v2699
        %v2870 = vpack.c.b16 %v2710, %v2700
        %v2871 = vpack.c.b16 %v2711, %v2701
        %v2872 = vpack.c.b16 %v2712, %v2702
        %v2873 = vpack.c.b16 %v2713, %v2703
        %3034 = vmatprep.subr.bf16.mxu0 %v2785
        %3035 = vmatpush1.bf16.msra.mxu0 %v2784
        %3036 = vmatprep.subr.bf16.mxu0 %v2775
        %3037 = vmatpush1.bf16.msra.mxu0 %v2774
        %3038 = vmatprep.subr.bf16.mxu0 %v2765
        %3039 = vmatpush1.bf16.msra.mxu0 %v2764
        %3040 = vmatprep.subr.bf16.mxu0 %v2755
        %3041 = vmatpush1.bf16.msra.mxu0 %v2754
        %3042 = vmatprep.subr.bf16.mxu0 %v2745
        %3043 = vmatpush1.bf16.msra.mxu0 %v2744
        %3044 = vmatprep.subr.bf16.mxu0 %v2735
        %3045 = vmatpush1.bf16.msra.mxu0 %v2734
        %3046 = vmatprep.subr.bf16.mxu0 %v2725
        %3047 = vmatpush1.bf16.msra.mxu0 %v2724
        %3048 = vmatprep.subr.bf16.mxu0 %v2715
        %3049 = vmatpush1.bf16.msra.mxu0 %v2714
        %3050 = vmatprep.subr.bf16.mxu0 %v2865
        %3051 = vmatpush2.bf16.msra.mxu0 %v2864
        %3052 = vmatprep.subr.bf16.mxu0 %v2855
        %3053 = vmatpush2.bf16.msra.mxu0 %v2854
        %3054 = vmatprep.subr.bf16.mxu0 %v2845
        %3055 = vmatpush2.bf16.msra.mxu0 %v2844
        %3056 = vmatprep.subr.bf16.mxu0 %v2835
        %3057 = vmatpush2.bf16.msra.mxu0 %v2834
        %3058 = vmatprep.subr.bf16.mxu0 %v2825
        %3059 = vmatpush2.bf16.msra.mxu0 %v2824
        %3060 = vmatprep.subr.bf16.mxu0 %v2815
        %3061 = vmatpush2.bf16.msra.mxu0 %v2814
        %3062 = vmatprep.subr.bf16.mxu0 %v2805
        %3063 = vmatpush2.bf16.msra.mxu0 %v2804
        %3064 = vmatprep.subr.bf16.mxu0 %v2795
        %3065 = vmatpush2.bf16.msra.mxu0 %v2794
        %3066 = vmatprep.mubr.bf16.mxu0 %v2019
        %3067 = vmatmul.mubr.bf16.gmra.mxu0 %v2018
        %v3068 = vpop.f32.mrf.mxu0
        %v3069 = vadd.f32 %v2187, %v3068
        %v3070 = vpop.f32.mrf.mxu0
        %v3071 = vadd.f32 %v2191, %v3070
        %v3072 = vpop.f32.mrf.mxu0
        %v3073 = vpop.f32.mrf.mxu0
        %3074 = vdwg.mxu0
        %3075 = vmatprep.subr.bf16.mxu0 %v2787
        %3076 = vmatpush1.bf16.msra.mxu0 %v2786
        %3077 = vmatprep.subr.bf16.mxu0 %v2777
        %3078 = vmatpush1.bf16.msra.mxu0 %v2776
        %3079 = vmatprep.subr.bf16.mxu0 %v2767
        %3080 = vmatpush1.bf16.msra.mxu0 %v2766
        %3081 = vmatprep.subr.bf16.mxu0 %v2757
        %3082 = vmatpush1.bf16.msra.mxu0 %v2756
        %3083 = vmatprep.subr.bf16.mxu0 %v2747
        %3084 = vmatpush1.bf16.msra.mxu0 %v2746
        %3085 = vmatprep.subr.bf16.mxu0 %v2737
        %3086 = vmatpush1.bf16.msra.mxu0 %v2736
        %3087 = vmatprep.subr.bf16.mxu0 %v2727
        %3088 = vmatpush1.bf16.msra.mxu0 %v2726
        %3089 = vmatprep.subr.bf16.mxu0 %v2717
        %3090 = vmatpush1.bf16.msra.mxu0 %v2716
        %3091 = vmatprep.subr.bf16.mxu0 %v2867
        %3092 = vmatpush2.bf16.msra.mxu0 %v2866
        %3093 = vmatprep.subr.bf16.mxu0 %v2857
        %3094 = vmatpush2.bf16.msra.mxu0 %v2856
        %3095 = vmatprep.subr.bf16.mxu0 %v2847
        %3096 = vmatpush2.bf16.msra.mxu0 %v2846
        %3097 = vmatprep.subr.bf16.mxu0 %v2837
        %3098 = vmatpush2.bf16.msra.mxu0 %v2836
        %3099 = vmatprep.subr.bf16.mxu0 %v2827
        %3100 = vmatpush2.bf16.msra.mxu0 %v2826
        %3101 = vmatprep.subr.bf16.mxu0 %v2817
        %3102 = vmatpush2.bf16.msra.mxu0 %v2816
        %3103 = vmatprep.subr.bf16.mxu0 %v2807
        %3104 = vmatpush2.bf16.msra.mxu0 %v2806
        %3105 = vmatprep.subr.bf16.mxu0 %v2797
        %3106 = vmatpush2.bf16.msra.mxu0 %v2796
        %3107 = vmatprep.mubr.bf16.mxu0 %v2019
        %3108 = vmatmul.mubr.bf16.gmra.mxu0 %v2018
        %v3109 = vpop.f32.mrf.mxu0
        %v3110 = vadd.f32 %v2195, %v3109
        %v3111 = vpop.f32.mrf.mxu0
        %v3112 = vadd.f32 %v2199, %v3111
        %v3113 = vpop.f32.mrf.mxu0
        %v3114 = vpop.f32.mrf.mxu0
        %3115 = vdwg.mxu0
        %3116 = vmatprep.subr.bf16.mxu0 %v2789
        %3117 = vmatpush1.bf16.msra.mxu0 %v2788
        %3118 = vmatprep.subr.bf16.mxu0 %v2779
        %3119 = vmatpush1.bf16.msra.mxu0 %v2778
        %3120 = vmatprep.subr.bf16.mxu0 %v2769
        %3121 = vmatpush1.bf16.msra.mxu0 %v2768
        %3122 = vmatprep.subr.bf16.mxu0 %v2759
        %3123 = vmatpush1.bf16.msra.mxu0 %v2758
        %3124 = vmatprep.subr.bf16.mxu0 %v2749
        %3125 = vmatpush1.bf16.msra.mxu0 %v2748
        %3126 = vmatprep.subr.bf16.mxu0 %v2739
        %3127 = vmatpush1.bf16.msra.mxu0 %v2738
        %3128 = vmatprep.subr.bf16.mxu0 %v2729
        %3129 = vmatpush1.bf16.msra.mxu0 %v2728
        %3130 = vmatprep.subr.bf16.mxu0 %v2719
        %3131 = vmatpush1.bf16.msra.mxu0 %v2718
        %3132 = vmatprep.subr.bf16.mxu0 %v2869
        %3133 = vmatpush2.bf16.msra.mxu0 %v2868
        %3134 = vmatprep.subr.bf16.mxu0 %v2859
        %3135 = vmatpush2.bf16.msra.mxu0 %v2858
        %3136 = vmatprep.subr.bf16.mxu0 %v2849
        %3137 = vmatpush2.bf16.msra.mxu0 %v2848
        %3138 = vmatprep.subr.bf16.mxu0 %v2839
        %3139 = vmatpush2.bf16.msra.mxu0 %v2838
        %3140 = vmatprep.subr.bf16.mxu0 %v2829
        %3141 = vmatpush2.bf16.msra.mxu0 %v2828
        %3142 = vmatprep.subr.bf16.mxu0 %v2819
        %3143 = vmatpush2.bf16.msra.mxu0 %v2818
        %3144 = vmatprep.subr.bf16.mxu0 %v2809
        %3145 = vmatpush2.bf16.msra.mxu0 %v2808
        %3146 = vmatprep.subr.bf16.mxu0 %v2799
        %3147 = vmatpush2.bf16.msra.mxu0 %v2798
        %3148 = vmatprep.mubr.bf16.mxu0 %v2019
        %3149 = vmatmul.mubr.bf16.gmra.mxu0 %v2018
        %v3150 = vpop.f32.mrf.mxu0
        %v3151 = vadd.f32 %v2203, %v3150
        %v3152 = vpop.f32.mrf.mxu0
        %v3153 = vadd.f32 %v2207, %v3152
        %v3154 = vpop.f32.mrf.mxu0
        %v3155 = vpop.f32.mrf.mxu0
        %3156 = vdwg.mxu0
        %3157 = vmatprep.subr.bf16.mxu0 %v2791
        %3158 = vmatpush1.bf16.msra.mxu0 %v2790
        %3159 = vmatprep.subr.bf16.mxu0 %v2781
        %3160 = vmatpush1.bf16.msra.mxu0 %v2780
        %3161 = vmatprep.subr.bf16.mxu0 %v2771
        %3162 = vmatpush1.bf16.msra.mxu0 %v2770
        %3163 = vmatprep.subr.bf16.mxu0 %v2761
        %3164 = vmatpush1.bf16.msra.mxu0 %v2760
        %3165 = vmatprep.subr.bf16.mxu0 %v2751
        %3166 = vmatpush1.bf16.msra.mxu0 %v2750
        %3167 = vmatprep.subr.bf16.mxu0 %v2741
        %3168 = vmatpush1.bf16.msra.mxu0 %v2740
        %3169 = vmatprep.subr.bf16.mxu0 %v2731
        %3170 = vmatpush1.bf16.msra.mxu0 %v2730
        %3171 = vmatprep.subr.bf16.mxu0 %v2721
        %3172 = vmatpush1.bf16.msra.mxu0 %v2720
        %3173 = vmatprep.subr.bf16.mxu0 %v2871
        %3174 = vmatpush2.bf16.msra.mxu0 %v2870
        %3175 = vmatprep.subr.bf16.mxu0 %v2861
        %3176 = vmatpush2.bf16.msra.mxu0 %v2860
        %3177 = vmatprep.subr.bf16.mxu0 %v2851
        %3178 = vmatpush2.bf16.msra.mxu0 %v2850
        %3179 = vmatprep.subr.bf16.mxu0 %v2841
        %3180 = vmatpush2.bf16.msra.mxu0 %v2840
        %3181 = vmatprep.subr.bf16.mxu0 %v2831
        %3182 = vmatpush2.bf16.msra.mxu0 %v2830
        %3183 = vmatprep.subr.bf16.mxu0 %v2821
        %3184 = vmatpush2.bf16.msra.mxu0 %v2820
        %3185 = vmatprep.subr.bf16.mxu0 %v2811
        %3186 = vmatpush2.bf16.msra.mxu0 %v2810
        %3187 = vmatprep.subr.bf16.mxu0 %v2801
        %3188 = vmatpush2.bf16.msra.mxu0 %v2800
        %3189 = vmatprep.mubr.bf16.mxu0 %v2019
        %3190 = vmatmul.mubr.bf16.gmra.mxu0 %v2018
        %v3191 = vpop.f32.mrf.mxu0
        %v3192 = vadd.f32 %v2211, %v3191
        %v3193 = vpop.f32.mrf.mxu0
        %v3194 = vadd.f32 %v2215, %v3193
        %v3195 = vpop.f32.mrf.mxu0
        %v3196 = vpop.f32.mrf.mxu0
        %3197 = vdwg.mxu0
        %3198 = vmatprep.subr.bf16.mxu0 %v2793
        %3199 = vmatpush1.bf16.msra.mxu0 %v2792
        %3200 = vmatprep.subr.bf16.mxu0 %v2783
        %3201 = vmatpush1.bf16.msra.mxu0 %v2782
        %3202 = vmatprep.subr.bf16.mxu0 %v2773
        %3203 = vmatpush1.bf16.msra.mxu0 %v2772
        %3204 = vmatprep.subr.bf16.mxu0 %v2763
        %3205 = vmatpush1.bf16.msra.mxu0 %v2762
        %3206 = vmatprep.subr.bf16.mxu0 %v2753
        %3207 = vmatpush1.bf16.msra.mxu0 %v2752
        %3208 = vmatprep.subr.bf16.mxu0 %v2743
        %3209 = vmatpush1.bf16.msra.mxu0 %v2742
        %3210 = vmatprep.subr.bf16.mxu0 %v2733
        %3211 = vmatpush1.bf16.msra.mxu0 %v2732
        %3212 = vmatprep.subr.bf16.mxu0 %v2723
        %3213 = vmatpush1.bf16.msra.mxu0 %v2722
        %3214 = vmatprep.subr.bf16.mxu0 %v2873
        %3215 = vmatpush2.bf16.msra.mxu0 %v2872
        %3216 = vmatprep.subr.bf16.mxu0 %v2863
        %3217 = vmatpush2.bf16.msra.mxu0 %v2862
        %3218 = vmatprep.subr.bf16.mxu0 %v2853
        %3219 = vmatpush2.bf16.msra.mxu0 %v2852
        %3220 = vmatprep.subr.bf16.mxu0 %v2843
        %3221 = vmatpush2.bf16.msra.mxu0 %v2842
        %3222 = vmatprep.subr.bf16.mxu0 %v2833
        %3223 = vmatpush2.bf16.msra.mxu0 %v2832
        %3224 = vmatprep.subr.bf16.mxu0 %v2823
        %3225 = vmatpush2.bf16.msra.mxu0 %v2822
        %3226 = vmatprep.subr.bf16.mxu0 %v2813
        %3227 = vmatpush2.bf16.msra.mxu0 %v2812
        %3228 = vmatprep.subr.bf16.mxu0 %v2803
        %3229 = vmatpush2.bf16.msra.mxu0 %v2802
        %3230 = vmatprep.mubr.bf16.mxu0 %v2019
        %3231 = vmatmul.mubr.bf16.gmra.mxu0 %v2018
        %v3232 = vpop.f32.mrf.mxu0
        %v3233 = vadd.f32 %v2219, %v3232
        %v3234 = vpop.f32.mrf.mxu0
        %v3235 = vadd.f32 %v2223, %v3234
        %v3236 = vpop.f32.mrf.mxu0
        %v3237 = vpop.f32.mrf.mxu0
        %3238 = vdwg.mxu0
        %v3239 = vmax.f32 %v3069, 0.0
        %v3240 = vmax.f32 %v3071, 0.0
        %v3241 = vmax.f32 %v3110, 0.0
        %v3242 = vmax.f32 %v3112, 0.0
        %v3243 = vmax.f32 %v3151, 0.0
        %v3244 = vmax.f32 %v3153, 0.0
        %v3245 = vmax.f32 %v3192, 0.0
        %v3246 = vmax.f32 %v3194, 0.0
        %v3247 = vmax.f32 %v3233, 0.0
        %v3248 = vmax.f32 %v3235, 0.0
        %v3249 = vpack.c.bf16 %v3239, %v3239
        %v3250 = vpack.c.bf16 %v3240, %v3240
        %v3251 = vpack.c.bf16 %v3241, %v3241
        %v3252 = vpack.c.bf16 %v3242, %v3242
        %v3253 = vpack.c.bf16 %v3243, %v3243
        %v3254 = vpack.c.bf16 %v3244, %v3244
        %v3255 = vpack.c.bf16 %v3245, %v3245
        %v3256 = vpack.c.bf16 %v3246, %v3246
        %v3257 = vpack.c.bf16 %v3247, %v3247
        %v3258 = vpack.c.bf16 %v3248, %v3248
        %v3259 = vld [vmem:[%s568] sm:$0xf]
        %v3260 = vld [vmem:[%s568 + $0x4] sm:$0xf]
        %v3261 = vld [vmem:[%s568 + $0x8] sm:$0xf]
        %v3262 = vld [vmem:[%s568 + $0xc] sm:$0xf]
        %v3263 = vld [vmem:[%s568 + $0x10] sm:$0xf]
        %v3264 = vld [vmem:[%s568 + $0x14] sm:$0xf]
        %v3265 = vld [vmem:[%s568 + $0x18] sm:$0xf]
        %v3266 = vld [vmem:[%s568 + $0x1c] sm:$0xf]
        %v3267 = vld [vmem:[%s568 + $0x20] sm:$0xf]
        %v3268 = vld [vmem:[%s568 + $0x24] sm:$0xf]
        %v3269 = vld [vmem:[%s568 + $0x28] sm:$0xf]
        %v3270 = vld [vmem:[%s568 + $0x2c] sm:$0xf]
        %v3271 = vld [vmem:[%s568 + $0x30] sm:$0xf]
        %v3272 = vld [vmem:[%s568 + $0x34] sm:$0xf]
        %v3273 = vld [vmem:[%s568 + $0x38] sm:$0xf]
        %v3274 = vld [vmem:[%s568 + $0x3c] sm:$0xf]
        %v3275 = vld [vmem:[%s568 + $0x40] sm:$0xf]
        %v3276 = vld [vmem:[%s568 + $0x44] sm:$0xf]
        %v3277 = vld [vmem:[%s568 + $0x48] sm:$0xf]
        %v3278 = vld [vmem:[%s568 + $0x4c] sm:$0xf]
        %v3279 = vld [vmem:[%s568 + $0x50] sm:$0xf]
        %v3280 = vld [vmem:[%s568 + $0x54] sm:$0xf]
        %v3281 = vld [vmem:[%s568 + $0x58] sm:$0xf]
        %v3282 = vld [vmem:[%s568 + $0x5c] sm:$0xf]
        %v3283 = vld [vmem:[%s568 + $0x60] sm:$0xf]
        %v3284 = vld [vmem:[%s568 + $0x64] sm:$0xf]
        %v3285 = vld [vmem:[%s568 + $0x68] sm:$0xf]
        %v3286 = vld [vmem:[%s568 + $0x6c] sm:$0xf]
        %v3287 = vld [vmem:[%s568 + $0x70] sm:$0xf]
        %v3288 = vld [vmem:[%s568 + $0x74] sm:$0xf]
        %v3289 = vld [vmem:[%s568 + $0x78] sm:$0xf]
        %v3290 = vld [vmem:[%s568 + $0x7c] sm:$0xf]
        %v3291 = vld [vmem:[%s568 + $0x80] sm:$0xf]
        %v3292 = vld [vmem:[%s568 + $0x84] sm:$0xf]
        %v3293 = vld [vmem:[%s568 + $0x88] sm:$0xf]
        %v3294 = vld [vmem:[%s568 + $0x8c] sm:$0xf]
        %v3295 = vld [vmem:[%s568 + $0x90] sm:$0xf]
        %v3296 = vld [vmem:[%s568 + $0x94] sm:$0xf]
        %v3297 = vld [vmem:[%s568 + $0x98] sm:$0xf]
        %v3298 = vld [vmem:[%s568 + $0x9c] sm:$0xf]
        %v3299 = vld [vmem:[%s568 + $0xa0] sm:$0xf]
        %v3300 = vld [vmem:[%s568 + $0xa4] sm:$0xf]
        %v3301 = vld [vmem:[%s568 + $0xa8] sm:$0xf]
        %v3302 = vld [vmem:[%s568 + $0xac] sm:$0xf]
        %v3303 = vld [vmem:[%s568 + $0xb0] sm:$0xf]
        %v3304 = vld [vmem:[%s568 + $0xb4] sm:$0xf]
        %v3305 = vld [vmem:[%s568 + $0xb8] sm:$0xf]
        %v3306 = vld [vmem:[%s568 + $0xbc] sm:$0xf]
        %v3307 = vld [vmem:[%s568 + $0xc0] sm:$0xf]
        %v3308 = vld [vmem:[%s568 + $0xc4] sm:$0xf]
        %v3309 = vld [vmem:[%s568 + $0xc8] sm:$0xf]
        %v3310 = vld [vmem:[%s568 + $0xcc] sm:$0xf]
        %v3311 = vld [vmem:[%s568 + $0xd0] sm:$0xf]
        %v3312 = vld [vmem:[%s568 + $0xd4] sm:$0xf]
        %v3313 = vld [vmem:[%s568 + $0xd8] sm:$0xf]
        %v3314 = vld [vmem:[%s568 + $0xdc] sm:$0xf]
        %v3315 = vld [vmem:[%s568 + $0xe0] sm:$0xf]
        %v3316 = vld [vmem:[%s568 + $0xe4] sm:$0xf]
        %v3317 = vld [vmem:[%s568 + $0xe8] sm:$0xf]
        %v3318 = vld [vmem:[%s568 + $0xec] sm:$0xf]
        %v3319 = vld [vmem:[%s568 + $0xf0] sm:$0xf]
        %v3320 = vld [vmem:[%s568 + $0xf4] sm:$0xf]
        %v3321 = vld [vmem:[%s568 + $0xf8] sm:$0xf]
        %v3322 = vld [vmem:[%s568 + $0xfc] sm:$0xf]
        %v3323 = vld [vmem:[%s568 + $0x100] sm:$0xf]
        %v3324 = vld [vmem:[%s568 + $0x104] sm:$0xf]
        %v3325 = vld [vmem:[%s568 + $0x108] sm:$0xf]
        %v3326 = vld [vmem:[%s568 + $0x10c] sm:$0xf]
        %v3327 = vld [vmem:[%s568 + $0x110] sm:$0xf]
        %v3328 = vld [vmem:[%s568 + $0x114] sm:$0xf]
        %v3329 = vld [vmem:[%s568 + $0x118] sm:$0xf]
        %v3330 = vld [vmem:[%s568 + $0x11c] sm:$0xf]
        %v3331 = vld [vmem:[%s568 + $0x120] sm:$0xf]
        %v3332 = vld [vmem:[%s568 + $0x124] sm:$0xf]
        %v3333 = vld [vmem:[%s568 + $0x128] sm:$0xf]
        %v3334 = vld [vmem:[%s568 + $0x12c] sm:$0xf]
        %v3335 = vld [vmem:[%s568 + $0x130] sm:$0xf]
        %v3336 = vld [vmem:[%s568 + $0x134] sm:$0xf]
        %v3337 = vld [vmem:[%s568 + $0x138] sm:$0xf]
        %v3338 = vld [vmem:[%s568 + $0x13c] sm:$0xf]
        %v3339 = vld [vmem:[%s568 + $0x140] sm:$0xf]
        %v3340 = vld [vmem:[%s568 + $0x144] sm:$0xf]
        %v3341 = vld [vmem:[%s568 + $0x148] sm:$0xf]
        %v3342 = vld [vmem:[%s568 + $0x14c] sm:$0xf]
        %v3343 = vld [vmem:[%s568 + $0x150] sm:$0xf]
        %v3344 = vld [vmem:[%s568 + $0x154] sm:$0xf]
        %v3345 = vld [vmem:[%s568 + $0x158] sm:$0xf]
        %v3346 = vld [vmem:[%s568 + $0x15c] sm:$0xf]
        %v3347 = vld [vmem:[%s568 + $0x160] sm:$0xf]
        %v3348 = vld [vmem:[%s568 + $0x164] sm:$0xf]
        %v3349 = vld [vmem:[%s568 + $0x168] sm:$0xf]
        %v3350 = vld [vmem:[%s568 + $0x16c] sm:$0xf]
        %v3351 = vld [vmem:[%s568 + $0x170] sm:$0xf]
        %v3352 = vld [vmem:[%s568 + $0x174] sm:$0xf]
        %v3353 = vld [vmem:[%s568 + $0x178] sm:$0xf]
        %v3354 = vld [vmem:[%s568 + $0x17c] sm:$0xf]
        %v3355 = vld [vmem:[%s568 + $0x180] sm:$0xf]
        %v3356 = vld [vmem:[%s568 + $0x184] sm:$0xf]
        %v3357 = vld [vmem:[%s568 + $0x188] sm:$0xf]
        %v3358 = vld [vmem:[%s568 + $0x18c] sm:$0xf]
        %v3359 = vld [vmem:[%s568 + $0x190] sm:$0xf]
        %v3360 = vld [vmem:[%s568 + $0x194] sm:$0xf]
        %v3361 = vld [vmem:[%s568 + $0x198] sm:$0xf]
        %v3362 = vld [vmem:[%s568 + $0x19c] sm:$0xf]
        %v3363 = vld [vmem:[%s568 + $0x1a0] sm:$0xf]
        %v3364 = vld [vmem:[%s568 + $0x1a4] sm:$0xf]
        %v3365 = vld [vmem:[%s568 + $0x1a8] sm:$0xf]
        %v3366 = vld [vmem:[%s568 + $0x1ac] sm:$0xf]
        %v3367 = vld [vmem:[%s568 + $0x1b0] sm:$0xf]
        %v3368 = vld [vmem:[%s568 + $0x1b4] sm:$0xf]
        %v3369 = vld [vmem:[%s568 + $0x1b8] sm:$0xf]
        %v3370 = vld [vmem:[%s568 + $0x1bc] sm:$0xf]
        %v3371 = vld [vmem:[%s568 + $0x1c0] sm:$0xf]
        %v3372 = vld [vmem:[%s568 + $0x1c4] sm:$0xf]
        %v3373 = vld [vmem:[%s568 + $0x1c8] sm:$0xf]
        %v3374 = vld [vmem:[%s568 + $0x1cc] sm:$0xf]
        %v3375 = vld [vmem:[%s568 + $0x1d0] sm:$0xf]
        %v3376 = vld [vmem:[%s568 + $0x1d4] sm:$0xf]
        %v3377 = vld [vmem:[%s568 + $0x1d8] sm:$0xf]
        %v3378 = vld [vmem:[%s568 + $0x1dc] sm:$0xf]
        %v3379 = vld [vmem:[%s568 + $0x1e0] sm:$0xf]
        %v3380 = vld [vmem:[%s568 + $0x1e4] sm:$0xf]
        %v3381 = vld [vmem:[%s568 + $0x1e8] sm:$0xf]
        %v3382 = vld [vmem:[%s568 + $0x1ec] sm:$0xf]
        %v3383 = vld [vmem:[%s568 + $0x1f0] sm:$0xf]
        %v3384 = vld [vmem:[%s568 + $0x1f4] sm:$0xf]
        %v3385 = vld [vmem:[%s568 + $0x1f8] sm:$0xf]
        %v3386 = vld [vmem:[%s568 + $0x1fc] sm:$0xf]
        %v3387 = vld [vmem:[%s568 + $0x200] sm:$0xf]
        %v3388 = vld [vmem:[%s568 + $0x204] sm:$0xf]
        %v3389 = vld [vmem:[%s568 + $0x208] sm:$0xf]
        %v3390 = vld [vmem:[%s568 + $0x20c] sm:$0xf]
        %v3391 = vld [vmem:[%s568 + $0x210] sm:$0xf]
        %v3392 = vld [vmem:[%s568 + $0x214] sm:$0xf]
        %v3393 = vld [vmem:[%s568 + $0x218] sm:$0xf]
        %v3394 = vld [vmem:[%s568 + $0x21c] sm:$0xf]
        %v3395 = vld [vmem:[%s568 + $0x220] sm:$0xf]
        %v3396 = vld [vmem:[%s568 + $0x224] sm:$0xf]
        %v3397 = vld [vmem:[%s568 + $0x228] sm:$0xf]
        %v3398 = vld [vmem:[%s568 + $0x22c] sm:$0xf]
        %v3399 = vld [vmem:[%s568 + $0x230] sm:$0xf]
        %v3400 = vld [vmem:[%s568 + $0x234] sm:$0xf]
        %v3401 = vld [vmem:[%s568 + $0x238] sm:$0xf]
        %v3402 = vld [vmem:[%s568 + $0x23c] sm:$0xf]
        %v3403 = vld [vmem:[%s568 + $0x240] sm:$0xf]
        %v3404 = vld [vmem:[%s568 + $0x244] sm:$0xf]
        %v3405 = vld [vmem:[%s568 + $0x248] sm:$0xf]
        %v3406 = vld [vmem:[%s568 + $0x24c] sm:$0xf]
        %v3407 = vld [vmem:[%s568 + $0x250] sm:$0xf]
        %v3408 = vld [vmem:[%s568 + $0x254] sm:$0xf]
        %v3409 = vld [vmem:[%s568 + $0x258] sm:$0xf]
        %v3410 = vld [vmem:[%s568 + $0x25c] sm:$0xf]
        %v3411 = vld [vmem:[%s568 + $0x260] sm:$0xf]
        %v3412 = vld [vmem:[%s568 + $0x264] sm:$0xf]
        %v3413 = vld [vmem:[%s568 + $0x268] sm:$0xf]
        %v3414 = vld [vmem:[%s568 + $0x26c] sm:$0xf]
        %v3415 = vld [vmem:[%s568 + $0x270] sm:$0xf]
        %v3416 = vld [vmem:[%s568 + $0x274] sm:$0xf]
        %v3417 = vld [vmem:[%s568 + $0x278] sm:$0xf]
        %v3418 = vld [vmem:[%s568 + $0x27c] sm:$0xf]
        %v3419 = vld [vmem:[%s491] sm:$0x1]
        %v3421 = vlaneseq
        %v3422 = vshrl.u32 %v3421, 7
        %v3423 = vsub.s32 0, %v3422
        %v3424 = vrot.slane %v3419, %v3423
        %v3586 = vunpack.c.l.b16 %v3259
        %v3587 = vunpack.c.l.b16 %v3260
        %v3588 = vunpack.c.l.b16 %v3261
        %v3589 = vunpack.c.l.b16 %v3262
        %v3590 = vunpack.c.l.b16 %v3263
        %v3591 = vunpack.c.l.b16 %v3264
        %v3592 = vunpack.c.l.b16 %v3265
        %v3593 = vunpack.c.l.b16 %v3266
        %v3594 = vunpack.c.l.b16 %v3267
        %v3595 = vunpack.c.l.b16 %v3268
        %v3596 = vunpack.c.l.b16 %v3269
        %v3597 = vunpack.c.l.b16 %v3270
        %v3598 = vunpack.c.l.b16 %v3271
        %v3599 = vunpack.c.l.b16 %v3272
        %v3600 = vunpack.c.l.b16 %v3273
        %v3601 = vunpack.c.l.b16 %v3274
        %v3602 = vunpack.c.l.b16 %v3275
        %v3603 = vunpack.c.l.b16 %v3276
        %v3604 = vunpack.c.l.b16 %v3277
        %v3605 = vunpack.c.l.b16 %v3278
        %v3606 = vunpack.c.l.b16 %v3279
        %v3607 = vunpack.c.l.b16 %v3280
        %v3608 = vunpack.c.l.b16 %v3281
        %v3609 = vunpack.c.l.b16 %v3282
        %v3610 = vunpack.c.l.b16 %v3283
        %v3611 = vunpack.c.l.b16 %v3284
        %v3612 = vunpack.c.l.b16 %v3285
        %v3613 = vunpack.c.l.b16 %v3286
        %v3614 = vunpack.c.l.b16 %v3287
        %v3615 = vunpack.c.l.b16 %v3288
        %v3616 = vunpack.c.l.b16 %v3289
        %v3617 = vunpack.c.l.b16 %v3290
        %v3618 = vunpack.c.l.b16 %v3291
        %v3619 = vunpack.c.l.b16 %v3292
        %v3620 = vunpack.c.l.b16 %v3293
        %v3621 = vunpack.c.l.b16 %v3294
        %v3622 = vunpack.c.l.b16 %v3295
        %v3623 = vunpack.c.l.b16 %v3296
        %v3624 = vunpack.c.l.b16 %v3297
        %v3625 = vunpack.c.l.b16 %v3298
        %v3626 = vunpack.c.l.b16 %v3299
        %v3627 = vunpack.c.l.b16 %v3300
        %v3628 = vunpack.c.l.b16 %v3301
        %v3629 = vunpack.c.l.b16 %v3302
        %v3630 = vunpack.c.l.b16 %v3303
        %v3631 = vunpack.c.l.b16 %v3304
        %v3632 = vunpack.c.l.b16 %v3305
        %v3633 = vunpack.c.l.b16 %v3306
        %v3634 = vunpack.c.l.b16 %v3307
        %v3635 = vunpack.c.l.b16 %v3308
        %v3636 = vunpack.c.l.b16 %v3309
        %v3637 = vunpack.c.l.b16 %v3310
        %v3638 = vunpack.c.l.b16 %v3311
        %v3639 = vunpack.c.l.b16 %v3312
        %v3640 = vunpack.c.l.b16 %v3313
        %v3641 = vunpack.c.l.b16 %v3314
        %v3642 = vunpack.c.l.b16 %v3315
        %v3643 = vunpack.c.l.b16 %v3316
        %v3644 = vunpack.c.l.b16 %v3317
        %v3645 = vunpack.c.l.b16 %v3318
        %v3646 = vunpack.c.l.b16 %v3319
        %v3647 = vunpack.c.l.b16 %v3320
        %v3648 = vunpack.c.l.b16 %v3321
        %v3649 = vunpack.c.l.b16 %v3322
        %v3650 = vunpack.c.l.b16 %v3323
        %v3651 = vunpack.c.l.b16 %v3324
        %v3652 = vunpack.c.l.b16 %v3325
        %v3653 = vunpack.c.l.b16 %v3326
        %v3654 = vunpack.c.l.b16 %v3327
        %v3655 = vunpack.c.l.b16 %v3328
        %v3656 = vunpack.c.l.b16 %v3329
        %v3657 = vunpack.c.l.b16 %v3330
        %v3658 = vunpack.c.l.b16 %v3331
        %v3659 = vunpack.c.l.b16 %v3332
        %v3660 = vunpack.c.l.b16 %v3333
        %v3661 = vunpack.c.l.b16 %v3334
        %v3662 = vunpack.c.l.b16 %v3335
        %v3663 = vunpack.c.l.b16 %v3336
        %v3664 = vunpack.c.l.b16 %v3337
        %v3665 = vunpack.c.l.b16 %v3338
        %v3666 = vunpack.c.l.b16 %v3339
        %v3667 = vunpack.c.l.b16 %v3340
        %v3668 = vunpack.c.l.b16 %v3341
        %v3669 = vunpack.c.l.b16 %v3342
        %v3670 = vunpack.c.l.b16 %v3343
        %v3671 = vunpack.c.l.b16 %v3344
        %v3672 = vunpack.c.l.b16 %v3345
        %v3673 = vunpack.c.l.b16 %v3346
        %v3674 = vunpack.c.l.b16 %v3347
        %v3675 = vunpack.c.l.b16 %v3348
        %v3676 = vunpack.c.l.b16 %v3349
        %v3677 = vunpack.c.l.b16 %v3350
        %v3678 = vunpack.c.l.b16 %v3351
        %v3679 = vunpack.c.l.b16 %v3352
        %v3680 = vunpack.c.l.b16 %v3353
        %v3681 = vunpack.c.l.b16 %v3354
        %v3682 = vunpack.c.l.b16 %v3355
        %v3683 = vunpack.c.l.b16 %v3356
        %v3684 = vunpack.c.l.b16 %v3357
        %v3685 = vunpack.c.l.b16 %v3358
        %v3686 = vunpack.c.l.b16 %v3359
        %v3687 = vunpack.c.l.b16 %v3360
        %v3688 = vunpack.c.l.b16 %v3361
        %v3689 = vunpack.c.l.b16 %v3362
        %v3690 = vunpack.c.l.b16 %v3363
        %v3691 = vunpack.c.l.b16 %v3364
        %v3692 = vunpack.c.l.b16 %v3365
        %v3693 = vunpack.c.l.b16 %v3366
        %v3694 = vunpack.c.l.b16 %v3367
        %v3695 = vunpack.c.l.b16 %v3368
        %v3696 = vunpack.c.l.b16 %v3369
        %v3697 = vunpack.c.l.b16 %v3370
        %v3698 = vunpack.c.l.b16 %v3371
        %v3699 = vunpack.c.l.b16 %v3372
        %v3700 = vunpack.c.l.b16 %v3373
        %v3701 = vunpack.c.l.b16 %v3374
        %v3702 = vunpack.c.l.b16 %v3375
        %v3703 = vunpack.c.l.b16 %v3376
        %v3704 = vunpack.c.l.b16 %v3377
        %v3705 = vunpack.c.l.b16 %v3378
        %v3706 = vunpack.c.l.b16 %v3379
        %v3707 = vunpack.c.l.b16 %v3380
        %v3708 = vunpack.c.l.b16 %v3381
        %v3709 = vunpack.c.l.b16 %v3382
        %v3710 = vunpack.c.l.b16 %v3383
        %v3711 = vunpack.c.l.b16 %v3384
        %v3712 = vunpack.c.l.b16 %v3385
        %v3713 = vunpack.c.l.b16 %v3386
        %v3714 = vunpack.c.l.b16 %v3387
        %v3715 = vunpack.c.l.b16 %v3388
        %v3716 = vunpack.c.l.b16 %v3389
        %v3717 = vunpack.c.l.b16 %v3390
        %v3718 = vunpack.c.l.b16 %v3391
        %v3719 = vunpack.c.l.b16 %v3392
        %v3720 = vunpack.c.l.b16 %v3393
        %v3721 = vunpack.c.l.b16 %v3394
        %v3722 = vunpack.c.l.b16 %v3395
        %v3723 = vunpack.c.l.b16 %v3396
        %v3724 = vunpack.c.l.b16 %v3397
        %v3725 = vunpack.c.l.b16 %v3398
        %v3726 = vunpack.c.l.b16 %v3399
        %v3727 = vunpack.c.l.b16 %v3400
        %v3728 = vunpack.c.l.b16 %v3401
        %v3729 = vunpack.c.l.b16 %v3402
        %v3730 = vunpack.c.l.b16 %v3403
        %v3731 = vunpack.c.l.b16 %v3404
        %v3732 = vunpack.c.l.b16 %v3405
        %v3733 = vunpack.c.l.b16 %v3406
        %v3734 = vunpack.c.l.b16 %v3407
        %v3735 = vunpack.c.l.b16 %v3408
        %v3736 = vunpack.c.l.b16 %v3409
        %v3737 = vunpack.c.l.b16 %v3410
        %v3738 = vunpack.c.l.b16 %v3411
        %v3739 = vunpack.c.l.b16 %v3412
        %v3740 = vunpack.c.l.b16 %v3413
        %v3741 = vunpack.c.l.b16 %v3414
        %v3742 = vunpack.c.l.b16 %v3415
        %v3743 = vunpack.c.l.b16 %v3416
        %v3744 = vunpack.c.l.b16 %v3417
        %v3745 = vunpack.c.l.b16 %v3418
        %v3746 = vpack.c.b16 %v3587, %v3586
        %v3747 = vpack.c.b16 %v3589, %v3588
        %v3748 = vpack.c.b16 %v3591, %v3590
        %v3749 = vpack.c.b16 %v3593, %v3592
        %v3750 = vpack.c.b16 %v3595, %v3594
        %v3751 = vpack.c.b16 %v3597, %v3596
        %v3752 = vpack.c.b16 %v3599, %v3598
        %v3753 = vpack.c.b16 %v3601, %v3600
        %v3754 = vpack.c.b16 %v3603, %v3602
        %v3755 = vpack.c.b16 %v3605, %v3604
        %v3756 = vpack.c.b16 %v3607, %v3606
        %v3757 = vpack.c.b16 %v3609, %v3608
        %v3758 = vpack.c.b16 %v3611, %v3610
        %v3759 = vpack.c.b16 %v3613, %v3612
        %v3760 = vpack.c.b16 %v3615, %v3614
        %v3761 = vpack.c.b16 %v3617, %v3616
        %v3762 = vpack.c.b16 %v3619, %v3618
        %v3763 = vpack.c.b16 %v3621, %v3620
        %v3764 = vpack.c.b16 %v3623, %v3622
        %v3765 = vpack.c.b16 %v3625, %v3624
        %v3766 = vpack.c.b16 %v3627, %v3626
        %v3767 = vpack.c.b16 %v3629, %v3628
        %v3768 = vpack.c.b16 %v3631, %v3630
        %v3769 = vpack.c.b16 %v3633, %v3632
        %v3770 = vpack.c.b16 %v3635, %v3634
        %v3771 = vpack.c.b16 %v3637, %v3636
        %v3772 = vpack.c.b16 %v3639, %v3638
        %v3773 = vpack.c.b16 %v3641, %v3640
        %v3774 = vpack.c.b16 %v3643, %v3642
        %v3775 = vpack.c.b16 %v3645, %v3644
        %v3776 = vpack.c.b16 %v3647, %v3646
        %v3777 = vpack.c.b16 %v3649, %v3648
        %v3778 = vpack.c.b16 %v3651, %v3650
        %v3779 = vpack.c.b16 %v3653, %v3652
        %v3780 = vpack.c.b16 %v3655, %v3654
        %v3781 = vpack.c.b16 %v3657, %v3656
        %v3782 = vpack.c.b16 %v3659, %v3658
        %v3783 = vpack.c.b16 %v3661, %v3660
        %v3784 = vpack.c.b16 %v3663, %v3662
        %v3785 = vpack.c.b16 %v3665, %v3664
        %v3786 = vpack.c.b16 %v3667, %v3666
        %v3787 = vpack.c.b16 %v3669, %v3668
        %v3788 = vpack.c.b16 %v3671, %v3670
        %v3789 = vpack.c.b16 %v3673, %v3672
        %v3790 = vpack.c.b16 %v3675, %v3674
        %v3791 = vpack.c.b16 %v3677, %v3676
        %v3792 = vpack.c.b16 %v3679, %v3678
        %v3793 = vpack.c.b16 %v3681, %v3680
        %v3794 = vpack.c.b16 %v3683, %v3682
        %v3795 = vpack.c.b16 %v3685, %v3684
        %v3796 = vpack.c.b16 %v3687, %v3686
        %v3797 = vpack.c.b16 %v3689, %v3688
        %v3798 = vpack.c.b16 %v3691, %v3690
        %v3799 = vpack.c.b16 %v3693, %v3692
        %v3800 = vpack.c.b16 %v3695, %v3694
        %v3801 = vpack.c.b16 %v3697, %v3696
        %v3802 = vpack.c.b16 %v3699, %v3698
        %v3803 = vpack.c.b16 %v3701, %v3700
        %v3804 = vpack.c.b16 %v3703, %v3702
        %v3805 = vpack.c.b16 %v3705, %v3704
        %v3806 = vpack.c.b16 %v3707, %v3706
        %v3807 = vpack.c.b16 %v3709, %v3708
        %v3808 = vpack.c.b16 %v3711, %v3710
        %v3809 = vpack.c.b16 %v3713, %v3712
        %v3810 = vpack.c.b16 %v3715, %v3714
        %v3811 = vpack.c.b16 %v3717, %v3716
        %v3812 = vpack.c.b16 %v3719, %v3718
        %v3813 = vpack.c.b16 %v3721, %v3720
        %v3814 = vpack.c.b16 %v3723, %v3722
        %v3815 = vpack.c.b16 %v3725, %v3724
        %v3816 = vpack.c.b16 %v3727, %v3726
        %v3817 = vpack.c.b16 %v3729, %v3728
        %v3818 = vpack.c.b16 %v3731, %v3730
        %v3819 = vpack.c.b16 %v3733, %v3732
        %v3820 = vpack.c.b16 %v3735, %v3734
        %v3821 = vpack.c.b16 %v3737, %v3736
        %v3822 = vpack.c.b16 %v3739, %v3738
        %v3823 = vpack.c.b16 %v3741, %v3740
        %v3824 = vpack.c.b16 %v3743, %v3742
        %v3825 = vpack.c.b16 %v3745, %v3744
        %3906 = vmatprep.subr.bf16.mxu0 0
        %3907 = vmatpush1.bf16.msra.mxu0 %v3753
        %3908 = vmatprep.subr.bf16.mxu0 0
        %3909 = vmatpush1.bf16.msra.mxu0 %v3752
        %3910 = vmatprep.subr.bf16.mxu0 0
        %3911 = vmatpush1.bf16.msra.mxu0 %v3751
        %3912 = vmatprep.subr.bf16.mxu0 0
        %3913 = vmatpush1.bf16.msra.mxu0 %v3750
        %3914 = vmatprep.subr.bf16.mxu0 0
        %3915 = vmatpush1.bf16.msra.mxu0 %v3749
        %3916 = vmatprep.subr.bf16.mxu0 0
        %3917 = vmatpush1.bf16.msra.mxu0 %v3748
        %3918 = vmatprep.subr.bf16.mxu0 0
        %3919 = vmatpush1.bf16.msra.mxu0 %v3747
        %3920 = vmatprep.subr.bf16.mxu0 0
        %3921 = vmatpush1.bf16.msra.mxu0 %v3746
        %3922 = vmatprep.subr.bf16.mxu0 0
        %3923 = vmatpush2.bf16.msra.mxu0 %v3761
        %3924 = vmatprep.subr.bf16.mxu0 0
        %3925 = vmatpush2.bf16.msra.mxu0 %v3760
        %3926 = vmatprep.subr.bf16.mxu0 0
        %3927 = vmatpush2.bf16.msra.mxu0 %v3759
        %3928 = vmatprep.subr.bf16.mxu0 0
        %3929 = vmatpush2.bf16.msra.mxu0 %v3758
        %3930 = vmatprep.subr.bf16.mxu0 0
        %3931 = vmatpush2.bf16.msra.mxu0 %v3757
        %3932 = vmatprep.subr.bf16.mxu0 0
        %3933 = vmatpush2.bf16.msra.mxu0 %v3756
        %3934 = vmatprep.subr.bf16.mxu0 0
        %3935 = vmatpush2.bf16.msra.mxu0 %v3755
        %3936 = vmatprep.subr.bf16.mxu0 0
        %3937 = vmatpush2.bf16.msra.mxu0 %v3754
        %3938 = vmatprep.mubr.bf16.mxu0 %v3250
        %3939 = vmatmul.mubr.bf16.gmra.mxu0 %v3249
        %v3940 = vpop.f32.mrf.mxu0
        %v3941 = vadd.f32 %v3424, %v3940
        %v3942 = vpop.f32.mrf.mxu0
        %v3943 = vpop.f32.mrf.mxu0
        %v3944 = vpop.f32.mrf.mxu0
        %3945 = vdwg.mxu0
        %3946 = vmatprep.subr.bf16.mxu0 0
        %3947 = vmatpush1.bf16.msra.mxu0 %v3769
        %3948 = vmatprep.subr.bf16.mxu0 0
        %3949 = vmatpush1.bf16.msra.mxu0 %v3768
        %3950 = vmatprep.subr.bf16.mxu0 0
        %3951 = vmatpush1.bf16.msra.mxu0 %v3767
        %3952 = vmatprep.subr.bf16.mxu0 0
        %3953 = vmatpush1.bf16.msra.mxu0 %v3766
        %3954 = vmatprep.subr.bf16.mxu0 0
        %3955 = vmatpush1.bf16.msra.mxu0 %v3765
        %3956 = vmatprep.subr.bf16.mxu0 0
        %3957 = vmatpush1.bf16.msra.mxu0 %v3764
        %3958 = vmatprep.subr.bf16.mxu0 0
        %3959 = vmatpush1.bf16.msra.mxu0 %v3763
        %3960 = vmatprep.subr.bf16.mxu0 0
        %3961 = vmatpush1.bf16.msra.mxu0 %v3762
        %3962 = vmatprep.subr.bf16.mxu0 0
        %3963 = vmatpush2.bf16.msra.mxu0 %v3777
        %3964 = vmatprep.subr.bf16.mxu0 0
        %3965 = vmatpush2.bf16.msra.mxu0 %v3776
        %3966 = vmatprep.subr.bf16.mxu0 0
        %3967 = vmatpush2.bf16.msra.mxu0 %v3775
        %3968 = vmatprep.subr.bf16.mxu0 0
        %3969 = vmatpush2.bf16.msra.mxu0 %v3774
        %3970 = vmatprep.subr.bf16.mxu0 0
        %3971 = vmatpush2.bf16.msra.mxu0 %v3773
        %3972 = vmatprep.subr.bf16.mxu0 0
        %3973 = vmatpush2.bf16.msra.mxu0 %v3772
        %3974 = vmatprep.subr.bf16.mxu0 0
        %3975 = vmatpush2.bf16.msra.mxu0 %v3771
        %3976 = vmatprep.subr.bf16.mxu0 0
        %3977 = vmatpush2.bf16.msra.mxu0 %v3770
        %3978 = vmatprep.mubr.bf16.mxu0 %v3252
        %3979 = vmatmul.mubr.bf16.gmra.mxu0 %v3251
        %v3980 = vpop.f32.mrf.mxu0
        %v3981 = vadd.f32 %v3941, %v3980
        %v3982 = vpop.f32.mrf.mxu0
        %v3983 = vpop.f32.mrf.mxu0
        %v3984 = vpop.f32.mrf.mxu0
        %3985 = vdwg.mxu0
        %3986 = vmatprep.subr.bf16.mxu0 0
        %3987 = vmatpush1.bf16.msra.mxu0 %v3785
        %3988 = vmatprep.subr.bf16.mxu0 0
        %3989 = vmatpush1.bf16.msra.mxu0 %v3784
        %3990 = vmatprep.subr.bf16.mxu0 0
        %3991 = vmatpush1.bf16.msra.mxu0 %v3783
        %3992 = vmatprep.subr.bf16.mxu0 0
        %3993 = vmatpush1.bf16.msra.mxu0 %v3782
        %3994 = vmatprep.subr.bf16.mxu0 0
        %3995 = vmatpush1.bf16.msra.mxu0 %v3781
        %3996 = vmatprep.subr.bf16.mxu0 0
        %3997 = vmatpush1.bf16.msra.mxu0 %v3780
        %3998 = vmatprep.subr.bf16.mxu0 0
        %3999 = vmatpush1.bf16.msra.mxu0 %v3779
        %4000 = vmatprep.subr.bf16.mxu0 0
        %4001 = vmatpush1.bf16.msra.mxu0 %v3778
        %4002 = vmatprep.subr.bf16.mxu0 0
        %4003 = vmatpush2.bf16.msra.mxu0 %v3793
        %4004 = vmatprep.subr.bf16.mxu0 0
        %4005 = vmatpush2.bf16.msra.mxu0 %v3792
        %4006 = vmatprep.subr.bf16.mxu0 0
        %4007 = vmatpush2.bf16.msra.mxu0 %v3791
        %4008 = vmatprep.subr.bf16.mxu0 0
        %4009 = vmatpush2.bf16.msra.mxu0 %v3790
        %4010 = vmatprep.subr.bf16.mxu0 0
        %4011 = vmatpush2.bf16.msra.mxu0 %v3789
        %4012 = vmatprep.subr.bf16.mxu0 0
        %4013 = vmatpush2.bf16.msra.mxu0 %v3788
        %4014 = vmatprep.subr.bf16.mxu0 0
        %4015 = vmatpush2.bf16.msra.mxu0 %v3787
        %4016 = vmatprep.subr.bf16.mxu0 0
        %4017 = vmatpush2.bf16.msra.mxu0 %v3786
        %4018 = vmatprep.mubr.bf16.mxu0 %v3254
        %4019 = vmatmul.mubr.bf16.gmra.mxu0 %v3253
        %v4020 = vpop.f32.mrf.mxu0
        %v4021 = vadd.f32 %v3981, %v4020
        %v4022 = vpop.f32.mrf.mxu0
        %v4023 = vpop.f32.mrf.mxu0
        %v4024 = vpop.f32.mrf.mxu0
        %4025 = vdwg.mxu0
        %4026 = vmatprep.subr.bf16.mxu0 0
        %4027 = vmatpush1.bf16.msra.mxu0 %v3801
        %4028 = vmatprep.subr.bf16.mxu0 0
        %4029 = vmatpush1.bf16.msra.mxu0 %v3800
        %4030 = vmatprep.subr.bf16.mxu0 0
        %4031 = vmatpush1.bf16.msra.mxu0 %v3799
        %4032 = vmatprep.subr.bf16.mxu0 0
        %4033 = vmatpush1.bf16.msra.mxu0 %v3798
        %4034 = vmatprep.subr.bf16.mxu0 0
        %4035 = vmatpush1.bf16.msra.mxu0 %v3797
        %4036 = vmatprep.subr.bf16.mxu0 0
        %4037 = vmatpush1.bf16.msra.mxu0 %v3796
        %4038 = vmatprep.subr.bf16.mxu0 0
        %4039 = vmatpush1.bf16.msra.mxu0 %v3795
        %4040 = vmatprep.subr.bf16.mxu0 0
        %4041 = vmatpush1.bf16.msra.mxu0 %v3794
        %4042 = vmatprep.subr.bf16.mxu0 0
        %4043 = vmatpush2.bf16.msra.mxu0 %v3809
        %4044 = vmatprep.subr.bf16.mxu0 0
        %4045 = vmatpush2.bf16.msra.mxu0 %v3808
        %4046 = vmatprep.subr.bf16.mxu0 0
        %4047 = vmatpush2.bf16.msra.mxu0 %v3807
        %4048 = vmatprep.subr.bf16.mxu0 0
        %4049 = vmatpush2.bf16.msra.mxu0 %v3806
        %4050 = vmatprep.subr.bf16.mxu0 0
        %4051 = vmatpush2.bf16.msra.mxu0 %v3805
        %4052 = vmatprep.subr.bf16.mxu0 0
        %4053 = vmatpush2.bf16.msra.mxu0 %v3804
        %4054 = vmatprep.subr.bf16.mxu0 0
        %4055 = vmatpush2.bf16.msra.mxu0 %v3803
        %4056 = vmatprep.subr.bf16.mxu0 0
        %4057 = vmatpush2.bf16.msra.mxu0 %v3802
        %4058 = vmatprep.mubr.bf16.mxu0 %v3256
        %4059 = vmatmul.mubr.bf16.gmra.mxu0 %v3255
        %v4060 = vpop.f32.mrf.mxu0
        %v4061 = vadd.f32 %v4021, %v4060
        %v4062 = vpop.f32.mrf.mxu0
        %v4063 = vpop.f32.mrf.mxu0
        %v4064 = vpop.f32.mrf.mxu0
        %4065 = vdwg.mxu0
        %4066 = vmatprep.subr.bf16.mxu0 0
        %4067 = vmatpush1.bf16.msra.mxu0 %v3817
        %4068 = vmatprep.subr.bf16.mxu0 0
        %4069 = vmatpush1.bf16.msra.mxu0 %v3816
        %4070 = vmatprep.subr.bf16.mxu0 0
        %4071 = vmatpush1.bf16.msra.mxu0 %v3815
        %4072 = vmatprep.subr.bf16.mxu0 0
        %4073 = vmatpush1.bf16.msra.mxu0 %v3814
        %4074 = vmatprep.subr.bf16.mxu0 0
        %4075 = vmatpush1.bf16.msra.mxu0 %v3813
        %4076 = vmatprep.subr.bf16.mxu0 0
        %4077 = vmatpush1.bf16.msra.mxu0 %v3812
        %4078 = vmatprep.subr.bf16.mxu0 0
        %4079 = vmatpush1.bf16.msra.mxu0 %v3811
        %4080 = vmatprep.subr.bf16.mxu0 0
        %4081 = vmatpush1.bf16.msra.mxu0 %v3810
        %4082 = vmatprep.subr.bf16.mxu0 0
        %4083 = vmatpush2.bf16.msra.mxu0 %v3825
        %4084 = vmatprep.subr.bf16.mxu0 0
        %4085 = vmatpush2.bf16.msra.mxu0 %v3824
        %4086 = vmatprep.subr.bf16.mxu0 0
        %4087 = vmatpush2.bf16.msra.mxu0 %v3823
        %4088 = vmatprep.subr.bf16.mxu0 0
        %4089 = vmatpush2.bf16.msra.mxu0 %v3822
        %4090 = vmatprep.subr.bf16.mxu0 0
        %4091 = vmatpush2.bf16.msra.mxu0 %v3821
        %4092 = vmatprep.subr.bf16.mxu0 0
        %4093 = vmatpush2.bf16.msra.mxu0 %v3820
        %4094 = vmatprep.subr.bf16.mxu0 0
        %4095 = vmatpush2.bf16.msra.mxu0 %v3819
        %4096 = vmatprep.subr.bf16.mxu0 0
        %4097 = vmatpush2.bf16.msra.mxu0 %v3818
        %4098 = vmatprep.mubr.bf16.mxu0 %v3258
        %4099 = vmatmul.mubr.bf16.gmra.mxu0 %v3257
        %v4100 = vpop.f32.mrf.mxu0
        %v4101 = vadd.f32 %v4061, %v4100
        %v4102 = vpop.f32.mrf.mxu0
        %v4103 = vpop.f32.mrf.mxu0
        %v4104 = vpop.f32.mrf.mxu0
        %4105 = vdwg.mxu0
        %v4106 = vxor.u32 %v4101, 2147483648
        %v4107 = vmul.f32 %v4106, 1.442695
        %v4108 = vpow.pop %v4107
        %v4109 = vadd.f32 %v4108, 1.0
        %v4110 = vrcp.pop %v4109
        %v4111 = vmul.f32 1.0, %v4110
        %vm4112 = vcmask 80896
        %4113 = vst.msk [vmem:[%s572] sm:$0xff] %vm4112, %v4111
        %p4114 = scmp.lt.s32.totalorder %s32, 6
        %s4115 = scalar_select %p4114, %s32, 6
        %s4116 = smul.addr %s4115, 8
        %s4117 = scalar_lea.vmem %s9, %s4116
        // Predicated region
        $region81: #{forward.1} parent=55 // pred_check
          %p4118 = pneg %p279
        $region82: #{forward.1} parent=55 // pred_check_branch
          %4120 = sbr.rel (%p4118) target = $region84
        $region83: #{forward.1} parent=55 // pred_region
          _
        $region84: #{forward.1} parent=55 // pred_fallthru
          _
      $region56: #{forward.1} parent=5 // pred_fallthru
        _
      %p4121 = scmp.le.s32.totalorder 2, %s27
      // Predicated region
      $region85: #{forward.1} parent=5 // pred_check
        %p4122 = pneg %p4121
      $region86: #{forward.1} parent=5 // pred_check_branch
        %4124 = sbr.rel (%p4122) target = $region88
      $region87: #{forward.1} parent=5 // pred_region
        %s4125 = ssub.s32 %s27, 2
        // Predicated region
        $region89: #{forward.1} parent=87 // pred_check
          %p4126 = pneg %p285
        $region90: #{forward.1} parent=87 // pred_check_branch
          %4128 = sbr.rel (%p4126) target = $region92
        $region91: #{forward.1} parent=87 // pred_region
          %p4129 = scmp.lt.s32.totalorder %s33, 6
          %s4130 = scalar_select %p4129, %s33, 6
          %s4131 = smul.addr %s4130, 8
          %s4132 = scalar_lea.vmem %s9, %s4131
        $region92: #{forward.1} parent=87 // pred_fallthru
          _
      $region88: #{forward.1} parent=5 // pred_fallthru
        _
    $region6: #{forward.1} parent=1 // loop_footer
      %s31 = sadd.s32 1, %s27
    $region7: #{forward.1} parent=1 // loop_footer_branch
      %26 = sbr.rel target = $region3
    $region8: #{forward.1} parent=1 // loop_exit
      _
    %4133 = vsyncpa [#allocation3], 1
    %s4134 = scalar_lea.sflag [#allocation3], 1
    %4135 = vsyncpa %s4134, 1
    %4136 = vsyncpa [#allocation5], 1
    %s4137 = scalar_lea.sflag [#allocation5], 1
    %4138 = vsyncpa %s4137, 1
    %4139 = vsyncpa [#allocation8], 1
    %s4140 = scalar_lea.sflag [#allocation8], 1
    %4141 = vsyncpa %s4140, 1
    %4142 = vsyncpa [#allocation11], 1
    %s4143 = scalar_lea.sflag [#allocation11], 1
    %4144 = vsyncpa %s4143, 1

</llo_original>
